<compile_context>
chip_gen: v6e
topology: v6e:2x2x1
jax: 0.10.0
libtpu: 0.0.40
codegen_flags: <defaults>
</compile_context>

<pallas_src>
import functools

import jax
import jax.numpy as jnp
from jax import lax
from jax.experimental import pallas as pl
from jax.experimental.pallas import tpu as pltpu


# ---------------------------------------------------------------------------
# Kernel 1: fused  out_conv( RCU2( x0 + RCU1(x1) ) )  at (H, W) resolution.
#   x0_ref, x1_ref : (1, C, H*W)  channel-major (C sublanes, HW lanes)
#   mask_ref       : (9, H*W)     0/1 validity masks per 3x3 tap
#   w?? (conv)     : (9, C, C)    w[k] = OIHW weight[:, :, ky, kx], k = ky*3+kx
#   b??            : (C, 1)
#   wout           : (C, C)       1x1 out_conv weight (Cout, Cin)
#   bout           : (C, 1)
#   out_ref        : (1, C, H*W)  lane-dense store
# ---------------------------------------------------------------------------
def _merge_kernel(x0_ref, x1_ref, mask_ref, w1a, b1a, w1b, b1b,
                  w2a, b2a, w2b, b2b, wout, bout, out_ref, *, H, W):
    C = x0_ref.shape[1]
    HW = H * W
    cd = wout.dtype                      # matmul operand dtype (bf16 or f32)
    masks = mask_ref[...]                # (9, HW) f32 0/1

    def shift_lanes(a, d):
        # result[:, p] = a[:, (p + d) % HW]; wrapped lanes are zeroed by mask.
        # TODO(synk): pltpu.roll would move this shift onto the XLU slot.
        if d == 0:
            return a
        i = d % HW
        return jnp.concatenate([a[:, i:], a[:, :i]], axis=1)

    def conv3x3(a, w_ref, b_ref):
        # 9 accumulating (C, C) x (C, HW) MXU matmuls -- no im2col staging.
        acc = jnp.zeros((C, HW), jnp.float32)
        for dy in range(3):
            for dx in range(3):
                k = dy * 3 + dx
                if k == 4:                              # centre tap
                    t = a
                else:
                    t = shift_lanes(a, (dy - 1) * W + (dx - 1)) * masks[k:k + 1]
                acc = acc + jnp.dot(w_ref[k], t.astype(cd),
                                    preferred_element_type=jnp.float32)
        return acc + b_ref[...]

    def rcu(x, w_a, b_a, w_b, b_b):
        a = jnp.maximum(x, 0.0)
        y = conv3x3(a, w_a, b_a)
        a = jnp.maximum(y, 0.0)
        y = conv3x3(a, w_b, b_b)
        return y + x

    x0 = x0_ref[0]                                      # (C, HW) f32
    x1 = x1_ref[0]
    u = x0 + rcu(x1, w1a, b1a, w1b, b1b)                # skip_add.add(output, res)
    r = rcu(u, w2a, b2a, w2b, b2b)
    # 1x1 out_conv commuted ahead of the bilinear upsample (exact because the
    # align_corners=True interpolation rows sum to 1).
    z = jnp.dot(wout[...], r.astype(cd),
                preferred_element_type=jnp.float32) + bout[...]
    out_ref[0] = z.astype(out_ref.dtype)                # lane-dense store


def _fused_merge_call(x0f, x1f, tap_masks, weights, H, W):
    N, C, HW = x0f.shape
    (w1a, b1a, w1b, b1b, w2a, b2a, w2b, b2b, wout, bout) = weights
    act_spec = pl.BlockSpec((1, C, HW), lambda n: (n, 0, 0))
    mask_spec = pl.BlockSpec((9, HW), lambda n: (0, 0))
    w3_spec = pl.BlockSpec((9, C, C), lambda n: (0, 0, 0))
    b_spec = pl.BlockSpec((C, 1), lambda n: (0, 0))
    w1_spec = pl.BlockSpec((C, C), lambda n: (0, 0))
    kernel = functools.partial(_merge_kernel, H=H, W=W)
    return pl.pallas_call(
        kernel,
        out_shape=jax.ShapeDtypeStruct((N, C, HW), x0f.dtype),
        grid=(N,),
        in_specs=[act_spec, act_spec, mask_spec,
                  w3_spec, b_spec, w3_spec, b_spec,
                  w3_spec, b_spec, w3_spec, b_spec,
                  w1_spec, b_spec],
        out_specs=pl.BlockSpec((1, C, HW), lambda n: (n, 0, 0)),
        compiler_params=pltpu.CompilerParams(
            dimension_semantics=("parallel",),
            vmem_limit_bytes=48 * 1024 * 1024),
    )(x0f, x1f, tap_masks,
      w1a, b1a, w1b, b1b, w2a, b2a, w2b, b2b, wout, bout)


# ---------------------------------------------------------------------------
# Kernel 2: bilinear x2 upsample (align_corners=True), channel-block tiled.
#   z_ref  : (1, Cb, H, W)   wh_ref: (2H, H)   wwt_ref: (W, 2W)
#   out_ref: (1, Cb, 2H, 2W)
# ---------------------------------------------------------------------------
def _upsample_kernel(z_ref, wh_ref, wwt_ref, out_ref):
    _, cb, h, w = z_ref.shape
    h2 = wh_ref.shape[0]
    w2 = wwt_ref.shape[1]
    cd = wh_ref.dtype
    z = z_ref[0]                                            # (Cb, H, W) f32
    # W-direction: ONE big matmul, M = Cb*H rows, K = W, N = 2W.
    t = jnp.dot(z.reshape(cb * h, w).astype(cd), wwt_ref[...],
                preferred_element_type=jnp.float32)         # (Cb*H, 2W)
    # H-direction: batched over the channel block (bf16, Cb-bounded broadcast).
    t3 = t.reshape(cb, h, w2).astype(cd)
    wh_b = jnp.broadcast_to(wh_ref[...], (cb, h2, h))
    u = lax.dot_general(wh_b, t3, (((2,), (1,)), ((0,), (0,))),
                        preferred_element_type=jnp.float32)  # (Cb, 2H, 2W)
    out_ref[0] = u.astype(out_ref.dtype)


def bilinear_matrix(n_in, n_out):
    """Interpolation matrix (n_out, n_in) for F.interpolate(align_corners=True)."""
    if n_in == 1:
        return jnp.ones((n_out, 1), jnp.float32)
    src = jnp.arange(n_out, dtype=jnp.float32) * (n_in - 1) / (n_out - 1)
    low = jnp.clip(jnp.floor(src).astype(jnp.int32), 0, n_in - 1)
    high = jnp.clip(low + 1, 0, n_in - 1)
    frac = src - low.astype(jnp.float32)
    return ((1.0 - frac)[:, None] * jax.nn.one_hot(low, n_in, dtype=jnp.float32)
            + frac[:, None] * jax.nn.one_hot(high, n_in, dtype=jnp.float32))


def _upsample_call(z4, compute_dtype):
    N, C, H, W = z4.shape
    H2, W2 = 2 * H, 2 * W
    cb = 64 if C % 64 == 0 else C                 # channel block (v7x VMEM/2-core)
    wh = bilinear_matrix(H, H2).astype(compute_dtype)       # (2H, H)
    wwt = bilinear_matrix(W, W2).T.astype(compute_dtype)    # (W, 2W)
    return pl.pallas_call(
        _upsample_kernel,
        out_shape=jax.ShapeDtypeStruct((N, C, H2, W2), z4.dtype),
        grid=(N, C // cb),
        in_specs=[pl.BlockSpec((1, cb, H, W), lambda n, c: (n, c, 0, 0)),
                  pl.BlockSpec((H2, H), lambda n, c: (0, 0)),
                  pl.BlockSpec((W, W2), lambda n, c: (0, 0))],
        out_specs=pl.BlockSpec((1, cb, H2, W2), lambda n, c: (n, c, 0, 0)),
        compiler_params=pltpu.CompilerParams(
            dimension_semantics=("parallel", "parallel"),
            vmem_limit_bytes=48 * 1024 * 1024),
    )(z4, wh, wwt)


# ---------------------------------------------------------------------------
# FeatureMerging forward (bn=False, activation='relu', align_corners=True)
# ---------------------------------------------------------------------------
def _pack_conv3x3(w_oihw, cd):
    """(Cout, Cin, 3, 3) OIHW -> (9, Cout, Cin), tap index k = ky*3 + kx."""
    co, ci = w_oihw.shape[:2]
    return jnp.transpose(w_oihw, (2, 3, 0, 1)).reshape(9, co, ci).astype(cd)


def _tap_masks(H, W):
    """(9, H*W) 0/1 masks: mask[k, p] = 1 iff tap k of the 3x3 conv is in-bounds."""
    y = jnp.arange(H, dtype=jnp.int32)[:, None]
    x = jnp.arange(W, dtype=jnp.int32)[None, :]
    rows = []
    for dy in range(3):
        for dx in range(3):
            oy, ox = dy - 1, dx - 1
            m = ((y + oy >= 0) & (y + oy < H) & (x + ox >= 0) & (x + ox < W))
            rows.append(m.reshape(H * W))
    return jnp.stack(rows).astype(jnp.float32)


def feature_merging_forward(x0_nchw, x1_nchw, params,
                            *, compute_dtype=jnp.bfloat16):
    N, C, H, W = x0_nchw.shape
    cd = compute_dtype
    p1, p2 = params["rcu1"], params["rcu2"]
    weights = (_pack_conv3x3(p1["w1"], cd), p1["b1"].reshape(C, 1),
               _pack_conv3x3(p1["w2"], cd), p1["b2"].reshape(C, 1),
               _pack_conv3x3(p2["w1"], cd), p2["b1"].reshape(C, 1),
               _pack_conv3x3(p2["w2"], cd), p2["b2"].reshape(C, 1),
               params["wout"].astype(cd), params["bout"].reshape(C, 1))

    # Free metadata reshapes only (no HBM transpose passes).
    x0f = x0_nchw.reshape(N, C, H * W)
    x1f = x1_nchw.reshape(N, C, H * W)
    zf = _fused_merge_call(x0f, x1f, _tap_masks(H, W), weights, H, W)  # (N,C,HW)
    return _upsample_call(zf.reshape(N, C, H, W), cd)                  # (N,C,2H,2W)


# ---------------------------------------------------------------------------
# Deterministic parameter init (synthetic; shapes match the nn.Module).
# ---------------------------------------------------------------------------
def init_params(key, C):
    ks = jax.random.split(key, 10)

    def rcu_params(k1, k2, k3, k4):
        return {
            "w1": 0.1 * jax.random.normal(k1, (C, C, 3, 3), jnp.float32),
            "b1": 0.05 * jax.random.normal(k2, (C,), jnp.float32),
            "w2": 0.1 * jax.random.normal(k3, (C, C, 3, 3), jnp.float32),
            "b2": 0.05 * jax.random.normal(k4, (C,), jnp.float32),
        }

    return {
        "rcu1": rcu_params(*ks[0:4]),
        "rcu2": rcu_params(*ks[4:8]),
        "wout": 0.1 * jax.random.normal(ks[8], (C, C), jnp.float32),
        "bout": 0.05 * jax.random.normal(ks[9], (C,), jnp.float32),
    }


# ---------------------------------------------------------------------------
# Pure-JAX reference (mirrors the PyTorch forward: out_conv AFTER upsample),
# which also validates the out_conv/upsample commutation used in the kernels.
# ---------------------------------------------------------------------------
def reference_forward(x0, x1, params):
    N, C, H, W = x0.shape

    def conv3(x, w, b):
        y = lax.conv_general_dilated(
            x, w, (1, 1), "SAME",
            dimension_numbers=("NCHW", "OIHW", "NCHW"),
            precision=lax.Precision.HIGHEST)
        return y + b[None, :, None, None]

    def rcu(x, p):
        a = jax.nn.relu(x)
        y = conv3(a, p["w1"], p["b1"])
        a = jax.nn.relu(y)
        y = conv3(a, p["w2"], p["b2"])
        return y + x

    out = x0 + rcu(x1, params["rcu1"])
    out = rcu(out, params["rcu2"])
    wh = bilinear_matrix(H, 2 * H)
    ww = bilinear_matrix(W, 2 * W)
    t = jnp.einsum("uh,nchw->ncuw", wh, out, precision=lax.Precision.HIGHEST)
    t = jnp.einsum("ncuw,vw->ncuv", t, ww, precision=lax.Precision.HIGHEST)
    y = jnp.einsum("oc,ncuv->nouv", params["wout"], t,
                   precision=lax.Precision.HIGHEST)
    return y + params["bout"][None, :, None, None]


if __name__ == "__main__":
    N, C, H, W = 2, 4, 16, 16
    key = jax.random.PRNGKey(0)
    k0, k1, kp = jax.random.split(key, 3)
    x0 = jax.random.normal(k0, (N, C, H, W), jnp.float32)   # xs[0]
    x1 = jax.random.normal(k1, (N, C, H, W), jnp.float32)   # xs[1]
    params = init_params(kp, C)

    fwd = jax.jit(feature_merging_forward)
    y = jax.block_until_ready(fwd(x0, x1, params))

    assert y.shape == (N, C, 2 * H, 2 * W), y.shape
    ref = reference_forward(x0, x1, params)
    err = float(jnp.max(jnp.abs(y - ref)))
    # bf16 MXU operands with f32 accumulation -> bf16-level tolerance.
    assert jnp.allclose(y, ref, atol=5e-2, rtol=5e-2), err

    print("KERNEL_OK")
</pallas_src>

<mosaic_0001>
module attributes {stable_mosaic.version = 11 : i64} {
  func.func @_upsample_kernel(%arg0: i32, %arg1: i32, %arg2: memref<1x4x16x16xf32, #tpu.memory_space<vmem>>, %arg3: memref<32x16xbf16, #tpu.memory_space<vmem>>, %arg4: memref<16x32xbf16, #tpu.memory_space<vmem>>, %arg5: memref<1x4x32x32xf32, #tpu.memory_space<vmem>>) attributes {dimension_semantics = [#tpu.dimension_semantics<parallel>, #tpu.dimension_semantics<parallel>], iteration_bounds = array<i64: 2, 1>, scalar_prefetch = 0 : i64, scratch_operands = 0 : i64, tpu.core_type = #tpu.core_type<tc>, window_params = [{transform_indices = @transform_0, window_bounds = array<i64: 1, 4, 16, 16>}, {pipeline_mode = #tpu.pipeline_mode<synchronous>, transform_indices = @transform_1, window_bounds = array<i64: 32, 16>}, {pipeline_mode = #tpu.pipeline_mode<synchronous>, transform_indices = @transform_2, window_bounds = array<i64: 16, 32>}, {transform_indices = @transform_3, window_bounds = array<i64: 1, 4, 32, 32>}]} {
    %c0 = arith.constant 0 : index
    %c0_0 = arith.constant 0 : index
    %c0_1 = arith.constant 0 : index
    %c0_2 = arith.constant 0 : index
    %0 = vector.load %arg2[%c0, %c0_0, %c0_1, %c0_2] : memref<1x4x16x16xf32, #tpu.memory_space<vmem>>, vector<1x4x16x16xf32>
    %1 = vector.shape_cast %0 : vector<1x4x16x16xf32> to vector<4x16x16xf32>
    %2 = vector.shape_cast %1 : vector<4x16x16xf32> to vector<64x16xf32>
    %3 = arith.truncf %2 : vector<64x16xf32> to vector<64x16xbf16>
    %c0_3 = arith.constant 0 : index
    %c0_4 = arith.constant 0 : index
    %4 = vector.load %arg4[%c0_3, %c0_4] : memref<16x32xbf16, #tpu.memory_space<vmem>>, vector<16x32xbf16>
    %cst = arith.constant dense<0.000000e+00> : vector<64x32xf32>
    %5 = tpu.matmul %3, %4, %cst {dimension_numbers = #tpu.dot_dimension_numbers<[1], [0], [0], [1], [0, 0, 1, 1], [], []>} : vector<64x16xbf16>, vector<16x32xbf16>, vector<64x32xf32> -> vector<64x32xf32>
    %6 = vector.shape_cast %5 : vector<64x32xf32> to vector<4x16x32xf32>
    %7 = arith.truncf %6 : vector<4x16x32xf32> to vector<4x16x32xbf16>
    %c0_5 = arith.constant 0 : index
    %c0_6 = arith.constant 0 : index
    %8 = vector.load %arg3[%c0_5, %c0_6] : memref<32x16xbf16, #tpu.memory_space<vmem>>, vector<32x16xbf16>
    %9 = vector.shape_cast %8 : vector<32x16xbf16> to vector<1x32x16xbf16>
    %10 = vector.broadcast %9 : vector<1x32x16xbf16> to vector<4x32x16xbf16>
    %cst_7 = arith.constant dense<0.000000e+00> : vector<4x32x32xf32>
    %11 = tpu.matmul %10, %7, %cst_7 {dimension_numbers = #tpu.dot_dimension_numbers<[2], [1], [1], [2], [0, 0, 0, 1, 1, 2], [0], [0]>} : vector<4x32x16xbf16>, vector<4x16x32xbf16>, vector<4x32x32xf32> -> vector<4x32x32xf32>
    %c0_8 = arith.constant 0 : index
    %c0_9 = arith.constant 0 : index
    %c0_10 = arith.constant 0 : index
    %c0_11 = arith.constant 0 : index
    %12 = vector.load %arg5[%c0_8, %c0_9, %c0_10, %c0_11] : memref<1x4x32x32xf32, #tpu.memory_space<vmem>>, vector<1x4x32x32xf32>
    %13 = vector.shape_cast %12 : vector<1x4x32x32xf32> to vector<4x32x32xf32>
    %14 = vector.shape_cast %11 : vector<4x32x32xf32> to vector<1x4x32x32xf32>
    tpu.vector_store %arg5[%c0_8, %c0_9, %c0_10, %c0_11], %14 {strides = array<i32>} : memref<1x4x32x32xf32, #tpu.memory_space<vmem>>, vector<1x4x32x32xf32>,
    return
  }
  func.func @transform_0(%arg0: i32, %arg1: i32) -> (i32, i32, i32, i32) {
    %c0_i32 = arith.constant 0 : i32
    %c0_i32_0 = arith.constant 0 : i32
    %c0_i32_1 = arith.constant 0 : i32
    return %arg0, %arg1, %c0_i32, %c0_i32_0 : i32, i32, i32, i32
  }
  func.func @transform_1(%arg0: i32, %arg1: i32) -> (i32, i32) {
    %c0_i32 = arith.constant 0 : i32
    %c0_i32_0 = arith.constant 0 : i32
    %c0_i32_1 = arith.constant 0 : i32
    return %c0_i32, %c0_i32_0 : i32, i32
  }
  func.func @transform_2(%arg0: i32, %arg1: i32) -> (i32, i32) {
    %c0_i32 = arith.constant 0 : i32
    %c0_i32_0 = arith.constant 0 : i32
    %c0_i32_1 = arith.constant 0 : i32
    return %c0_i32, %c0_i32_0 : i32, i32
  }
  func.func @transform_3(%arg0: i32, %arg1: i32) -> (i32, i32, i32, i32) {
    %c0_i32 = arith.constant 0 : i32
    %c0_i32_0 = arith.constant 0 : i32
    %c0_i32_1 = arith.constant 0 : i32
    return %arg0, %arg1, %c0_i32, %c0_i32_0 : i32, i32, i32, i32
  }
}

module attributes {stable_mosaic.version = 11 : i64} {
  func.func @_merge_kernel(%arg0: i32, %arg1: memref<1x4x256xf32, #tpu.memory_space<vmem>>, %arg2: memref<1x4x256xf32, #tpu.memory_space<vmem>>, %arg3: memref<9x256xf32, #tpu.memory_space<vmem>>, %arg4: memref<9x4x4xbf16, #tpu.memory_space<vmem>>, %arg5: memref<4x1xf32, #tpu.memory_space<vmem>>, %arg6: memref<9x4x4xbf16, #tpu.memory_space<vmem>>, %arg7: memref<4x1xf32, #tpu.memory_space<vmem>>, %arg8: memref<9x4x4xbf16, #tpu.memory_space<vmem>>, %arg9: memref<4x1xf32, #tpu.memory_space<vmem>>, %arg10: memref<9x4x4xbf16, #tpu.memory_space<vmem>>, %arg11: memref<4x1xf32, #tpu.memory_space<vmem>>, %arg12: memref<4x4xbf16, #tpu.memory_space<vmem>>, %arg13: memref<4x1xf32, #tpu.memory_space<vmem>>, %arg14: memref<1x4x256xf32, #tpu.memory_space<vmem>>) attributes {dimension_semantics = [#tpu.dimension_semantics<parallel>], iteration_bounds = array<i64: 2>, scalar_prefetch = 0 : i64, scratch_operands = 0 : i64, tpu.core_type = #tpu.core_type<tc>, window_params = [{transform_indices = @transform_0, window_bounds = array<i64: 1, 4, 256>}, {transform_indices = @transform_1, window_bounds = array<i64: 1, 4, 256>}, {pipeline_mode = #tpu.pipeline_mode<synchronous>, transform_indices = @transform_2, window_bounds = array<i64: 9, 256>}, {pipeline_mode = #tpu.pipeline_mode<synchronous>, transform_indices = @transform_3, window_bounds = array<i64: 9, 4, 4>}, {pipeline_mode = #tpu.pipeline_mode<synchronous>, transform_indices = @transform_4, window_bounds = array<i64: 4, 1>}, {pipeline_mode = #tpu.pipeline_mode<synchronous>, transform_indices = @transform_5, window_bounds = array<i64: 9, 4, 4>}, {pipeline_mode = #tpu.pipeline_mode<synchronous>, transform_indices = @transform_6, window_bounds = array<i64: 4, 1>}, {pipeline_mode = #tpu.pipeline_mode<synchronous>, transform_indices = @transform_7, window_bounds = array<i64: 9, 4, 4>}, {pipeline_mode = #tpu.pipeline_mode<synchronous>, transform_indices = @transform_8, window_bounds = array<i64: 4, 1>}, {pipeline_mode = #tpu.pipeline_mode<synchronous>, transform_indices = @transform_9, window_bounds = array<i64: 9, 4, 4>}, {pipeline_mode = #tpu.pipeline_mode<synchronous>, transform_indices = @transform_10, window_bounds = array<i64: 4, 1>}, {pipeline_mode = #tpu.pipeline_mode<synchronous>, transform_indices = @transform_11, window_bounds = array<i64: 4, 4>}, {pipeline_mode = #tpu.pipeline_mode<synchronous>, transform_indices = @transform_12, window_bounds = array<i64: 4, 1>}, {transform_indices = @transform_13, window_bounds = array<i64: 1, 4, 256>}]} {
    %c0 = arith.constant 0 : index
    %c0_0 = arith.constant 0 : index
    %0 = vector.load %arg3[%c0, %c0_0] : memref<9x256xf32, #tpu.memory_space<vmem>>, vector<9x256xf32>
    %c0_1 = arith.constant 0 : index
    %c0_2 = arith.constant 0 : index
    %c0_3 = arith.constant 0 : index
    %1 = vector.load %arg1[%c0_1, %c0_2, %c0_3] : memref<1x4x256xf32, #tpu.memory_space<vmem>>, vector<1x4x256xf32>
    %2 = vector.shape_cast %1 : vector<1x4x256xf32> to vector<4x256xf32>
    %c0_4 = arith.constant 0 : index
    %c0_5 = arith.constant 0 : index
    %c0_6 = arith.constant 0 : index
    %3 = vector.load %arg2[%c0_4, %c0_5, %c0_6] : memref<1x4x256xf32, #tpu.memory_space<vmem>>, vector<1x4x256xf32>
    %4 = vector.shape_cast %3 : vector<1x4x256xf32> to vector<4x256xf32>
    %cst = arith.constant 0.000000e+00 : f32
    %5 = vector.broadcast %cst : f32 to vector<4x256xf32>
    %6 = arith.maximumf %4, %5 : vector<4x256xf32>
    %cst_7 = arith.constant 0.000000e+00 : f32
    %7 = vector.broadcast %cst_7 : f32 to vector<4x256xf32>
    %8 = vector.extract_strided_slice %6 {offsets = [0, 239], sizes = [4, 17], strides = [1, 1]} : vector<4x256xf32> to vector<4x17xf32>
    %9 = vector.extract_strided_slice %6 {offsets = [0, 0], sizes = [4, 239], strides = [1, 1]} : vector<4x256xf32> to vector<4x239xf32>
    %10 = tpu.concatenate %8, %9 in 1 : vector<4x17xf32>, vector<4x239xf32> -> vector<4x256xf32>
    %11 = vector.extract_strided_slice %0 {offsets = [0, 0], sizes = [1, 256], strides = [1, 1]} : vector<9x256xf32> to vector<1x256xf32>
    %12 = vector.broadcast %11 : vector<1x256xf32> to vector<4x256xf32>
    %13 = arith.mulf %10, %12 : vector<4x256xf32>
    %c0_8 = arith.constant 0 : index
    %c0_9 = arith.constant 0 : index
    %c0_10 = arith.constant 0 : index
    %14 = vector.load %arg4[%c0_8, %c0_9, %c0_10] : memref<9x4x4xbf16, #tpu.memory_space<vmem>>, vector<1x4x4xbf16>
    %15 = vector.shape_cast %14 : vector<1x4x4xbf16> to vector<4x4xbf16>
    %16 = arith.truncf %13 : vector<4x256xf32> to vector<4x256xbf16>
    %cst_11 = arith.constant dense<0.000000e+00> : vector<4x256xf32>
    %17 = tpu.matmul %15, %16, %cst_11 {dimension_numbers = #tpu.dot_dimension_numbers<[1], [0], [0], [1], [0, 0, 1, 1], [], []>} : vector<4x4xbf16>, vector<4x256xbf16>, vector<4x256xf32> -> vector<4x256xf32>
    %18 = arith.addf %7, %17 : vector<4x256xf32>
    %19 = vector.extract_strided_slice %6 {offsets = [0, 240], sizes = [4, 16], strides = [1, 1]} : vector<4x256xf32> to vector<4x16xf32>
    %20 = vector.extract_strided_slice %6 {offsets = [0, 0], sizes = [4, 240], strides = [1, 1]} : vector<4x256xf32> to vector<4x240xf32>
    %21 = tpu.concatenate %19, %20 in 1 : vector<4x16xf32>, vector<4x240xf32> -> vector<4x256xf32>
    %22 = vector.extract_strided_slice %0 {offsets = [1, 0], sizes = [1, 256], strides = [1, 1]} : vector<9x256xf32> to vector<1x256xf32>
    %23 = vector.broadcast %22 : vector<1x256xf32> to vector<4x256xf32>
    %24 = arith.mulf %21, %23 : vector<4x256xf32>
    %c1 = arith.constant 1 : index
    %c0_12 = arith.constant 0 : index
    %c0_13 = arith.constant 0 : index
    %25 = vector.load %arg4[%c1, %c0_12, %c0_13] : memref<9x4x4xbf16, #tpu.memory_space<vmem>>, vector<1x4x4xbf16>
    %26 = vector.shape_cast %25 : vector<1x4x4xbf16> to vector<4x4xbf16>
    %27 = arith.truncf %24 : vector<4x256xf32> to vector<4x256xbf16>
    %cst_14 = arith.constant dense<0.000000e+00> : vector<4x256xf32>
    %28 = tpu.matmul %26, %27, %cst_14 {dimension_numbers = #tpu.dot_dimension_numbers<[1], [0], [0], [1], [0, 0, 1, 1], [], []>} : vector<4x4xbf16>, vector<4x256xbf16>, vector<4x256xf32> -> vector<4x256xf32>
    %29 = arith.addf %18, %28 : vector<4x256xf32>
    %30 = vector.extract_strided_slice %6 {offsets = [0, 241], sizes = [4, 15], strides = [1, 1]} : vector<4x256xf32> to vector<4x15xf32>
    %31 = vector.extract_strided_slice %6 {offsets = [0, 0], sizes = [4, 241], strides = [1, 1]} : vector<4x256xf32> to vector<4x241xf32>
    %32 = tpu.concatenate %30, %31 in 1 : vector<4x15xf32>, vector<4x241xf32> -> vector<4x256xf32>
    %33 = vector.extract_strided_slice %0 {offsets = [2, 0], sizes = [1, 256], strides = [1, 1]} : vector<9x256xf32> to vector<1x256xf32>
    %34 = vector.broadcast %33 : vector<1x256xf32> to vector<4x256xf32>
    %35 = arith.mulf %32, %34 : vector<4x256xf32>
    %c2 = arith.constant 2 : index
    %c0_15 = arith.constant 0 : index
    %c0_16 = arith.constant 0 : index
    %36 = vector.load %arg4[%c2, %c0_15, %c0_16] : memref<9x4x4xbf16, #tpu.memory_space<vmem>>, vector<1x4x4xbf16>
    %37 = vector.shape_cast %36 : vector<1x4x4xbf16> to vector<4x4xbf16>
    %38 = arith.truncf %35 : vector<4x256xf32> to vector<4x256xbf16>
    %cst_17 = arith.constant dense<0.000000e+00> : vector<4x256xf32>
    %39 = tpu.matmul %37, %38, %cst_17 {dimension_numbers = #tpu.dot_dimension_numbers<[1], [0], [0], [1], [0, 0, 1, 1], [], []>} : vector<4x4xbf16>, vector<4x256xbf16>, vector<4x256xf32> -> vector<4x256xf32>
    %40 = arith.addf %29, %39 : vector<4x256xf32>
    %41 = vector.extract_strided_slice %6 {offsets = [0, 255], sizes = [4, 1], strides = [1, 1]} : vector<4x256xf32> to vector<4x1xf32>
    %42 = vector.extract_strided_slice %6 {offsets = [0, 0], sizes = [4, 255], strides = [1, 1]} : vector<4x256xf32> to vector<4x255xf32>
    %43 = tpu.concatenate %41, %42 in 1 : vector<4x1xf32>, vector<4x255xf32> -> vector<4x256xf32>
    %44 = vector.extract_strided_slice %0 {offsets = [3, 0], sizes = [1, 256], strides = [1, 1]} : vector<9x256xf32> to vector<1x256xf32>
    %45 = vector.broadcast %44 : vector<1x256xf32> to vector<4x256xf32>
    %46 = arith.mulf %43, %45 : vector<4x256xf32>
    %c3 = arith.constant 3 : index
    %c0_18 = arith.constant 0 : index
    %c0_19 = arith.constant 0 : index
    %47 = vector.load %arg4[%c3, %c0_18, %c0_19] : memref<9x4x4xbf16, #tpu.memory_space<vmem>>, vector<1x4x4xbf16>
    %48 = vector.shape_cast %47 : vector<1x4x4xbf16> to vector<4x4xbf16>
    %49 = arith.truncf %46 : vector<4x256xf32> to vector<4x256xbf16>
    %cst_20 = arith.constant dense<0.000000e+00> : vector<4x256xf32>
    %50 = tpu.matmul %48, %49, %cst_20 {dimension_numbers = #tpu.dot_dimension_numbers<[1], [0], [0], [1], [0, 0, 1, 1], [], []>} : vector<4x4xbf16>, vector<4x256xbf16>, vector<4x256xf32> -> vector<4x256xf32>
    %51 = arith.addf %40, %50 : vector<4x256xf32>
    %c4 = arith.constant 4 : index
    %c0_21 = arith.constant 0 : index
    %c0_22 = arith.constant 0 : index
    %52 = vector.load %arg4[%c4, %c0_21, %c0_22] : memref<9x4x4xbf16, #tpu.memory_space<vmem>>, vector<1x4x4xbf16>
    %53 = vector.shape_cast %52 : vector<1x4x4xbf16> to vector<4x4xbf16>
    %54 = arith.truncf %6 : vector<4x256xf32> to vector<4x256xbf16>
    %cst_23 = arith.constant dense<0.000000e+00> : vector<4x256xf32>
    %55 = tpu.matmul %53, %54, %cst_23 {dimension_numbers = #tpu.dot_dimension_numbers<[1], [0], [0], [1], [0, 0, 1, 1], [], []>} : vector<4x4xbf16>, vector<4x256xbf16>, vector<4x256xf32> -> vector<4x256xf32>
    %56 = arith.addf %51, %55 : vector<4x256xf32>
    %57 = vector.extract_strided_slice %6 {offsets = [0, 1], sizes = [4, 255], strides = [1, 1]} : vector<4x256xf32> to vector<4x255xf32>
    %58 = vector.extract_strided_slice %6 {offsets = [0, 0], sizes = [4, 1], strides = [1, 1]} : vector<4x256xf32> to vector<4x1xf32>
    %59 = tpu.concatenate %57, %58 in 1 : vector<4x255xf32>, vector<4x1xf32> -> vector<4x256xf32>
    %60 = vector.extract_strided_slice %0 {offsets = [5, 0], sizes = [1, 256], strides = [1, 1]} : vector<9x256xf32> to vector<1x256xf32>
    %61 = vector.broadcast %60 : vector<1x256xf32> to vector<4x256xf32>
    %62 = arith.mulf %59, %61 : vector<4x256xf32>
    %c5 = arith.constant 5 : index
    %c0_24 = arith.constant 0 : index
    %c0_25 = arith.constant 0 : index
    %63 = vector.load %arg4[%c5, %c0_24, %c0_25] : memref<9x4x4xbf16, #tpu.memory_space<vmem>>, vector<1x4x4xbf16>
    %64 = vector.shape_cast %63 : vector<1x4x4xbf16> to vector<4x4xbf16>
    %65 = arith.truncf %62 : vector<4x256xf32> to vector<4x256xbf16>
    %cst_26 = arith.constant dense<0.000000e+00> : vector<4x256xf32>
    %66 = tpu.matmul %64, %65, %cst_26 {dimension_numbers = #tpu.dot_dimension_numbers<[1], [0], [0], [1], [0, 0, 1, 1], [], []>} : vector<4x4xbf16>, vector<4x256xbf16>, vector<4x256xf32> -> vector<4x256xf32>
    %67 = arith.addf %56, %66 : vector<4x256xf32>
    %68 = vector.extract_strided_slice %6 {offsets = [0, 15], sizes = [4, 241], strides = [1, 1]} : vector<4x256xf32> to vector<4x241xf32>
    %69 = vector.extract_strided_slice %6 {offsets = [0, 0], sizes = [4, 15], strides = [1, 1]} : vector<4x256xf32> to vector<4x15xf32>
    %70 = tpu.concatenate %68, %69 in 1 : vector<4x241xf32>, vector<4x15xf32> -> vector<4x256xf32>
    %71 = vector.extract_strided_slice %0 {offsets = [6, 0], sizes = [1, 256], strides = [1, 1]} : vector<9x256xf32> to vector<1x256xf32>
    %72 = vector.broadcast %71 : vector<1x256xf32> to vector<4x256xf32>
    %73 = arith.mulf %70, %72 : vector<4x256xf32>
    %c6 = arith.constant 6 : index
    %c0_27 = arith.constant 0 : index
    %c0_28 = arith.constant 0 : index
    %74 = vector.load %arg4[%c6, %c0_27, %c0_28] : memref<9x4x4xbf16, #tpu.memory_space<vmem>>, vector<1x4x4xbf16>
    %75 = vector.shape_cast %74 : vector<1x4x4xbf16> to vector<4x4xbf16>
    %76 = arith.truncf %73 : vector<4x256xf32> to vector<4x256xbf16>
    %cst_29 = arith.constant dense<0.000000e+00> : vector<4x256xf32>
    %77 = tpu.matmul %75, %76, %cst_29 {dimension_numbers = #tpu.dot_dimension_numbers<[1], [0], [0], [1], [0, 0, 1, 1], [], []>} : vector<4x4xbf16>, vector<4x256xbf16>, vector<4x256xf32> -> vector<4x256xf32>
    %78 = arith.addf %67, %77 : vector<4x256xf32>
    %79 = vector.extract_strided_slice %6 {offsets = [0, 16], sizes = [4, 240], strides = [1, 1]} : vector<4x256xf32> to vector<4x240xf32>
    %80 = vector.extract_strided_slice %6 {offsets = [0, 0], sizes = [4, 16], strides = [1, 1]} : vector<4x256xf32> to vector<4x16xf32>
    %81 = tpu.concatenate %79, %80 in 1 : vector<4x240xf32>, vector<4x16xf32> -> vector<4x256xf32>
    %82 = vector.extract_strided_slice %0 {offsets = [7, 0], sizes = [1, 256], strides = [1, 1]} : vector<9x256xf32> to vector<1x256xf32>
    %83 = vector.broadcast %82 : vector<1x256xf32> to vector<4x256xf32>
    %84 = arith.mulf %81, %83 : vector<4x256xf32>
    %c7 = arith.constant 7 : index
    %c0_30 = arith.constant 0 : index
    %c0_31 = arith.constant 0 : index
    %85 = vector.load %arg4[%c7, %c0_30, %c0_31] : memref<9x4x4xbf16, #tpu.memory_space<vmem>>, vector<1x4x4xbf16>
    %86 = vector.shape_cast %85 : vector<1x4x4xbf16> to vector<4x4xbf16>
    %87 = arith.truncf %84 : vector<4x256xf32> to vector<4x256xbf16>
    %cst_32 = arith.constant dense<0.000000e+00> : vector<4x256xf32>
    %88 = tpu.matmul %86, %87, %cst_32 {dimension_numbers = #tpu.dot_dimension_numbers<[1], [0], [0], [1], [0, 0, 1, 1], [], []>} : vector<4x4xbf16>, vector<4x256xbf16>, vector<4x256xf32> -> vector<4x256xf32>
    %89 = arith.addf %78, %88 : vector<4x256xf32>
    %90 = vector.extract_strided_slice %6 {offsets = [0, 17], sizes = [4, 239], strides = [1, 1]} : vector<4x256xf32> to vector<4x239xf32>
    %91 = vector.extract_strided_slice %6 {offsets = [0, 0], sizes = [4, 17], strides = [1, 1]} : vector<4x256xf32> to vector<4x17xf32>
    %92 = tpu.concatenate %90, %91 in 1 : vector<4x239xf32>, vector<4x17xf32> -> vector<4x256xf32>
    %93 = vector.extract_strided_slice %0 {offsets = [8, 0], sizes = [1, 256], strides = [1, 1]} : vector<9x256xf32> to vector<1x256xf32>
    %94 = vector.broadcast %93 : vector<1x256xf32> to vector<4x256xf32>
    %95 = arith.mulf %92, %94 : vector<4x256xf32>
    %c8 = arith.constant 8 : index
    %c0_33 = arith.constant 0 : index
    %c0_34 = arith.constant 0 : index
    %96 = vector.load %arg4[%c8, %c0_33, %c0_34] : memref<9x4x4xbf16, #tpu.memory_space<vmem>>, vector<1x4x4xbf16>
    %97 = vector.shape_cast %96 : vector<1x4x4xbf16> to vector<4x4xbf16>
    %98 = arith.truncf %95 : vector<4x256xf32> to vector<4x256xbf16>
    %cst_35 = arith.constant dense<0.000000e+00> : vector<4x256xf32>
    %99 = tpu.matmul %97, %98, %cst_35 {dimension_numbers = #tpu.dot_dimension_numbers<[1], [0], [0], [1], [0, 0, 1, 1], [], []>} : vector<4x4xbf16>, vector<4x256xbf16>, vector<4x256xf32> -> vector<4x256xf32>
    %100 = arith.addf %89, %99 : vector<4x256xf32>
    %c0_36 = arith.constant 0 : index
    %c0_37 = arith.constant 0 : index
    %101 = vector.load %arg5[%c0_36, %c0_37] : memref<4x1xf32, #tpu.memory_space<vmem>>, vector<4x1xf32>
    %102 = vector.broadcast %101 : vector<4x1xf32> to vector<4x256xf32>
    %103 = arith.addf %100, %102 : vector<4x256xf32>
    %cst_38 = arith.constant 0.000000e+00 : f32
    %104 = vector.broadcast %cst_38 : f32 to vector<4x256xf32>
    %105 = arith.maximumf %103, %104 : vector<4x256xf32>
    %cst_39 = arith.constant 0.000000e+00 : f32
    %106 = vector.broadcast %cst_39 : f32 to vector<4x256xf32>
    %107 = vector.extract_strided_slice %105 {offsets = [0, 239], sizes = [4, 17], strides = [1, 1]} : vector<4x256xf32> to vector<4x17xf32>
    %108 = vector.extract_strided_slice %105 {offsets = [0, 0], sizes = [4, 239], strides = [1, 1]} : vector<4x256xf32> to vector<4x239xf32>
    %109 = tpu.concatenate %107, %108 in 1 : vector<4x17xf32>, vector<4x239xf32> -> vector<4x256xf32>
    %110 = vector.extract_strided_slice %0 {offsets = [0, 0], sizes = [1, 256], strides = [1, 1]} : vector<9x256xf32> to vector<1x256xf32>
    %111 = vector.broadcast %110 : vector<1x256xf32> to vector<4x256xf32>
    %112 = arith.mulf %109, %111 : vector<4x256xf32>
    %c0_40 = arith.constant 0 : index
    %c0_41 = arith.constant 0 : index
    %c0_42 = arith.constant 0 : index
    %113 = vector.load %arg6[%c0_40, %c0_41, %c0_42] : memref<9x4x4xbf16, #tpu.memory_space<vmem>>, vector<1x4x4xbf16>
    %114 = vector.shape_cast %113 : vector<1x4x4xbf16> to vector<4x4xbf16>
    %115 = arith.truncf %112 : vector<4x256xf32> to vector<4x256xbf16>
    %cst_43 = arith.constant dense<0.000000e+00> : vector<4x256xf32>
    %116 = tpu.matmul %114, %115, %cst_43 {dimension_numbers = #tpu.dot_dimension_numbers<[1], [0], [0], [1], [0, 0, 1, 1], [], []>} : vector<4x4xbf16>, vector<4x256xbf16>, vector<4x256xf32> -> vector<4x256xf32>
    %117 = arith.addf %106, %116 : vector<4x256xf32>
    %118 = vector.extract_strided_slice %105 {offsets = [0, 240], sizes = [4, 16], strides = [1, 1]} : vector<4x256xf32> to vector<4x16xf32>
    %119 = vector.extract_strided_slice %105 {offsets = [0, 0], sizes = [4, 240], strides = [1, 1]} : vector<4x256xf32> to vector<4x240xf32>
    %120 = tpu.concatenate %118, %119 in 1 : vector<4x16xf32>, vector<4x240xf32> -> vector<4x256xf32>
    %121 = vector.extract_strided_slice %0 {offsets = [1, 0], sizes = [1, 256], strides = [1, 1]} : vector<9x256xf32> to vector<1x256xf32>
    %122 = vector.broadcast %121 : vector<1x256xf32> to vector<4x256xf32>
    %123 = arith.mulf %120, %122 : vector<4x256xf32>
    %c1_44 = arith.constant 1 : index
    %c0_45 = arith.constant 0 : index
    %c0_46 = arith.constant 0 : index
    %124 = vector.load %arg6[%c1_44, %c0_45, %c0_46] : memref<9x4x4xbf16, #tpu.memory_space<vmem>>, vector<1x4x4xbf16>
    %125 = vector.shape_cast %124 : vector<1x4x4xbf16> to vector<4x4xbf16>
    %126 = arith.truncf %123 : vector<4x256xf32> to vector<4x256xbf16>
    %cst_47 = arith.constant dense<0.000000e+00> : vector<4x256xf32>
    %127 = tpu.matmul %125, %126, %cst_47 {dimension_numbers = #tpu.dot_dimension_numbers<[1], [0], [0], [1], [0, 0, 1, 1], [], []>} : vector<4x4xbf16>, vector<4x256xbf16>, vector<4x256xf32> -> vector<4x256xf32>
    %128 = arith.addf %117, %127 : vector<4x256xf32>
    %129 = vector.extract_strided_slice %105 {offsets = [0, 241], sizes = [4, 15], strides = [1, 1]} : vector<4x256xf32> to vector<4x15xf32>
    %130 = vector.extract_strided_slice %105 {offsets = [0, 0], sizes = [4, 241], strides = [1, 1]} : vector<4x256xf32> to vector<4x241xf32>
    %131 = tpu.concatenate %129, %130 in 1 : vector<4x15xf32>, vector<4x241xf32> -> vector<4x256xf32>
    %132 = vector.extract_strided_slice %0 {offsets = [2, 0], sizes = [1, 256], strides = [1, 1]} : vector<9x256xf32> to vector<1x256xf32>
    %133 = vector.broadcast %132 : vector<1x256xf32> to vector<4x256xf32>
    %134 = arith.mulf %131, %133 : vector<4x256xf32>
    %c2_48 = arith.constant 2 : index
    %c0_49 = arith.constant 0 : index
    %c0_50 = arith.constant 0 : index
    %135 = vector.load %arg6[%c2_48, %c0_49, %c0_50] : memref<9x4x4xbf16, #tpu.memory_space<vmem>>, vector<1x4x4xbf16>
    %136 = vector.shape_cast %135 : vector<1x4x4xbf16> to vector<4x4xbf16>
    %137 = arith.truncf %134 : vector<4x256xf32> to vector<4x256xbf16>
    %cst_51 = arith.constant dense<0.000000e+00> : vector<4x256xf32>
    %138 = tpu.matmul %136, %137, %cst_51 {dimension_numbers = #tpu.dot_dimension_numbers<[1], [0], [0], [1], [0, 0, 1, 1], [], []>} : vector<4x4xbf16>, vector<4x256xbf16>, vector<4x256xf32> -> vector<4x256xf32>
    %139 = arith.addf %128, %138 : vector<4x256xf32>
    %140 = vector.extract_strided_slice %105 {offsets = [0, 255], sizes = [4, 1], strides = [1, 1]} : vector<4x256xf32> to vector<4x1xf32>
    %141 = vector.extract_strided_slice %105 {offsets = [0, 0], sizes = [4, 255], strides = [1, 1]} : vector<4x256xf32> to vector<4x255xf32>
    %142 = tpu.concatenate %140, %141 in 1 : vector<4x1xf32>, vector<4x255xf32> -> vector<4x256xf32>
    %143 = vector.extract_strided_slice %0 {offsets = [3, 0], sizes = [1, 256], strides = [1, 1]} : vector<9x256xf32> to vector<1x256xf32>
    %144 = vector.broadcast %143 : vector<1x256xf32> to vector<4x256xf32>
    %145 = arith.mulf %142, %144 : vector<4x256xf32>
    %c3_52 = arith.constant 3 : index
    %c0_53 = arith.constant 0 : index
    %c0_54 = arith.constant 0 : index
    %146 = vector.load %arg6[%c3_52, %c0_53, %c0_54] : memref<9x4x4xbf16, #tpu.memory_space<vmem>>, vector<1x4x4xbf16>
    %147 = vector.shape_cast %146 : vector<1x4x4xbf16> to vector<4x4xbf16>
    %148 = arith.truncf %145 : vector<4x256xf32> to vector<4x256xbf16>
    %cst_55 = arith.constant dense<0.000000e+00> : vector<4x256xf32>
    %149 = tpu.matmul %147, %148, %cst_55 {dimension_numbers = #tpu.dot_dimension_numbers<[1], [0], [0], [1], [0, 0, 1, 1], [], []>} : vector<4x4xbf16>, vector<4x256xbf16>, vector<4x256xf32> -> vector<4x256xf32>
    %150 = arith.addf %139, %149 : vector<4x256xf32>
    %c4_56 = arith.constant 4 : index
    %c0_57 = arith.constant 0 : index
    %c0_58 = arith.constant 0 : index
    %151 = vector.load %arg6[%c4_56, %c0_57, %c0_58] : memref<9x4x4xbf16, #tpu.memory_space<vmem>>, vector<1x4x4xbf16>
    %152 = vector.shape_cast %151 : vector<1x4x4xbf16> to vector<4x4xbf16>
    %153 = arith.truncf %105 : vector<4x256xf32> to vector<4x256xbf16>
    %cst_59 = arith.constant dense<0.000000e+00> : vector<4x256xf32>
    %154 = tpu.matmul %152, %153, %cst_59 {dimension_numbers = #tpu.dot_dimension_numbers<[1], [0], [0], [1], [0, 0, 1, 1], [], []>} : vector<4x4xbf16>, vector<4x256xbf16>, vector<4x256xf32> -> vector<4x256xf32>
    %155 = arith.addf %150, %154 : vector<4x256xf32>
    %156 = vector.extract_strided_slice %105 {offsets = [0, 1], sizes = [4, 255], strides = [1, 1]} : vector<4x256xf32> to vector<4x255xf32>
    %157 = vector.extract_strided_slice %105 {offsets = [0, 0], sizes = [4, 1], strides = [1, 1]} : vector<4x256xf32> to vector<4x1xf32>
    %158 = tpu.concatenate %156, %157 in 1 : vector<4x255xf32>, vector<4x1xf32> -> vector<4x256xf32>
    %159 = vector.extract_strided_slice %0 {offsets = [5, 0], sizes = [1, 256], strides = [1, 1]} : vector<9x256xf32> to vector<1x256xf32>
    %160 = vector.broadcast %159 : vector<1x256xf32> to vector<4x256xf32>
    %161 = arith.mulf %158, %160 : vector<4x256xf32>
    %c5_60 = arith.constant 5 : index
    %c0_61 = arith.constant 0 : index
    %c0_62 = arith.constant 0 : index
    %162 = vector.load %arg6[%c5_60, %c0_61, %c0_62] : memref<9x4x4xbf16, #tpu.memory_space<vmem>>, vector<1x4x4xbf16>
    %163 = vector.shape_cast %162 : vector<1x4x4xbf16> to vector<4x4xbf16>
    %164 = arith.truncf %161 : vector<4x256xf32> to vector<4x256xbf16>
    %cst_63 = arith.constant dense<0.000000e+00> : vector<4x256xf32>
    %165 = tpu.matmul %163, %164, %cst_63 {dimension_numbers = #tpu.dot_dimension_numbers<[1], [0], [0], [1], [0, 0, 1, 1], [], []>} : vector<4x4xbf16>, vector<4x256xbf16>, vector<4x256xf32> -> vector<4x256xf32>
    %166 = arith.addf %155, %165 : vector<4x256xf32>
    %167 = vector.extract_strided_slice %105 {offsets = [0, 15], sizes = [4, 241], strides = [1, 1]} : vector<4x256xf32> to vector<4x241xf32>
    %168 = vector.extract_strided_slice %105 {offsets = [0, 0], sizes = [4, 15], strides = [1, 1]} : vector<4x256xf32> to vector<4x15xf32>
    %169 = tpu.concatenate %167, %168 in 1 : vector<4x241xf32>, vector<4x15xf32> -> vector<4x256xf32>
    %170 = vector.extract_strided_slice %0 {offsets = [6, 0], sizes = [1, 256], strides = [1, 1]} : vector<9x256xf32> to vector<1x256xf32>
    %171 = vector.broadcast %170 : vector<1x256xf32> to vector<4x256xf32>
    %172 = arith.mulf %169, %171 : vector<4x256xf32>
    %c6_64 = arith.constant 6 : index
    %c0_65 = arith.constant 0 : index
    %c0_66 = arith.constant 0 : index
    %173 = vector.load %arg6[%c6_64, %c0_65, %c0_66] : memref<9x4x4xbf16, #tpu.memory_space<vmem>>, vector<1x4x4xbf16>
    %174 = vector.shape_cast %173 : vector<1x4x4xbf16> to vector<4x4xbf16>
    %175 = arith.truncf %172 : vector<4x256xf32> to vector<4x256xbf16>
    %cst_67 = arith.constant dense<0.000000e+00> : vector<4x256xf32>
    %176 = tpu.matmul %174, %175, %cst_67 {dimension_numbers = #tpu.dot_dimension_numbers<[1], [0], [0], [1], [0, 0, 1, 1], [], []>} : vector<4x4xbf16>, vector<4x256xbf16>, vector<4x256xf32> -> vector<4x256xf32>
    %177 = arith.addf %166, %176 : vector<4x256xf32>
    %178 = vector.extract_strided_slice %105 {offsets = [0, 16], sizes = [4, 240], strides = [1, 1]} : vector<4x256xf32> to vector<4x240xf32>
    %179 = vector.extract_strided_slice %105 {offsets = [0, 0], sizes = [4, 16], strides = [1, 1]} : vector<4x256xf32> to vector<4x16xf32>
    %180 = tpu.concatenate %178, %179 in 1 : vector<4x240xf32>, vector<4x16xf32> -> vector<4x256xf32>
    %181 = vector.extract_strided_slice %0 {offsets = [7, 0], sizes = [1, 256], strides = [1, 1]} : vector<9x256xf32> to vector<1x256xf32>
    %182 = vector.broadcast %181 : vector<1x256xf32> to vector<4x256xf32>
    %183 = arith.mulf %180, %182 : vector<4x256xf32>
    %c7_68 = arith.constant 7 : index
    %c0_69 = arith.constant 0 : index
    %c0_70 = arith.constant 0 : index
    %184 = vector.load %arg6[%c7_68, %c0_69, %c0_70] : memref<9x4x4xbf16, #tpu.memory_space<vmem>>, vector<1x4x4xbf16>
    %185 = vector.shape_cast %184 : vector<1x4x4xbf16> to vector<4x4xbf16>
    %186 = arith.truncf %183 : vector<4x256xf32> to vector<4x256xbf16>
    %cst_71 = arith.constant dense<0.000000e+00> : vector<4x256xf32>
    %187 = tpu.matmul %185, %186, %cst_71 {dimension_numbers = #tpu.dot_dimension_numbers<[1], [0], [0], [1], [0, 0, 1, 1], [], []>} : vector<4x4xbf16>, vector<4x256xbf16>, vector<4x256xf32> -> vector<4x256xf32>
    %188 = arith.addf %177, %187 : vector<4x256xf32>
    %189 = vector.extract_strided_slice %105 {offsets = [0, 17], sizes = [4, 239], strides = [1, 1]} : vector<4x256xf32> to vector<4x239xf32>
    %190 = vector.extract_strided_slice %105 {offsets = [0, 0], sizes = [4, 17], strides = [1, 1]} : vector<4x256xf32> to vector<4x17xf32>
    %191 = tpu.concatenate %189, %190 in 1 : vector<4x239xf32>, vector<4x17xf32> -> vector<4x256xf32>
    %192 = vector.extract_strided_slice %0 {offsets = [8, 0], sizes = [1, 256], strides = [1, 1]} : vector<9x256xf32> to vector<1x256xf32>
    %193 = vector.broadcast %192 : vector<1x256xf32> to vector<4x256xf32>
    %194 = arith.mulf %191, %193 : vector<4x256xf32>
    %c8_72 = arith.constant 8 : index
    %c0_73 = arith.constant 0 : index
    %c0_74 = arith.constant 0 : index
    %195 = vector.load %arg6[%c8_72, %c0_73, %c0_74] : memref<9x4x4xbf16, #tpu.memory_space<vmem>>, vector<1x4x4xbf16>
    %196 = vector.shape_cast %195 : vector<1x4x4xbf16> to vector<4x4xbf16>
    %197 = arith.truncf %194 : vector<4x256xf32> to vector<4x256xbf16>
    %cst_75 = arith.constant dense<0.000000e+00> : vector<4x256xf32>
    %198 = tpu.matmul %196, %197, %cst_75 {dimension_numbers = #tpu.dot_dimension_numbers<[1], [0], [0], [1], [0, 0, 1, 1], [], []>} : vector<4x4xbf16>, vector<4x256xbf16>, vector<4x256xf32> -> vector<4x256xf32>
    %199 = arith.addf %188, %198 : vector<4x256xf32>
    %c0_76 = arith.constant 0 : index
    %c0_77 = arith.constant 0 : index
    %200 = vector.load %arg7[%c0_76, %c0_77] : memref<4x1xf32, #tpu.memory_space<vmem>>, vector<4x1xf32>
    %201 = vector.broadcast %200 : vector<4x1xf32> to vector<4x256xf32>
    %202 = arith.addf %199, %201 : vector<4x256xf32>
    %203 = arith.addf %202, %4 : vector<4x256xf32>
    %204 = arith.addf %2, %203 : vector<4x256xf32>
    %cst_78 = arith.constant 0.000000e+00 : f32
    %205 = vector.broadcast %cst_78 : f32 to vector<4x256xf32>
    %206 = arith.maximumf %204, %205 : vector<4x256xf32>
    %cst_79 = arith.constant 0.000000e+00 : f32
    %207 = vector.broadcast %cst_79 : f32 to vector<4x256xf32>
    %208 = vector.extract_strided_slice %206 {offsets = [0, 239], sizes = [4, 17], strides = [1, 1]} : vector<4x256xf32> to vector<4x17xf32>
    %209 = vector.extract_strided_slice %206 {offsets = [0, 0], sizes = [4, 239], strides = [1, 1]} : vector<4x256xf32> to vector<4x239xf32>
    %210 = tpu.concatenate %208, %209 in 1 : vector<4x17xf32>, vector<4x239xf32> -> vector<4x256xf32>
    %211 = vector.extract_strided_slice %0 {offsets = [0, 0], sizes = [1, 256], strides = [1, 1]} : vector<9x256xf32> to vector<1x256xf32>
    %212 = vector.broadcast %211 : vector<1x256xf32> to vector<4x256xf32>
    %213 = arith.mulf %210, %212 : vector<4x256xf32>
    %c0_80 = arith.constant 0 : index
    %c0_81 = arith.constant 0 : index
    %c0_82 = arith.constant 0 : index
    %214 = vector.load %arg8[%c0_80, %c0_81, %c0_82] : memref<9x4x4xbf16, #tpu.memory_space<vmem>>, vector<1x4x4xbf16>
    %215 = vector.shape_cast %214 : vector<1x4x4xbf16> to vector<4x4xbf16>
    %216 = arith.truncf %213 : vector<4x256xf32> to vector<4x256xbf16>
    %cst_83 = arith.constant dense<0.000000e+00> : vector<4x256xf32>
    %217 = tpu.matmul %215, %216, %cst_83 {dimension_numbers = #tpu.dot_dimension_numbers<[1], [0], [0], [1], [0, 0, 1, 1], [], []>} : vector<4x4xbf16>, vector<4x256xbf16>, vector<4x256xf32> -> vector<4x256xf32>
    %218 = arith.addf %207, %217 : vector<4x256xf32>
    %219 = vector.extract_strided_slice %206 {offsets = [0, 240], sizes = [4, 16], strides = [1, 1]} : vector<4x256xf32> to vector<4x16xf32>
    %220 = vector.extract_strided_slice %206 {offsets = [0, 0], sizes = [4, 240], strides = [1, 1]} : vector<4x256xf32> to vector<4x240xf32>
    %221 = tpu.concatenate %219, %220 in 1 : vector<4x16xf32>, vector<4x240xf32> -> vector<4x256xf32>
    %222 = vector.extract_strided_slice %0 {offsets = [1, 0], sizes = [1, 256], strides = [1, 1]} : vector<9x256xf32> to vector<1x256xf32>
    %223 = vector.broadcast %222 : vector<1x256xf32> to vector<4x256xf32>
    %224 = arith.mulf %221, %223 : vector<4x256xf32>
    %c1_84 = arith.constant 1 : index
    %c0_85 = arith.constant 0 : index
    %c0_86 = arith.constant 0 : index
    %225 = vector.load %arg8[%c1_84, %c0_85, %c0_86] : memref<9x4x4xbf16, #tpu.memory_space<vmem>>, vector<1x4x4xbf16>
    %226 = vector.shape_cast %225 : vector<1x4x4xbf16> to vector<4x4xbf16>
    %227 = arith.truncf %224 : vector<4x256xf32> to vector<4x256xbf16>
    %cst_87 = arith.constant dense<0.000000e+00> : vector<4x256xf32>
    %228 = tpu.matmul %226, %227, %cst_87 {dimension_numbers = #tpu.dot_dimension_numbers<[1], [0], [0], [1], [0, 0, 1, 1], [], []>} : vector<4x4xbf16>, vector<4x256xbf16>, vector<4x256xf32> -> vector<4x256xf32>
    %229 = arith.addf %218, %228 : vector<4x256xf32>
    %230 = vector.extract_strided_slice %206 {offsets = [0, 241], sizes = [4, 15], strides = [1, 1]} : vector<4x256xf32> to vector<4x15xf32>
    %231 = vector.extract_strided_slice %206 {offsets = [0, 0], sizes = [4, 241], strides = [1, 1]} : vector<4x256xf32> to vector<4x241xf32>
    %232 = tpu.concatenate %230, %231 in 1 : vector<4x15xf32>, vector<4x241xf32> -> vector<4x256xf32>
    %233 = vector.extract_strided_slice %0 {offsets = [2, 0], sizes = [1, 256], strides = [1, 1]} : vector<9x256xf32> to vector<1x256xf32>
    %234 = vector.broadcast %233 : vector<1x256xf32> to vector<4x256xf32>
    %235 = arith.mulf %232, %234 : vector<4x256xf32>
    %c2_88 = arith.constant 2 : index
    %c0_89 = arith.constant 0 : index
    %c0_90 = arith.constant 0 : index
    %236 = vector.load %arg8[%c2_88, %c0_89, %c0_90] : memref<9x4x4xbf16, #tpu.memory_space<vmem>>, vector<1x4x4xbf16>
    %237 = vector.shape_cast %236 : vector<1x4x4xbf16> to vector<4x4xbf16>
    %238 = arith.truncf %235 : vector<4x256xf32> to vector<4x256xbf16>
    %cst_91 = arith.constant dense<0.000000e+00> : vector<4x256xf32>
    %239 = tpu.matmul %237, %238, %cst_91 {dimension_numbers = #tpu.dot_dimension_numbers<[1], [0], [0], [1], [0, 0, 1, 1], [], []>} : vector<4x4xbf16>, vector<4x256xbf16>, vector<4x256xf32> -> vector<4x256xf32>
    %240 = arith.addf %229, %239 : vector<4x256xf32>
    %241 = vector.extract_strided_slice %206 {offsets = [0, 255], sizes = [4, 1], strides = [1, 1]} : vector<4x256xf32> to vector<4x1xf32>
    %242 = vector.extract_strided_slice %206 {offsets = [0, 0], sizes = [4, 255], strides = [1, 1]} : vector<4x256xf32> to vector<4x255xf32>
    %243 = tpu.concatenate %241, %242 in 1 : vector<4x1xf32>, vector<4x255xf32> -> vector<4x256xf32>
    %244 = vector.extract_strided_slice %0 {offsets = [3, 0], sizes = [1, 256], strides = [1, 1]} : vector<9x256xf32> to vector<1x256xf32>
    %245 = vector.broadcast %244 : vector<1x256xf32> to vector<4x256xf32>
    %246 = arith.mulf %243, %245 : vector<4x256xf32>
    %c3_92 = arith.constant 3 : index
    %c0_93 = arith.constant 0 : index
    %c0_94 = arith.constant 0 : index
    %247 = vector.load %arg8[%c3_92, %c0_93, %c0_94] : memref<9x4x4xbf16, #tpu.memory_space<vmem>>, vector<1x4x4xbf16>
    %248 = vector.shape_cast %247 : vector<1x4x4xbf16> to vector<4x4xbf16>
    %249 = arith.truncf %246 : vector<4x256xf32> to vector<4x256xbf16>
    %cst_95 = arith.constant dense<0.000000e+00> : vector<4x256xf32>
    %250 = tpu.matmul %248, %249, %cst_95 {dimension_numbers = #tpu.dot_dimension_numbers<[1], [0], [0], [1], [0, 0, 1, 1], [], []>} : vector<4x4xbf16>, vector<4x256xbf16>, vector<4x256xf32> -> vector<4x256xf32>
    %251 = arith.addf %240, %250 : vector<4x256xf32>
    %c4_96 = arith.constant 4 : index
    %c0_97 = arith.constant 0 : index
    %c0_98 = arith.constant 0 : index
    %252 = vector.load %arg8[%c4_96, %c0_97, %c0_98] : memref<9x4x4xbf16, #tpu.memory_space<vmem>>, vector<1x4x4xbf16>
    %253 = vector.shape_cast %252 : vector<1x4x4xbf16> to vector<4x4xbf16>
    %254 = arith.truncf %206 : vector<4x256xf32> to vector<4x256xbf16>
    %cst_99 = arith.constant dense<0.000000e+00> : vector<4x256xf32>
    %255 = tpu.matmul %253, %254, %cst_99 {dimension_numbers = #tpu.dot_dimension_numbers<[1], [0], [0], [1], [0, 0, 1, 1], [], []>} : vector<4x4xbf16>, vector<4x256xbf16>, vector<4x256xf32> -> vector<4x256xf32>
    %256 = arith.addf %251, %255 : vector<4x256xf32>
    %257 = vector.extract_strided_slice %206 {offsets = [0, 1], sizes = [4, 255], strides = [1, 1]} : vector<4x256xf32> to vector<4x255xf32>
    %258 = vector.extract_strided_slice %206 {offsets = [0, 0], sizes = [4, 1], strides = [1, 1]} : vector<4x256xf32> to vector<4x1xf32>
    %259 = tpu.concatenate %257, %258 in 1 : vector<4x255xf32>, vector<4x1xf32> -> vector<4x256xf32>
    %260 = vector.extract_strided_slice %0 {offsets = [5, 0], sizes = [1, 256], strides = [1, 1]} : vector<9x256xf32> to vector<1x256xf32>
    %261 = vector.broadcast %260 : vector<1x256xf32> to vector<4x256xf32>
    %262 = arith.mulf %259, %261 : vector<4x256xf32>
    %c5_100 = arith.constant 5 : index
    %c0_101 = arith.constant 0 : index
    %c0_102 = arith.constant 0 : index
    %263 = vector.load %arg8[%c5_100, %c0_101, %c0_102] : memref<9x4x4xbf16, #tpu.memory_space<vmem>>, vector<1x4x4xbf16>
    %264 = vector.shape_cast %263 : vector<1x4x4xbf16> to vector<4x4xbf16>
    %265 = arith.truncf %262 : vector<4x256xf32> to vector<4x256xbf16>
    %cst_103 = arith.constant dense<0.000000e+00> : vector<4x256xf32>
    %266 = tpu.matmul %264, %265, %cst_103 {dimension_numbers = #tpu.dot_dimension_numbers<[1], [0], [0], [1], [0, 0, 1, 1], [], []>} : vector<4x4xbf16>, vector<4x256xbf16>, vector<4x256xf32> -> vector<4x256xf32>
    %267 = arith.addf %256, %266 : vector<4x256xf32>
    %268 = vector.extract_strided_slice %206 {offsets = [0, 15], sizes = [4, 241], strides = [1, 1]} : vector<4x256xf32> to vector<4x241xf32>
    %269 = vector.extract_strided_slice %206 {offsets = [0, 0], sizes = [4, 15], strides = [1, 1]} : vector<4x256xf32> to vector<4x15xf32>
    %270 = tpu.concatenate %268, %269 in 1 : vector<4x241xf32>, vector<4x15xf32> -> vector<4x256xf32>
    %271 = vector.extract_strided_slice %0 {offsets = [6, 0], sizes = [1, 256], strides = [1, 1]} : vector<9x256xf32> to vector<1x256xf32>
    %272 = vector.broadcast %271 : vector<1x256xf32> to vector<4x256xf32>
    %273 = arith.mulf %270, %272 : vector<4x256xf32>
    %c6_104 = arith.constant 6 : index
    %c0_105 = arith.constant 0 : index
    %c0_106 = arith.constant 0 : index
    %274 = vector.load %arg8[%c6_104, %c0_105, %c0_106] : memref<9x4x4xbf16, #tpu.memory_space<vmem>>, vector<1x4x4xbf16>
    %275 = vector.shape_cast %274 : vector<1x4x4xbf16> to vector<4x4xbf16>
    %276 = arith.truncf %273 : vector<4x256xf32> to vector<4x256xbf16>
    %cst_107 = arith.constant dense<0.000000e+00> : vector<4x256xf32>
    %277 = tpu.matmul %275, %276, %cst_107 {dimension_numbers = #tpu.dot_dimension_numbers<[1], [0], [0], [1], [0, 0, 1, 1], [], []>} : vector<4x4xbf16>, vector<4x256xbf16>, vector<4x256xf32> -> vector<4x256xf32>
    %278 = arith.addf %267, %277 : vector<4x256xf32>
    %279 = vector.extract_strided_slice %206 {offsets = [0, 16], sizes = [4, 240], strides = [1, 1]} : vector<4x256xf32> to vector<4x240xf32>
    %280 = vector.extract_strided_slice %206 {offsets = [0, 0], sizes = [4, 16], strides = [1, 1]} : vector<4x256xf32> to vector<4x16xf32>
    %281 = tpu.concatenate %279, %280 in 1 : vector<4x240xf32>, vector<4x16xf32> -> vector<4x256xf32>
    %282 = vector.extract_strided_slice %0 {offsets = [7, 0], sizes = [1, 256], strides = [1, 1]} : vector<9x256xf32> to vector<1x256xf32>
    %283 = vector.broadcast %282 : vector<1x256xf32> to vector<4x256xf32>
    %284 = arith.mulf %281, %283 : vector<4x256xf32>
    %c7_108 = arith.constant 7 : index
    %c0_109 = arith.constant 0 : index
    %c0_110 = arith.constant 0 : index
    %285 = vector.load %arg8[%c7_108, %c0_109, %c0_110] : memref<9x4x4xbf16, #tpu.memory_space<vmem>>, vector<1x4x4xbf16>
    %286 = vector.shape_cast %285 : vector<1x4x4xbf16> to vector<4x4xbf16>
    %287 = arith.truncf %284 : vector<4x256xf32> to vector<4x256xbf16>
    %cst_111 = arith.constant dense<0.000000e+00> : vector<4x256xf32>
    %288 = tpu.matmul %286, %287, %cst_111 {dimension_numbers = #tpu.dot_dimension_numbers<[1], [0], [0], [1], [0, 0, 1, 1], [], []>} : vector<4x4xbf16>, vector<4x256xbf16>, vector<4x256xf32> -> vector<4x256xf32>
    %289 = arith.addf %278, %288 : vector<4x256xf32>
    %290 = vector.extract_strided_slice %206 {offsets = [0, 17], sizes = [4, 239], strides = [1, 1]} : vector<4x256xf32> to vector<4x239xf32>
    %291 = vector.extract_strided_slice %206 {offsets = [0, 0], sizes = [4, 17], strides = [1, 1]} : vector<4x256xf32> to vector<4x17xf32>
    %292 = tpu.concatenate %290, %291 in 1 : vector<4x239xf32>, vector<4x17xf32> -> vector<4x256xf32>
    %293 = vector.extract_strided_slice %0 {offsets = [8, 0], sizes = [1, 256], strides = [1, 1]} : vector<9x256xf32> to vector<1x256xf32>
    %294 = vector.broadcast %293 : vector<1x256xf32> to vector<4x256xf32>
    %295 = arith.mulf %292, %294 : vector<4x256xf32>
    %c8_112 = arith.constant 8 : index
    %c0_113 = arith.constant 0 : index
    %c0_114 = arith.constant 0 : index
    %296 = vector.load %arg8[%c8_112, %c0_113, %c0_114] : memref<9x4x4xbf16, #tpu.memory_space<vmem>>, vector<1x4x4xbf16>
    %297 = vector.shape_cast %296 : vector<1x4x4xbf16> to vector<4x4xbf16>
    %298 = arith.truncf %295 : vector<4x256xf32> to vector<4x256xbf16>
    %cst_115 = arith.constant dense<0.000000e+00> : vector<4x256xf32>
    %299 = tpu.matmul %297, %298, %cst_115 {dimension_numbers = #tpu.dot_dimension_numbers<[1], [0], [0], [1], [0, 0, 1, 1], [], []>} : vector<4x4xbf16>, vector<4x256xbf16>, vector<4x256xf32> -> vector<4x256xf32>
    %300 = arith.addf %289, %299 : vector<4x256xf32>
    %c0_116 = arith.constant 0 : index
    %c0_117 = arith.constant 0 : index
    %301 = vector.load %arg9[%c0_116, %c0_117] : memref<4x1xf32, #tpu.memory_space<vmem>>, vector<4x1xf32>
    %302 = vector.broadcast %301 : vector<4x1xf32> to vector<4x256xf32>
    %303 = arith.addf %300, %302 : vector<4x256xf32>
    %cst_118 = arith.constant 0.000000e+00 : f32
    %304 = vector.broadcast %cst_118 : f32 to vector<4x256xf32>
    %305 = arith.maximumf %303, %304 : vector<4x256xf32>
    %cst_119 = arith.constant 0.000000e+00 : f32
    %306 = vector.broadcast %cst_119 : f32 to vector<4x256xf32>
    %307 = vector.extract_strided_slice %305 {offsets = [0, 239], sizes = [4, 17], strides = [1, 1]} : vector<4x256xf32> to vector<4x17xf32>
    %308 = vector.extract_strided_slice %305 {offsets = [0, 0], sizes = [4, 239], strides = [1, 1]} : vector<4x256xf32> to vector<4x239xf32>
    %309 = tpu.concatenate %307, %308 in 1 : vector<4x17xf32>, vector<4x239xf32> -> vector<4x256xf32>
    %310 = vector.extract_strided_slice %0 {offsets = [0, 0], sizes = [1, 256], strides = [1, 1]} : vector<9x256xf32> to vector<1x256xf32>
    %311 = vector.broadcast %310 : vector<1x256xf32> to vector<4x256xf32>
    %312 = arith.mulf %309, %311 : vector<4x256xf32>
    %c0_120 = arith.constant 0 : index
    %c0_121 = arith.constant 0 : index
    %c0_122 = arith.constant 0 : index
    %313 = vector.load %arg10[%c0_120, %c0_121, %c0_122] : memref<9x4x4xbf16, #tpu.memory_space<vmem>>, vector<1x4x4xbf16>
    %314 = vector.shape_cast %313 : vector<1x4x4xbf16> to vector<4x4xbf16>
    %315 = arith.truncf %312 : vector<4x256xf32> to vector<4x256xbf16>
    %cst_123 = arith.constant dense<0.000000e+00> : vector<4x256xf32>
    %316 = tpu.matmul %314, %315, %cst_123 {dimension_numbers = #tpu.dot_dimension_numbers<[1], [0], [0], [1], [0, 0, 1, 1], [], []>} : vector<4x4xbf16>, vector<4x256xbf16>, vector<4x256xf32> -> vector<4x256xf32>
    %317 = arith.addf %306, %316 : vector<4x256xf32>
    %318 = vector.extract_strided_slice %305 {offsets = [0, 240], sizes = [4, 16], strides = [1, 1]} : vector<4x256xf32> to vector<4x16xf32>
    %319 = vector.extract_strided_slice %305 {offsets = [0, 0], sizes = [4, 240], strides = [1, 1]} : vector<4x256xf32> to vector<4x240xf32>
    %320 = tpu.concatenate %318, %319 in 1 : vector<4x16xf32>, vector<4x240xf32> -> vector<4x256xf32>
    %321 = vector.extract_strided_slice %0 {offsets = [1, 0], sizes = [1, 256], strides = [1, 1]} : vector<9x256xf32> to vector<1x256xf32>
    %322 = vector.broadcast %321 : vector<1x256xf32> to vector<4x256xf32>
    %323 = arith.mulf %320, %322 : vector<4x256xf32>
    %c1_124 = arith.constant 1 : index
    %c0_125 = arith.constant 0 : index
    %c0_126 = arith.constant 0 : index
    %324 = vector.load %arg10[%c1_124, %c0_125, %c0_126] : memref<9x4x4xbf16, #tpu.memory_space<vmem>>, vector<1x4x4xbf16>
    %325 = vector.shape_cast %324 : vector<1x4x4xbf16> to vector<4x4xbf16>
    %326 = arith.truncf %323 : vector<4x256xf32> to vector<4x256xbf16>
    %cst_127 = arith.constant dense<0.000000e+00> : vector<4x256xf32>
    %327 = tpu.matmul %325, %326, %cst_127 {dimension_numbers = #tpu.dot_dimension_numbers<[1], [0], [0], [1], [0, 0, 1, 1], [], []>} : vector<4x4xbf16>, vector<4x256xbf16>, vector<4x256xf32> -> vector<4x256xf32>
    %328 = arith.addf %317, %327 : vector<4x256xf32>
    %329 = vector.extract_strided_slice %305 {offsets = [0, 241], sizes = [4, 15], strides = [1, 1]} : vector<4x256xf32> to vector<4x15xf32>
    %330 = vector.extract_strided_slice %305 {offsets = [0, 0], sizes = [4, 241], strides = [1, 1]} : vector<4x256xf32> to vector<4x241xf32>
    %331 = tpu.concatenate %329, %330 in 1 : vector<4x15xf32>, vector<4x241xf32> -> vector<4x256xf32>
    %332 = vector.extract_strided_slice %0 {offsets = [2, 0], sizes = [1, 256], strides = [1, 1]} : vector<9x256xf32> to vector<1x256xf32>
    %333 = vector.broadcast %332 : vector<1x256xf32> to vector<4x256xf32>
    %334 = arith.mulf %331, %333 : vector<4x256xf32>
    %c2_128 = arith.constant 2 : index
    %c0_129 = arith.constant 0 : index
    %c0_130 = arith.constant 0 : index
    %335 = vector.load %arg10[%c2_128, %c0_129, %c0_130] : memref<9x4x4xbf16, #tpu.memory_space<vmem>>, vector<1x4x4xbf16>
    %336 = vector.shape_cast %335 : vector<1x4x4xbf16> to vector<4x4xbf16>
    %337 = arith.truncf %334 : vector<4x256xf32> to vector<4x256xbf16>
    %cst_131 = arith.constant dense<0.000000e+00> : vector<4x256xf32>
    %338 = tpu.matmul %336, %337, %cst_131 {dimension_numbers = #tpu.dot_dimension_numbers<[1], [0], [0], [1], [0, 0, 1, 1], [], []>} : vector<4x4xbf16>, vector<4x256xbf16>, vector<4x256xf32> -> vector<4x256xf32>
    %339 = arith.addf %328, %338 : vector<4x256xf32>
    %340 = vector.extract_strided_slice %305 {offsets = [0, 255], sizes = [4, 1], strides = [1, 1]} : vector<4x256xf32> to vector<4x1xf32>
    %341 = vector.extract_strided_slice %305 {offsets = [0, 0], sizes = [4, 255], strides = [1, 1]} : vector<4x256xf32> to vector<4x255xf32>
    %342 = tpu.concatenate %340, %341 in 1 : vector<4x1xf32>, vector<4x255xf32> -> vector<4x256xf32>
    %343 = vector.extract_strided_slice %0 {offsets = [3, 0], sizes = [1, 256], strides = [1, 1]} : vector<9x256xf32> to vector<1x256xf32>
    %344 = vector.broadcast %343 : vector<1x256xf32> to vector<4x256xf32>
    %345 = arith.mulf %342, %344 : vector<4x256xf32>
    %c3_132 = arith.constant 3 : index
    %c0_133 = arith.constant 0 : index
    %c0_134 = arith.constant 0 : index
    %346 = vector.load %arg10[%c3_132, %c0_133, %c0_134] : memref<9x4x4xbf16, #tpu.memory_space<vmem>>, vector<1x4x4xbf16>
    %347 = vector.shape_cast %346 : vector<1x4x4xbf16> to vector<4x4xbf16>
    %348 = arith.truncf %345 : vector<4x256xf32> to vector<4x256xbf16>
    %cst_135 = arith.constant dense<0.000000e+00> : vector<4x256xf32>
    %349 = tpu.matmul %347, %348, %cst_135 {dimension_numbers = #tpu.dot_dimension_numbers<[1], [0], [0], [1], [0, 0, 1, 1], [], []>} : vector<4x4xbf16>, vector<4x256xbf16>, vector<4x256xf32> -> vector<4x256xf32>
    %350 = arith.addf %339, %349 : vector<4x256xf32>
    %c4_136 = arith.constant 4 : index
    %c0_137 = arith.constant 0 : index
    %c0_138 = arith.constant 0 : index
    %351 = vector.load %arg10[%c4_136, %c0_137, %c0_138] : memref<9x4x4xbf16, #tpu.memory_space<vmem>>, vector<1x4x4xbf16>
    %352 = vector.shape_cast %351 : vector<1x4x4xbf16> to vector<4x4xbf16>
    %353 = arith.truncf %305 : vector<4x256xf32> to vector<4x256xbf16>
    %cst_139 = arith.constant dense<0.000000e+00> : vector<4x256xf32>
    %354 = tpu.matmul %352, %353, %cst_139 {dimension_numbers = #tpu.dot_dimension_numbers<[1], [0], [0], [1], [0, 0, 1, 1], [], []>} : vector<4x4xbf16>, vector<4x256xbf16>, vector<4x256xf32> -> vector<4x256xf32>
    %355 = arith.addf %350, %354 : vector<4x256xf32>
    %356 = vector.extract_strided_slice %305 {offsets = [0, 1], sizes = [4, 255], strides = [1, 1]} : vector<4x256xf32> to vector<4x255xf32>
    %357 = vector.extract_strided_slice %305 {offsets = [0, 0], sizes = [4, 1], strides = [1, 1]} : vector<4x256xf32> to vector<4x1xf32>
    %358 = tpu.concatenate %356, %357 in 1 : vector<4x255xf32>, vector<4x1xf32> -> vector<4x256xf32>
    %359 = vector.extract_strided_slice %0 {offsets = [5, 0], sizes = [1, 256], strides = [1, 1]} : vector<9x256xf32> to vector<1x256xf32>
    %360 = vector.broadcast %359 : vector<1x256xf32> to vector<4x256xf32>
    %361 = arith.mulf %358, %360 : vector<4x256xf32>
    %c5_140 = arith.constant 5 : index
    %c0_141 = arith.constant 0 : index
    %c0_142 = arith.constant 0 : index
    %362 = vector.load %arg10[%c5_140, %c0_141, %c0_142] : memref<9x4x4xbf16, #tpu.memory_space<vmem>>, vector<1x4x4xbf16>
    %363 = vector.shape_cast %362 : vector<1x4x4xbf16> to vector<4x4xbf16>
    %364 = arith.truncf %361 : vector<4x256xf32> to vector<4x256xbf16>
    %cst_143 = arith.constant dense<0.000000e+00> : vector<4x256xf32>
    %365 = tpu.matmul %363, %364, %cst_143 {dimension_numbers = #tpu.dot_dimension_numbers<[1], [0], [0], [1], [0, 0, 1, 1], [], []>} : vector<4x4xbf16>, vector<4x256xbf16>, vector<4x256xf32> -> vector<4x256xf32>
    %366 = arith.addf %355, %365 : vector<4x256xf32>
    %367 = vector.extract_strided_slice %305 {offsets = [0, 15], sizes = [4, 241], strides = [1, 1]} : vector<4x256xf32> to vector<4x241xf32>
    %368 = vector.extract_strided_slice %305 {offsets = [0, 0], sizes = [4, 15], strides = [1, 1]} : vector<4x256xf32> to vector<4x15xf32>
    %369 = tpu.concatenate %367, %368 in 1 : vector<4x241xf32>, vector<4x15xf32> -> vector<4x256xf32>
    %370 = vector.extract_strided_slice %0 {offsets = [6, 0], sizes = [1, 256], strides = [1, 1]} : vector<9x256xf32> to vector<1x256xf32>
    %371 = vector.broadcast %370 : vector<1x256xf32> to vector<4x256xf32>
    %372 = arith.mulf %369, %371 : vector<4x256xf32>
    %c6_144 = arith.constant 6 : index
    %c0_145 = arith.constant 0 : index
    %c0_146 = arith.constant 0 : index
    %373 = vector.load %arg10[%c6_144, %c0_145, %c0_146] : memref<9x4x4xbf16, #tpu.memory_space<vmem>>, vector<1x4x4xbf16>
    %374 = vector.shape_cast %373 : vector<1x4x4xbf16> to vector<4x4xbf16>
    %375 = arith.truncf %372 : vector<4x256xf32> to vector<4x256xbf16>
    %cst_147 = arith.constant dense<0.000000e+00> : vector<4x256xf32>
    %376 = tpu.matmul %374, %375, %cst_147 {dimension_numbers = #tpu.dot_dimension_numbers<[1], [0], [0], [1], [0, 0, 1, 1], [], []>} : vector<4x4xbf16>, vector<4x256xbf16>, vector<4x256xf32> -> vector<4x256xf32>
    %377 = arith.addf %366, %376 : vector<4x256xf32>
    %378 = vector.extract_strided_slice %305 {offsets = [0, 16], sizes = [4, 240], strides = [1, 1]} : vector<4x256xf32> to vector<4x240xf32>
    %379 = vector.extract_strided_slice %305 {offsets = [0, 0], sizes = [4, 16], strides = [1, 1]} : vector<4x256xf32> to vector<4x16xf32>
    %380 = tpu.concatenate %378, %379 in 1 : vector<4x240xf32>, vector<4x16xf32> -> vector<4x256xf32>
    %381 = vector.extract_strided_slice %0 {offsets = [7, 0], sizes = [1, 256], strides = [1, 1]} : vector<9x256xf32> to vector<1x256xf32>
    %382 = vector.broadcast %381 : vector<1x256xf32> to vector<4x256xf32>
    %383 = arith.mulf %380, %382 : vector<4x256xf32>
    %c7_148 = arith.constant 7 : index
    %c0_149 = arith.constant 0 : index
    %c0_150 = arith.constant 0 : index
    %384 = vector.load %arg10[%c7_148, %c0_149, %c0_150] : memref<9x4x4xbf16, #tpu.memory_space<vmem>>, vector<1x4x4xbf16>
    %385 = vector.shape_cast %384 : vector<1x4x4xbf16> to vector<4x4xbf16>
    %386 = arith.truncf %383 : vector<4x256xf32> to vector<4x256xbf16>
    %cst_151 = arith.constant dense<0.000000e+00> : vector<4x256xf32>
    %387 = tpu.matmul %385, %386, %cst_151 {dimension_numbers = #tpu.dot_dimension_numbers<[1], [0], [0], [1], [0, 0, 1, 1], [], []>} : vector<4x4xbf16>, vector<4x256xbf16>, vector<4x256xf32> -> vector<4x256xf32>
    %388 = arith.addf %377, %387 : vector<4x256xf32>
    %389 = vector.extract_strided_slice %305 {offsets = [0, 17], sizes = [4, 239], strides = [1, 1]} : vector<4x256xf32> to vector<4x239xf32>
    %390 = vector.extract_strided_slice %305 {offsets = [0, 0], sizes = [4, 17], strides = [1, 1]} : vector<4x256xf32> to vector<4x17xf32>
    %391 = tpu.concatenate %389, %390 in 1 : vector<4x239xf32>, vector<4x17xf32> -> vector<4x256xf32>
    %392 = vector.extract_strided_slice %0 {offsets = [8, 0], sizes = [1, 256], strides = [1, 1]} : vector<9x256xf32> to vector<1x256xf32>
    %393 = vector.broadcast %392 : vector<1x256xf32> to vector<4x256xf32>
    %394 = arith.mulf %391, %393 : vector<4x256xf32>
    %c8_152 = arith.constant 8 : index
    %c0_153 = arith.constant 0 : index
    %c0_154 = arith.constant 0 : index
    %395 = vector.load %arg10[%c8_152, %c0_153, %c0_154] : memref<9x4x4xbf16, #tpu.memory_space<vmem>>, vector<1x4x4xbf16>
    %396 = vector.shape_cast %395 : vector<1x4x4xbf16> to vector<4x4xbf16>
    %397 = arith.truncf %394 : vector<4x256xf32> to vector<4x256xbf16>
    %cst_155 = arith.constant dense<0.000000e+00> : vector<4x256xf32>
    %398 = tpu.matmul %396, %397, %cst_155 {dimension_numbers = #tpu.dot_dimension_numbers<[1], [0], [0], [1], [0, 0, 1, 1], [], []>} : vector<4x4xbf16>, vector<4x256xbf16>, vector<4x256xf32> -> vector<4x256xf32>
    %399 = arith.addf %388, %398 : vector<4x256xf32>
    %c0_156 = arith.constant 0 : index
    %c0_157 = arith.constant 0 : index
    %400 = vector.load %arg11[%c0_156, %c0_157] : memref<4x1xf32, #tpu.memory_space<vmem>>, vector<4x1xf32>
    %401 = vector.broadcast %400 : vector<4x1xf32> to vector<4x256xf32>
    %402 = arith.addf %399, %401 : vector<4x256xf32>
    %403 = arith.addf %402, %204 : vector<4x256xf32>
    %c0_158 = arith.constant 0 : index
    %c0_159 = arith.constant 0 : index
    %404 = vector.load %arg12[%c0_158, %c0_159] : memref<4x4xbf16, #tpu.memory_space<vmem>>, vector<4x4xbf16>
    %405 = arith.truncf %403 : vector<4x256xf32> to vector<4x256xbf16>
    %cst_160 = arith.constant dense<0.000000e+00> : vector<4x256xf32>
    %406 = tpu.matmul %404, %405, %cst_160 {dimension_numbers = #tpu.dot_dimension_numbers<[1], [0], [0], [1], [0, 0, 1, 1], [], []>} : vector<4x4xbf16>, vector<4x256xbf16>, vector<4x256xf32> -> vector<4x256xf32>
    %c0_161 = arith.constant 0 : index
    %c0_162 = arith.constant 0 : index
    %407 = vector.load %arg13[%c0_161, %c0_162] : memref<4x1xf32, #tpu.memory_space<vmem>>, vector<4x1xf32>
    %408 = vector.broadcast %407 : vector<4x1xf32> to vector<4x256xf32>
    %409 = arith.addf %406, %408 : vector<4x256xf32>
    %c0_163 = arith.constant 0 : index
    %c0_164 = arith.constant 0 : index
    %c0_165 = arith.constant 0 : index
    %410 = vector.load %arg14[%c0_163, %c0_164, %c0_165] : memref<1x4x256xf32, #tpu.memory_space<vmem>>, vector<1x4x256xf32>
    %411 = vector.shape_cast %410 : vector<1x4x256xf32> to vector<4x256xf32>
    %412 = vector.shape_cast %409 : vector<4x256xf32> to vector<1x4x256xf32>
    tpu.vector_store %arg14[%c0_163, %c0_164, %c0_165], %412 {strides = array<i32>} : memref<1x4x256xf32, #tpu.memory_space<vmem>>, vector<1x4x256xf32>,
    return
  }
  func.func @transform_0(%arg0: i32) -> (i32, i32, i32) {
    %c0_i32 = arith.constant 0 : i32
    %c0_i32_0 = arith.constant 0 : i32
    %c0_i32_1 = arith.constant 0 : i32
    return %arg0, %c0_i32, %c0_i32_0 : i32, i32, i32
  }
  func.func @transform_1(%arg0: i32) -> (i32, i32, i32) {
    %c0_i32 = arith.constant 0 : i32
    %c0_i32_0 = arith.constant 0 : i32
    %c0_i32_1 = arith.constant 0 : i32
    return %arg0, %c0_i32, %c0_i32_0 : i32, i32, i32
  }
  func.func @transform_2(%arg0: i32) -> (i32, i32) {
    %c0_i32 = arith.constant 0 : i32
    %c0_i32_0 = arith.constant 0 : i32
    %c0_i32_1 = arith.constant 0 : i32
    return %c0_i32, %c0_i32_0 : i32, i32
  }
  func.func @transform_3(%arg0: i32) -> (i32, i32, i32) {
    %c0_i32 = arith.constant 0 : i32
    %c0_i32_0 = arith.constant 0 : i32
    %c0_i32_1 = arith.constant 0 : i32
    %c0_i32_2 = arith.constant 0 : i32
    return %c0_i32, %c0_i32_0, %c0_i32_1 : i32, i32, i32
  }
  func.func @transform_4(%arg0: i32) -> (i32, i32) {
    %c0_i32 = arith.constant 0 : i32
    %c0_i32_0 = arith.constant 0 : i32
    %c0_i32_1 = arith.constant 0 : i32
    return %c0_i32, %c0_i32_0 : i32, i32
  }
  func.func @transform_5(%arg0: i32) -> (i32, i32, i32) {
    %c0_i32 = arith.constant 0 : i32
    %c0_i32_0 = arith.constant 0 : i32
    %c0_i32_1 = arith.constant 0 : i32
    %c0_i32_2 = arith.constant 0 : i32
    return %c0_i32, %c0_i32_0, %c0_i32_1 : i32, i32, i32
  }
  func.func @transform_6(%arg0: i32) -> (i32, i32) {
    %c0_i32 = arith.constant 0 : i32
    %c0_i32_0 = arith.constant 0 : i32
    %c0_i32_1 = arith.constant 0 : i32
    return %c0_i32, %c0_i32_0 : i32, i32
  }
  func.func @transform_7(%arg0: i32) -> (i32, i32, i32) {
    %c0_i32 = arith.constant 0 : i32
    %c0_i32_0 = arith.constant 0 : i32
    %c0_i32_1 = arith.constant 0 : i32
    %c0_i32_2 = arith.constant 0 : i32
    return %c0_i32, %c0_i32_0, %c0_i32_1 : i32, i32, i32
  }
  func.func @transform_8(%arg0: i32) -> (i32, i32) {
    %c0_i32 = arith.constant 0 : i32
    %c0_i32_0 = arith.constant 0 : i32
    %c0_i32_1 = arith.constant 0 : i32
    return %c0_i32, %c0_i32_0 : i32, i32
  }
  func.func @transform_9(%arg0: i32) -> (i32, i32, i32) {
    %c0_i32 = arith.constant 0 : i32
    %c0_i32_0 = arith.constant 0 : i32
    %c0_i32_1 = arith.constant 0 : i32
    %c0_i32_2 = arith.constant 0 : i32
    return %c0_i32, %c0_i32_0, %c0_i32_1 : i32, i32, i32
  }
  func.func @transform_10(%arg0: i32) -> (i32, i32) {
    %c0_i32 = arith.constant 0 : i32
    %c0_i32_0 = arith.constant 0 : i32
    %c0_i32_1 = arith.constant 0 : i32
    return %c0_i32, %c0_i32_0 : i32, i32
  }
  func.func @transform_11(%arg0: i32) -> (i32, i32) {
    %c0_i32 = arith.constant 0 : i32
    %c0_i32_0 = arith.constant 0 : i32
    %c0_i32_1 = arith.constant 0 : i32
    return %c0_i32, %c0_i32_0 : i32, i32
  }
  func.func @transform_12(%arg0: i32) -> (i32, i32) {
    %c0_i32 = arith.constant 0 : i32
    %c0_i32_0 = arith.constant 0 : i32
    %c0_i32_1 = arith.constant 0 : i32
    return %c0_i32, %c0_i32_0 : i32, i32
  }
  func.func @transform_13(%arg0: i32) -> (i32, i32, i32) {
    %c0_i32 = arith.constant 0 : i32
    %c0_i32_0 = arith.constant 0 : i32
    %c0_i32_1 = arith.constant 0 : i32
    return %arg0, %c0_i32, %c0_i32_0 : i32, i32, i32
  }
}

</mosaic_0001>

<llo_original>
// kernel: feature_merging_forward.3
$region0: #{feature_merging_forward.3}
  #allocation0 [shape = 'u32[]', space=smem, size = 0x4, offset = 0x4, fixed_abs, tag = 'smem constant byte address 0x4 - core index']
  #allocation1 [shape = 'u32[144,128]{1,0:T(1,128)}', space=vmem, size = 0x12000, scoped, tag = 'internal scratch']
  %s0 = inlined_call_operand.vmem [shape: f32[2,4,16,16], index: 0, kind: input, shape index: {}]
  %s1 = inlined_call_operand.vmem [shape: bf16[32,16], index: 1, kind: input, shape index: {}]
  %s2 = inlined_call_operand.vmem [shape: bf16[16,32], index: 2, kind: input, shape index: {}]
  %s3 = inlined_call_operand.hbm [shape: f32[2,4,32,32], index: 3, kind: output, shape index: {}]
  %s4 = sld [smem:[#allocation0]]
  $region45: #{feature_merging_forward.3} parent=0
    _
  %s6 = ssub.s32 1, %s4
  %s7 = scalar_select 0, %s6, %s4
  $region1: #{feature_merging_forward.3} parent=0
    #allocation2 [shape = 'u8[131072]{0}', space=vmem, size = 0x20000, scoped, tag = 'output window, operand 0']
    #allocation3 [shape = 's32[2]{0}', space=sflag, size = 0x8, scoped, tag = 'scoped memory for feature_merging_forward.3']
    %8 = vsyncpa [#allocation3], 0
    %s9 = scalar_lea.sflag [#allocation3], 1
    %10 = vsyncpa %s9, 0
    loop: start=0, step=1, limit=4
    $region2: #{feature_merging_forward.3} parent=1 // loop_pre_header
      _
    $region3: #{feature_merging_forward.3} parent=1 // loop_header
      %s12 = sphi 0, %s16
      %p13 = scmp.ge.s32.totalorder %s12, 4
      %s19 = sphi 0, %s31
      %s20 = sphi 0, %s27
      %s21 = sphi 0, %s19
      %s22 = sphi 0, %s20
      %s23 = sphi 0, %s21
      %s24 = sphi 0, %s22
      %s36 = sphi 0, %s38
      %s39 = sphi 0, %s36
      %s40 = sphi 0, %s39
      %s56 = sphi 0, %s40
      %s60 = sphi 0, %s60
      %s62 = sphi 0, %s60
      %s63 = sphi 0, %s62
      %s77 = sphi 0, %s63
      %s81 = sphi 0, %s81
      %s83 = sphi 0, %s81
      %s84 = sphi 0, %s83
      %s98 = sphi 0, %s84
      %s106 = sphi 0, %s108
      %s109 = sphi 0, %s106
      %s110 = sphi 0, %s109
      %s126 = sphi 0, %s110
    $region4: #{feature_merging_forward.3} parent=1 // loop_header_branch
      %15 = sbr.rel (%p13) target = $region8
    $region5: #{feature_merging_forward.3} parent=1 // loop_body
      %s17 = ssub.s32 %s12, 1
      %s18 = ssub.s32 %s12, 2
      %s25 = sadd.s32 1, %s20
      %p26 = scmp.ge.s32.totalorder %s25, 1
      %s27 = scalar_select %p26, 0, %s25
      %s28 = sadd.s32 1, %s19
      %s29 = scalar_select %p26, %s28, %s19
      %p30 = scmp.ge.s32.totalorder %s29, 2
      %s31 = scalar_select %p30, 0, %s29
      %s32 = ssub.s32 %s19, %s31
      %s33 = ssub.s32 %s20, %s27
      %s34 = sor.u32 %s32, %s33
      %p35 = scmp.eq.s32.totalorder %s34, 0
      %s37 = sadd.s32 %s36, 1
      %s38 = scalar_select %p35, %s36, %s37
      %p41 = pneg %p35
      %p42 = scmp.eq.s32.totalorder %s12, 1
      %p43 = por %p41, %p42
      %p44 = scmp.ne.s32.totalorder %s36, %s39
      %p45 = scmp.eq.s32.totalorder %s12, 0
      %p46 = por %p44, %p45
      %p47 = scmp.ne.s32.totalorder %s36, %s39
      %p48 = scmp.eq.s32.totalorder %s17, 1
      %p49 = por %p47, %p48
      %p50 = scmp.ne.s32.totalorder %s39, %s40
      %p51 = scmp.eq.s32.totalorder %s17, 0
      %p52 = por %p50, %p51
      %p53 = scmp.ne.s32.totalorder %s39, %s40
      %p54 = scmp.eq.s32.totalorder %s18, 1
      %p55 = por %p53, %p54
      %p57 = scmp.ne.s32.totalorder %s40, %s56
      %p58 = scmp.eq.s32.totalorder %s18, 0
      %p59 = por %p57, %p58
      %s61 = sadd.s32 %s60, 1
      %p64 = scmp.eq.s32.totalorder %s12, 1
      %p65 = scmp.ne.s32.totalorder %s60, %s62
      %p66 = scmp.eq.s32.totalorder %s12, 0
      %p67 = por %p65, %p66
      %p68 = scmp.ne.s32.totalorder %s60, %s62
      %p69 = scmp.eq.s32.totalorder %s17, 1
      %p70 = por %p68, %p69
      %p71 = scmp.ne.s32.totalorder %s62, %s63
      %p72 = scmp.eq.s32.totalorder %s17, 0
      %p73 = por %p71, %p72
      %p74 = scmp.ne.s32.totalorder %s62, %s63
      %p75 = scmp.eq.s32.totalorder %s18, 1
      %p76 = por %p74, %p75
      %p78 = scmp.ne.s32.totalorder %s63, %s77
      %p79 = scmp.eq.s32.totalorder %s18, 0
      %p80 = por %p78, %p79
      %s82 = sadd.s32 %s81, 1
      %p85 = scmp.eq.s32.totalorder %s12, 1
      %p86 = scmp.ne.s32.totalorder %s81, %s83
      %p87 = scmp.eq.s32.totalorder %s12, 0
      %p88 = por %p86, %p87
      %p89 = scmp.ne.s32.totalorder %s81, %s83
      %p90 = scmp.eq.s32.totalorder %s17, 1
      %p91 = por %p89, %p90
      %p92 = scmp.ne.s32.totalorder %s83, %s84
      %p93 = scmp.eq.s32.totalorder %s17, 0
      %p94 = por %p92, %p93
      %p95 = scmp.ne.s32.totalorder %s83, %s84
      %p96 = scmp.eq.s32.totalorder %s18, 1
      %p97 = por %p95, %p96
      %p99 = scmp.ne.s32.totalorder %s84, %s98
      %p100 = scmp.eq.s32.totalorder %s18, 0
      %p101 = por %p99, %p100
      %s102 = ssub.s32 %s19, %s31
      %s103 = ssub.s32 %s20, %s27
      %s104 = sor.u32 %s102, %s103
      %p105 = scmp.eq.s32.totalorder %s104, 0
      %s107 = sadd.s32 %s106, 1
      %s108 = scalar_select %p105, %s106, %s107
      %p111 = pneg %p105
      %p112 = scmp.eq.s32.totalorder %s12, 1
      %p113 = por %p111, %p112
      %p114 = scmp.ne.s32.totalorder %s106, %s109
      %p115 = scmp.eq.s32.totalorder %s12, 0
      %p116 = por %p114, %p115
      %p117 = scmp.ne.s32.totalorder %s106, %s109
      %p118 = scmp.eq.s32.totalorder %s17, 1
      %p119 = por %p117, %p118
      %p120 = scmp.ne.s32.totalorder %s109, %s110
      %p121 = scmp.eq.s32.totalorder %s17, 0
      %p122 = por %p120, %p121
      %p123 = scmp.ne.s32.totalorder %s109, %s110
      %p124 = scmp.eq.s32.totalorder %s18, 1
      %p125 = por %p123, %p124
      %p127 = scmp.ne.s32.totalorder %s110, %s126
      %p128 = scmp.eq.s32.totalorder %s18, 0
      %p129 = por %p127, %p128
      %p130 = scmp.le.s32.totalorder 1, %s12
      %p131 = scmp.lt.s32.totalorder %s12, 3
      %p132 = pnand %p130, %p131
      %p133 = pneg %p132
      // Predicated region
      $region9: #{feature_merging_forward.3} parent=5 // pred_check
        _
      $region10: #{feature_merging_forward.3} parent=5 // pred_check_branch
        %135 = sbr.rel (%p132) target = $region12
      $region11: #{feature_merging_forward.3} parent=5 // pred_region
        %s136 = ssub.s32 %s12, 1
        // Predicated region
        $region13: #{feature_merging_forward.3} parent=11 // pred_check
          %p137 = pneg %p73
        $region14: #{feature_merging_forward.3} parent=11 // pred_check_branch
          %139 = sbr.rel (%p137) target = $region16
        $region15: #{feature_merging_forward.3} parent=11 // pred_region
          _
        $region16: #{feature_merging_forward.3} parent=11 // pred_fallthru
          _
        // Predicated region
        $region17: #{feature_merging_forward.3} parent=11 // pred_check
          %p140 = pneg %p94
        $region18: #{feature_merging_forward.3} parent=11 // pred_check_branch
          %142 = sbr.rel (%p140) target = $region20
        $region19: #{feature_merging_forward.3} parent=11 // pred_region
          _
        $region20: #{feature_merging_forward.3} parent=11 // pred_fallthru
          _
      $region12: #{feature_merging_forward.3} parent=5 // pred_fallthru
        _
      %p143 = scmp.lt.s32.totalorder %s12, 2
      // Predicated region
      $region21: #{feature_merging_forward.3} parent=5 // pred_check
        %p144 = pneg %p143
      $region22: #{feature_merging_forward.3} parent=5 // pred_check_branch
        %146 = sbr.rel (%p144) target = $region24
      $region23: #{feature_merging_forward.3} parent=5 // pred_region
        // Predicated region
        $region25: #{feature_merging_forward.3} parent=23 // pred_check
          %p147 = pneg %p46
        $region26: #{feature_merging_forward.3} parent=23 // pred_check_branch
          %149 = sbr.rel (%p147) target = $region28
        $region27: #{feature_merging_forward.3} parent=23 // pred_region
          %s150 = smul.u32 4, %s20
          %p151 = scmp.lt.s32.totalorder %s19, 1
          %s152 = scalar_select %p151, %s19, 1
          %p153 = scmp.lt.s32.totalorder %s150, 3
          %s154 = scalar_select %p153, %s150, 3
          %s155 = smul.addr %s154, 2
          %s156 = smul.addr %s152, 8
          %s157 = sadd.s32 %s155, %s156
          %s158 = smul.addr %s157, 8
          %s159 = scalar_lea.vmem %s0, %s158
          %s160 = smul.u32 4, %s20
        $region28: #{feature_merging_forward.3} parent=23 // pred_fallthru
          _
      $region24: #{feature_merging_forward.3} parent=5 // pred_fallthru
        _
      %p161 = scmp.le.s32.totalorder 1, %s12
      %p162 = scmp.lt.s32.totalorder %s12, 3
      %p163 = pnand %p161, %p162
      %p164 = pneg %p163
      // Predicated region
      $region29: #{feature_merging_forward.3} parent=5 // pred_check
        _
      $region30: #{feature_merging_forward.3} parent=5 // pred_check_branch
        %166 = sbr.rel (%p163) target = $region32
      $region31: #{feature_merging_forward.3} parent=5 // pred_region
        %s167 = ssub.s32 %s12, 1
        %s168 = smul.u32 4, %s22
        %p169 = scmp.lt.s32.totalorder %s21, 1
        %s170 = scalar_select %p169, %s21, 1
        %p171 = scmp.lt.s32.totalorder %s168, 3
        %s172 = scalar_select %p171, %s168, 3
        %s173 = smul.addr %s172, 2
        %s174 = smul.addr %s170, 8
        %s175 = sadd.s32 %s173, %s174
        %s176 = smul.addr %s175, 8
        %s177 = scalar_lea.vmem %s0, %s176
        %p178 = pneg %p52
        %p179 = pneg %p49
        %p180 = pneg %p73
        %p181 = pneg %p70
        %p182 = pneg %p94
        %p183 = pneg %p91
        %p184 = pneg %p122
        %p185 = pneg %p119
        %s186 = sand.u32 %s109, 1
        %s187 = scalar_lea.sflag [#allocation3], %s186
        %s188 = sand.u32 %s109, 1
        %s189 = smul.addr %s188, 128
        %s190 = scalar_lea.vmem [#allocation2], %s189
        %s191 = smul.u32 4, %s22
        %p192 = scmp.lt.s32.totalorder %s21, 1
        %s193 = scalar_select %p192, %s21, 1
        %p194 = scmp.lt.s32.totalorder %s191, 3
        %s195 = scalar_select %p194, %s191, 3
        %s196 = smul.addr %s195, 2
        %s197 = smul.addr %s193, 8
        %s198 = sadd.s32 %s196, %s197
        %s199 = smul.addr %s198, 8
        %s200 = scalar_lea.vmem %s0, %s199
        %s201 = smul.u32 4, %s22
        %s202 = smul.u32 4, %s22
        %v204 = vld [vmem:[%s200] sm:$0xff]
        %v205 = vld [vmem:[%s200 + $0x8] sm:$0xff]
        %v206 = vld [vmem:[%s200 + $0x10] sm:$0xff]
        %v207 = vld [vmem:[%s200 + $0x18] sm:$0xff]
        %v208 = vld [vmem:[%s200 + $0x20] sm:$0xff]
        %v209 = vld [vmem:[%s200 + $0x28] sm:$0xff]
        %v210 = vld [vmem:[%s200 + $0x30] sm:$0xff]
        %v211 = vld [vmem:[%s200 + $0x38] sm:$0xff]
        %v212 = vpack.c.bf16 %v205, %v204
        %v213 = vpack.c.bf16 %v207, %v206
        %v214 = vpack.c.bf16 %v209, %v208
        %v215 = vpack.c.bf16 %v211, %v210
        %v216 = vld [vmem:[%s2] sm:$0xf]
        %v217 = vld [vmem:[%s2 + $0x4] sm:$0xf]
        %v220 = vunpack.c.l.b16 %v216
        %v221 = vunpack.c.l.b16 %v217
        %v222 = vpack.c.b16 %v221, %v220
        %vm224 = vcmask 130048
        %v226 = vsel %vm224, %v212, 0
        %v229 = vsel %vm224, %v213, 0
        %v232 = vsel %vm224, %v214, 0
        %v235 = vsel %vm224, %v215, 0
        %237 = vmatprep.subr.bf16.mxu0 0
        %238 = vmatpush1.bf16.msra.mxu0 0
        %239 = vmatprep.subr.bf16.mxu0 0
        %240 = vmatpush1.bf16.msra.mxu0 0
        %241 = vmatprep.subr.bf16.mxu0 0
        %242 = vmatpush1.bf16.msra.mxu0 0
        %243 = vmatprep.subr.bf16.mxu0 0
        %244 = vmatpush1.bf16.msra.mxu0 0
        %245 = vmatprep.subr.bf16.mxu0 0
        %246 = vmatpush1.bf16.msra.mxu0 0
        %247 = vmatprep.subr.bf16.mxu0 0
        %248 = vmatpush1.bf16.msra.mxu0 0
        %249 = vmatprep.subr.bf16.mxu0 0
        %250 = vmatpush1.bf16.msra.mxu0 0
        %251 = vmatprep.subr.bf16.mxu0 0
        %252 = vmatpush1.bf16.msra.mxu0 %v222
        %253 = vmatprep.subr.bf16.mxu0 0
        %254 = vmatpush2.bf16.msra.mxu0 0
        %255 = vmatprep.subr.bf16.mxu0 0
        %256 = vmatpush2.bf16.msra.mxu0 0
        %257 = vmatprep.subr.bf16.mxu0 0
        %258 = vmatpush2.bf16.msra.mxu0 0
        %259 = vmatprep.subr.bf16.mxu0 0
        %260 = vmatpush2.bf16.msra.mxu0 0
        %261 = vmatprep.subr.bf16.mxu0 0
        %262 = vmatpush2.bf16.msra.mxu0 0
        %263 = vmatprep.subr.bf16.mxu0 0
        %264 = vmatpush2.bf16.msra.mxu0 0
        %265 = vmatprep.subr.bf16.mxu0 0
        %266 = vmatpush2.bf16.msra.mxu0 0
        %267 = vmatprep.subr.bf16.mxu0 0
        %268 = vmatpush2.bf16.msra.mxu0 0
        %269 = vmatprep.mubr.bf16.mxu0 0
        %270 = vmatmul.mubr.bf16.gmra.mxu0 %v226
        %v271 = vpop.f32.mrf.mxu0
        %v272 = vadd.f32 0.0, %v271
        %v273 = vpop.f32.mrf.mxu0
        %v274 = vpop.f32.mrf.mxu0
        %v275 = vadd.f32 0.0, %v274
        %v276 = vpop.f32.mrf.mxu0
        %277 = vmatprep.mubr.bf16.mxu0 0
        %278 = vmatmul.mubr.bf16.gmra.mxu0 %v229
        %v279 = vpop.f32.mrf.mxu0
        %v280 = vadd.f32 0.0, %v279
        %v281 = vpop.f32.mrf.mxu0
        %v282 = vpop.f32.mrf.mxu0
        %v283 = vadd.f32 0.0, %v282
        %v284 = vpop.f32.mrf.mxu0
        %285 = vmatprep.mubr.bf16.mxu0 0
        %286 = vmatmul.mubr.bf16.gmra.mxu0 %v232
        %v287 = vpop.f32.mrf.mxu0
        %v288 = vadd.f32 0.0, %v287
        %v289 = vpop.f32.mrf.mxu0
        %v290 = vpop.f32.mrf.mxu0
        %v291 = vadd.f32 0.0, %v290
        %v292 = vpop.f32.mrf.mxu0
        %293 = vmatprep.mubr.bf16.mxu0 0
        %294 = vmatmul.mubr.bf16.gmra.mxu0 %v235
        %v295 = vpop.f32.mrf.mxu0
        %v296 = vadd.f32 0.0, %v295
        %v297 = vpop.f32.mrf.mxu0
        %v298 = vpop.f32.mrf.mxu0
        %v299 = vadd.f32 0.0, %v298
        %v300 = vpop.f32.mrf.mxu0
        %301 = vdwg.mxu0
        %v302 = vpack.c.bf16 %v275, %v272
        %v303 = vpack.c.bf16 %v283, %v280
        %v304 = vpack.c.bf16 %v291, %v288
        %v305 = vpack.c.bf16 %v299, %v296
        %v306 = vld [vmem:[%s1] sm:$0xf]
        %v307 = vld [vmem:[%s1 + $0x4] sm:$0xf]
        %v308 = vld [vmem:[%s1 + $0x8] sm:$0xf]
        %v309 = vld [vmem:[%s1 + $0xc] sm:$0xf]
        %v314 = vunpack.c.l.b16 %v306
        %v315 = vunpack.c.l.b16 %v307
        %v316 = vunpack.c.l.b16 %v308
        %v317 = vunpack.c.l.b16 %v309
        %v318 = vpack.c.b16 %v315, %v314
        %v319 = vpack.c.b16 %v317, %v316
        %v321 = vsel %vm224, %v318, 0
        %v324 = vsel %vm224, %v319, 0
        %326 = vmatprep.subr.bf16.mxu0 0
        %327 = vmatpush1.bf16.msra.mxu0 0
        %328 = vmatprep.subr.bf16.mxu0 0
        %329 = vmatpush1.bf16.msra.mxu0 0
        %330 = vmatprep.subr.bf16.mxu0 0
        %331 = vmatpush1.bf16.msra.mxu0 0
        %332 = vmatprep.subr.bf16.mxu0 0
        %333 = vmatpush1.bf16.msra.mxu0 0
        %334 = vmatprep.subr.bf16.mxu0 0
        %335 = vmatpush1.bf16.msra.mxu0 0
        %336 = vmatprep.subr.bf16.mxu0 0
        %337 = vmatpush1.bf16.msra.mxu0 0
        %338 = vmatprep.subr.bf16.mxu0 0
        %339 = vmatpush1.bf16.msra.mxu0 0
        %340 = vmatprep.subr.bf16.mxu0 0
        %341 = vmatpush1.bf16.msra.mxu0 %v302
        %342 = vmatprep.subr.bf16.mxu0 0
        %343 = vmatpush2.bf16.msra.mxu0 0
        %344 = vmatprep.subr.bf16.mxu0 0
        %345 = vmatpush2.bf16.msra.mxu0 0
        %346 = vmatprep.subr.bf16.mxu0 0
        %347 = vmatpush2.bf16.msra.mxu0 0
        %348 = vmatprep.subr.bf16.mxu0 0
        %349 = vmatpush2.bf16.msra.mxu0 0
        %350 = vmatprep.subr.bf16.mxu0 0
        %351 = vmatpush2.bf16.msra.mxu0 0
        %352 = vmatprep.subr.bf16.mxu0 0
        %353 = vmatpush2.bf16.msra.mxu0 0
        %354 = vmatprep.subr.bf16.mxu0 0
        %355 = vmatpush2.bf16.msra.mxu0 0
        %356 = vmatprep.subr.bf16.mxu0 0
        %357 = vmatpush2.bf16.msra.mxu0 0
        %358 = vmatprep.mubr.bf16.mxu0 0
        %359 = vmatmul.mubr.bf16.gmra.mxu0 %v321
        %v360 = vpop.f32.mrf.mxu0
        %v361 = vadd.f32 0.0, %v360
        %v362 = vpop.f32.mrf.mxu0
        %v363 = vpop.f32.mrf.mxu0
        %v364 = vadd.f32 0.0, %v363
        %v365 = vpop.f32.mrf.mxu0
        %366 = vmatprep.mubr.bf16.mxu0 0
        %367 = vmatmul.mubr.bf16.gmra.mxu0 %v324
        %v368 = vpop.f32.mrf.mxu0
        %v369 = vadd.f32 0.0, %v368
        %v370 = vpop.f32.mrf.mxu0
        %v371 = vpop.f32.mrf.mxu0
        %v372 = vadd.f32 0.0, %v371
        %v373 = vpop.f32.mrf.mxu0
        %374 = vdwg.mxu0
        %375 = vmatprep.subr.bf16.mxu0 0
        %376 = vmatpush1.bf16.msra.mxu0 0
        %377 = vmatprep.subr.bf16.mxu0 0
        %378 = vmatpush1.bf16.msra.mxu0 0
        %379 = vmatprep.subr.bf16.mxu0 0
        %380 = vmatpush1.bf16.msra.mxu0 0
        %381 = vmatprep.subr.bf16.mxu0 0
        %382 = vmatpush1.bf16.msra.mxu0 0
        %383 = vmatprep.subr.bf16.mxu0 0
        %384 = vmatpush1.bf16.msra.mxu0 0
        %385 = vmatprep.subr.bf16.mxu0 0
        %386 = vmatpush1.bf16.msra.mxu0 0
        %387 = vmatprep.subr.bf16.mxu0 0
        %388 = vmatpush1.bf16.msra.mxu0 0
        %389 = vmatprep.subr.bf16.mxu0 0
        %390 = vmatpush1.bf16.msra.mxu0 %v303
        %391 = vmatprep.subr.bf16.mxu0 0
        %392 = vmatpush2.bf16.msra.mxu0 0
        %393 = vmatprep.subr.bf16.mxu0 0
        %394 = vmatpush2.bf16.msra.mxu0 0
        %395 = vmatprep.subr.bf16.mxu0 0
        %396 = vmatpush2.bf16.msra.mxu0 0
        %397 = vmatprep.subr.bf16.mxu0 0
        %398 = vmatpush2.bf16.msra.mxu0 0
        %399 = vmatprep.subr.bf16.mxu0 0
        %400 = vmatpush2.bf16.msra.mxu0 0
        %401 = vmatprep.subr.bf16.mxu0 0
        %402 = vmatpush2.bf16.msra.mxu0 0
        %403 = vmatprep.subr.bf16.mxu0 0
        %404 = vmatpush2.bf16.msra.mxu0 0
        %405 = vmatprep.subr.bf16.mxu0 0
        %406 = vmatpush2.bf16.msra.mxu0 0
        %407 = vmatprep.mubr.bf16.mxu0 0
        %408 = vmatmul.mubr.bf16.gmra.mxu0 %v321
        %v409 = vpop.f32.mrf.mxu0
        %v410 = vadd.f32 0.0, %v409
        %v411 = vpop.f32.mrf.mxu0
        %v412 = vpop.f32.mrf.mxu0
        %v413 = vadd.f32 0.0, %v412
        %v414 = vpop.f32.mrf.mxu0
        %415 = vmatprep.mubr.bf16.mxu0 0
        %416 = vmatmul.mubr.bf16.gmra.mxu0 %v324
        %v417 = vpop.f32.mrf.mxu0
        %v418 = vadd.f32 0.0, %v417
        %v419 = vpop.f32.mrf.mxu0
        %v420 = vpop.f32.mrf.mxu0
        %v421 = vadd.f32 0.0, %v420
        %v422 = vpop.f32.mrf.mxu0
        %423 = vdwg.mxu0
        %424 = vmatprep.subr.bf16.mxu0 0
        %425 = vmatpush1.bf16.msra.mxu0 0
        %426 = vmatprep.subr.bf16.mxu0 0
        %427 = vmatpush1.bf16.msra.mxu0 0
        %428 = vmatprep.subr.bf16.mxu0 0
        %429 = vmatpush1.bf16.msra.mxu0 0
        %430 = vmatprep.subr.bf16.mxu0 0
        %431 = vmatpush1.bf16.msra.mxu0 0
        %432 = vmatprep.subr.bf16.mxu0 0
        %433 = vmatpush1.bf16.msra.mxu0 0
        %434 = vmatprep.subr.bf16.mxu0 0
        %435 = vmatpush1.bf16.msra.mxu0 0
        %436 = vmatprep.subr.bf16.mxu0 0
        %437 = vmatpush1.bf16.msra.mxu0 0
        %438 = vmatprep.subr.bf16.mxu0 0
        %439 = vmatpush1.bf16.msra.mxu0 %v304
        %440 = vmatprep.subr.bf16.mxu0 0
        %441 = vmatpush2.bf16.msra.mxu0 0
        %442 = vmatprep.subr.bf16.mxu0 0
        %443 = vmatpush2.bf16.msra.mxu0 0
        %444 = vmatprep.subr.bf16.mxu0 0
        %445 = vmatpush2.bf16.msra.mxu0 0
        %446 = vmatprep.subr.bf16.mxu0 0
        %447 = vmatpush2.bf16.msra.mxu0 0
        %448 = vmatprep.subr.bf16.mxu0 0
        %449 = vmatpush2.bf16.msra.mxu0 0
        %450 = vmatprep.subr.bf16.mxu0 0
        %451 = vmatpush2.bf16.msra.mxu0 0
        %452 = vmatprep.subr.bf16.mxu0 0
        %453 = vmatpush2.bf16.msra.mxu0 0
        %454 = vmatprep.subr.bf16.mxu0 0
        %455 = vmatpush2.bf16.msra.mxu0 0
        %456 = vmatprep.mubr.bf16.mxu0 0
        %457 = vmatmul.mubr.bf16.gmra.mxu0 %v321
        %v458 = vpop.f32.mrf.mxu0
        %v459 = vadd.f32 0.0, %v458
        %v460 = vpop.f32.mrf.mxu0
        %v461 = vpop.f32.mrf.mxu0
        %v462 = vadd.f32 0.0, %v461
        %v463 = vpop.f32.mrf.mxu0
        %464 = vmatprep.mubr.bf16.mxu0 0
        %465 = vmatmul.mubr.bf16.gmra.mxu0 %v324
        %v466 = vpop.f32.mrf.mxu0
        %v467 = vadd.f32 0.0, %v466
        %v468 = vpop.f32.mrf.mxu0
        %v469 = vpop.f32.mrf.mxu0
        %v470 = vadd.f32 0.0, %v469
        %v471 = vpop.f32.mrf.mxu0
        %472 = vdwg.mxu0
        %473 = vmatprep.subr.bf16.mxu0 0
        %474 = vmatpush1.bf16.msra.mxu0 0
        %475 = vmatprep.subr.bf16.mxu0 0
        %476 = vmatpush1.bf16.msra.mxu0 0
        %477 = vmatprep.subr.bf16.mxu0 0
        %478 = vmatpush1.bf16.msra.mxu0 0
        %479 = vmatprep.subr.bf16.mxu0 0
        %480 = vmatpush1.bf16.msra.mxu0 0
        %481 = vmatprep.subr.bf16.mxu0 0
        %482 = vmatpush1.bf16.msra.mxu0 0
        %483 = vmatprep.subr.bf16.mxu0 0
        %484 = vmatpush1.bf16.msra.mxu0 0
        %485 = vmatprep.subr.bf16.mxu0 0
        %486 = vmatpush1.bf16.msra.mxu0 0
        %487 = vmatprep.subr.bf16.mxu0 0
        %488 = vmatpush1.bf16.msra.mxu0 %v305
        %489 = vmatprep.subr.bf16.mxu0 0
        %490 = vmatpush2.bf16.msra.mxu0 0
        %491 = vmatprep.subr.bf16.mxu0 0
        %492 = vmatpush2.bf16.msra.mxu0 0
        %493 = vmatprep.subr.bf16.mxu0 0
        %494 = vmatpush2.bf16.msra.mxu0 0
        %495 = vmatprep.subr.bf16.mxu0 0
        %496 = vmatpush2.bf16.msra.mxu0 0
        %497 = vmatprep.subr.bf16.mxu0 0
        %498 = vmatpush2.bf16.msra.mxu0 0
        %499 = vmatprep.subr.bf16.mxu0 0
        %500 = vmatpush2.bf16.msra.mxu0 0
        %501 = vmatprep.subr.bf16.mxu0 0
        %502 = vmatpush2.bf16.msra.mxu0 0
        %503 = vmatprep.subr.bf16.mxu0 0
        %504 = vmatpush2.bf16.msra.mxu0 0
        %505 = vmatprep.mubr.bf16.mxu0 0
        %506 = vmatmul.mubr.bf16.gmra.mxu0 %v321
        %v507 = vpop.f32.mrf.mxu0
        %v508 = vadd.f32 0.0, %v507
        %v509 = vpop.f32.mrf.mxu0
        %v510 = vpop.f32.mrf.mxu0
        %v511 = vadd.f32 0.0, %v510
        %v512 = vpop.f32.mrf.mxu0
        %513 = vmatprep.mubr.bf16.mxu0 0
        %514 = vmatmul.mubr.bf16.gmra.mxu0 %v324
        %v515 = vpop.f32.mrf.mxu0
        %v516 = vadd.f32 0.0, %v515
        %v517 = vpop.f32.mrf.mxu0
        %v518 = vpop.f32.mrf.mxu0
        %v519 = vadd.f32 0.0, %v518
        %v520 = vpop.f32.mrf.mxu0
        %521 = vdwg.mxu0
        %vm522 = vcmask 261120
        %523 = vst.msk [vmem:[%s190] sm:$0xff] %vm522, %v361
        %524 = vst.msk [vmem:[%s190 + $0x8] sm:$0xff] %vm522, %v364
        %525 = vst.msk [vmem:[%s190 + $0x10] sm:$0xff] %vm522, %v369
        %526 = vst.msk [vmem:[%s190 + $0x18] sm:$0xff] %vm522, %v372
        %527 = vst.msk [vmem:[%s190 + $0x20] sm:$0xff] %vm522, %v410
        %528 = vst.msk [vmem:[%s190 + $0x28] sm:$0xff] %vm522, %v413
        %529 = vst.msk [vmem:[%s190 + $0x30] sm:$0xff] %vm522, %v418
        %530 = vst.msk [vmem:[%s190 + $0x38] sm:$0xff] %vm522, %v421
        %531 = vst.msk [vmem:[%s190 + $0x40] sm:$0xff] %vm522, %v459
        %532 = vst.msk [vmem:[%s190 + $0x48] sm:$0xff] %vm522, %v462
        %533 = vst.msk [vmem:[%s190 + $0x50] sm:$0xff] %vm522, %v467
        %534 = vst.msk [vmem:[%s190 + $0x58] sm:$0xff] %vm522, %v470
        %535 = vst.msk [vmem:[%s190 + $0x60] sm:$0xff] %vm522, %v508
        %536 = vst.msk [vmem:[%s190 + $0x68] sm:$0xff] %vm522, %v511
        %537 = vst.msk [vmem:[%s190 + $0x70] sm:$0xff] %vm522, %v516
        %538 = vst.msk [vmem:[%s190 + $0x78] sm:$0xff] %vm522, %v519
        %s539 = sand.u32 %s109, 1
        %s540 = scalar_lea.sflag [#allocation3], %s539
        %s541 = sand.u32 %s109, 1
        %s542 = smul.addr %s541, 128
        %s543 = scalar_lea.vmem [#allocation2], %s542
        // Predicated region
        $region33: #{feature_merging_forward.3} parent=31 // pred_check
          %p544 = pneg %p119
        $region34: #{feature_merging_forward.3} parent=31 // pred_check_branch
          %546 = sbr.rel (%p544) target = $region36
        $region35: #{feature_merging_forward.3} parent=31 // pred_region
          %s547 = smul.u32 4, %s22
          %s549 = ssub.s32 2048, 2048
          %550 = vsyncadd %s540, %s549
          %s551 = smul.addr %s547, 4
          %s552 = smul.addr %s21, 16
          %s553 = sadd.s32 %s551, %s552
          %s554 = smul.addr %s553, 128
          %s555 = scalar_lea.hbm %s3, %s554
          %s556 = sshll.u32 %s543, 4
          %s557 = int_to_ptr.vmem [resolvable:$true] %s556
          %562 = dma.vmem_to_hbm [thread:$0]  %s557, 2048, %s555, %s540, 128, 128, 8
        $region36: #{feature_merging_forward.3} parent=31 // pred_fallthru
          _
      $region32: #{feature_merging_forward.3} parent=5 // pred_fallthru
        _
      %p563 = scmp.le.s32.totalorder 2, %s12
      // Predicated region
      $region37: #{feature_merging_forward.3} parent=5 // pred_check
        %p564 = pneg %p563
      $region38: #{feature_merging_forward.3} parent=5 // pred_check_branch
        %566 = sbr.rel (%p564) target = $region40
      $region39: #{feature_merging_forward.3} parent=5 // pred_region
        %s567 = ssub.s32 %s12, 2
        // Predicated region
        $region41: #{feature_merging_forward.3} parent=39 // pred_check
          %p568 = pneg %p125
        $region42: #{feature_merging_forward.3} parent=39 // pred_check_branch
          %570 = sbr.rel (%p568) target = $region44
        $region43: #{feature_merging_forward.3} parent=39 // pred_region
          %s571 = sand.u32 %s110, 1
          %s572 = scalar_lea.sflag [#allocation3], %s571
          %s573 = sand.u32 %s110, 1
          %s574 = smul.addr %s573, 128
          %s575 = scalar_lea.vmem [#allocation2], %s574
          %576 = dma.done %s572, 2048
        $region44: #{feature_merging_forward.3} parent=39 // pred_fallthru
          _
      $region40: #{feature_merging_forward.3} parent=5 // pred_fallthru
        _
    $region6: #{feature_merging_forward.3} parent=1 // loop_footer
      %s16 = sadd.s32 1, %s12
    $region7: #{feature_merging_forward.3} parent=1 // loop_footer_branch
      %11 = sbr.rel target = $region3
    $region8: #{feature_merging_forward.3} parent=1 // loop_exit
      _
    %577 = vsyncpa [#allocation3], 1
    %s578 = scalar_lea.sflag [#allocation3], 1
    %579 = vsyncpa %s578, 1

// kernel: feature_merging_forward.2
$region0: #{feature_merging_forward.2}
  #allocation0 [shape = 'u32[]', space=smem, size = 0x4, offset = 0x4, fixed_abs, tag = 'smem constant byte address 0x4 - core index']
  #allocation1 [shape = 'u32[144,128]{1,0:T(1,128)}', space=vmem, size = 0x12000, scoped, tag = 'internal scratch']
  %s0 = inlined_call_operand.vmem [shape: f32[2,4,256], index: 0, kind: input, shape index: {}]
  %s1 = inlined_call_operand.vmem [shape: f32[2,4,256], index: 1, kind: input, shape index: {}]
  %s2 = inlined_call_operand.vmem [shape: f32[9,256], index: 2, kind: input, shape index: {}]
  %s3 = inlined_call_operand.vmem [shape: bf16[9,4,4], index: 3, kind: input, shape index: {}]
  %s4 = inlined_call_operand.vmem [shape: f32[4,1], index: 4, kind: input, shape index: {}]
  %s5 = inlined_call_operand.vmem [shape: bf16[9,4,4], index: 5, kind: input, shape index: {}]
  %s6 = inlined_call_operand.vmem [shape: f32[4,1], index: 6, kind: input, shape index: {}]
  %s7 = inlined_call_operand.vmem [shape: bf16[9,4,4], index: 7, kind: input, shape index: {}]
  %s8 = inlined_call_operand.vmem [shape: f32[4,1], index: 8, kind: input, shape index: {}]
  %s9 = inlined_call_operand.vmem [shape: bf16[9,4,4], index: 9, kind: input, shape index: {}]
  %s10 = inlined_call_operand.vmem [shape: f32[4,1], index: 10, kind: input, shape index: {}]
  %s11 = inlined_call_operand.vmem [shape: bf16[4,4], index: 11, kind: input, shape index: {}]
  %s12 = inlined_call_operand.vmem [shape: f32[4,1], index: 12, kind: input, shape index: {}]
  %s13 = inlined_call_operand.vmem [shape: f32[2,4,256], index: 13, kind: output, shape index: {}]
  %s14 = sld [smem:[#allocation0]]
  $region85: #{feature_merging_forward.2} parent=0
    _
  %s16 = ssub.s32 1, %s14
  %s17 = scalar_select 0, %s16, %s14
  loop: start=0, step=1, limit=4
  $region2: #{feature_merging_forward.2} parent=0 // loop_pre_header
    _
  $region3: #{feature_merging_forward.2} parent=0 // loop_header
    %s19 = sphi 0, %s23
    %p20 = scmp.ge.s32.totalorder %s19, 4
    %s29 = sphi 0, %s31
    %s32 = sphi 0, %s29
    %s33 = sphi 0, %s32
    %s49 = sphi 0, %s33
    %s55 = sphi 0, %s57
    %s58 = sphi 0, %s55
    %s59 = sphi 0, %s58
    %s75 = sphi 0, %s59
    %s79 = sphi 0, %s79
    %s81 = sphi 0, %s79
    %s82 = sphi 0, %s81
    %s96 = sphi 0, %s82
    %s100 = sphi 0, %s100
    %s102 = sphi 0, %s100
    %s103 = sphi 0, %s102
    %s117 = sphi 0, %s103
    %s121 = sphi 0, %s121
    %s123 = sphi 0, %s121
    %s124 = sphi 0, %s123
    %s138 = sphi 0, %s124
    %s142 = sphi 0, %s142
    %s144 = sphi 0, %s142
    %s145 = sphi 0, %s144
    %s159 = sphi 0, %s145
    %s163 = sphi 0, %s163
    %s165 = sphi 0, %s163
    %s166 = sphi 0, %s165
    %s180 = sphi 0, %s166
    %s184 = sphi 0, %s184
    %s186 = sphi 0, %s184
    %s187 = sphi 0, %s186
    %s201 = sphi 0, %s187
    %s205 = sphi 0, %s205
    %s207 = sphi 0, %s205
    %s208 = sphi 0, %s207
    %s222 = sphi 0, %s208
    %s226 = sphi 0, %s226
    %s228 = sphi 0, %s226
    %s229 = sphi 0, %s228
    %s243 = sphi 0, %s229
    %s247 = sphi 0, %s247
    %s249 = sphi 0, %s247
    %s250 = sphi 0, %s249
    %s264 = sphi 0, %s250
    %s268 = sphi 0, %s268
    %s270 = sphi 0, %s268
    %s271 = sphi 0, %s270
    %s285 = sphi 0, %s271
    %s289 = sphi 0, %s289
    %s291 = sphi 0, %s289
    %s292 = sphi 0, %s291
    %s306 = sphi 0, %s292
    %s312 = sphi 0, %s314
    %s315 = sphi 0, %s312
    %s316 = sphi 0, %s315
    %s332 = sphi 0, %s316
  $region4: #{feature_merging_forward.2} parent=0 // loop_header_branch
    %22 = sbr.rel (%p20) target = $region8
  $region5: #{feature_merging_forward.2} parent=0 // loop_body
    %s24 = ssub.s32 %s19, 1
    %s25 = ssub.s32 %s19, 2
    %s26 = sadd.s32 %s19, 1
    %s27 = ssub.s32 %s19, %s26
    %p28 = scmp.eq.s32.totalorder %s27, 0
    %s30 = sadd.s32 %s29, 1
    %s31 = scalar_select %p28, %s29, %s30
    %p34 = pneg %p28
    %p35 = scmp.eq.s32.totalorder %s19, 1
    %p36 = por %p34, %p35
    %p37 = scmp.ne.s32.totalorder %s29, %s32
    %p38 = scmp.eq.s32.totalorder %s19, 0
    %p39 = por %p37, %p38
    %p40 = scmp.ne.s32.totalorder %s29, %s32
    %p41 = scmp.eq.s32.totalorder %s24, 1
    %p42 = por %p40, %p41
    %p43 = scmp.ne.s32.totalorder %s32, %s33
    %p44 = scmp.eq.s32.totalorder %s24, 0
    %p45 = por %p43, %p44
    %p46 = scmp.ne.s32.totalorder %s32, %s33
    %p47 = scmp.eq.s32.totalorder %s25, 1
    %p48 = por %p46, %p47
    %p50 = scmp.ne.s32.totalorder %s33, %s49
    %p51 = scmp.eq.s32.totalorder %s25, 0
    %p52 = por %p50, %p51
    %s53 = ssub.s32 %s19, %s26
    %p54 = scmp.eq.s32.totalorder %s53, 0
    %s56 = sadd.s32 %s55, 1
    %s57 = scalar_select %p54, %s55, %s56
    %p60 = pneg %p54
    %p61 = scmp.eq.s32.totalorder %s19, 1
    %p62 = por %p60, %p61
    %p63 = scmp.ne.s32.totalorder %s55, %s58
    %p64 = scmp.eq.s32.totalorder %s19, 0
    %p65 = por %p63, %p64
    %p66 = scmp.ne.s32.totalorder %s55, %s58
    %p67 = scmp.eq.s32.totalorder %s24, 1
    %p68 = por %p66, %p67
    %p69 = scmp.ne.s32.totalorder %s58, %s59
    %p70 = scmp.eq.s32.totalorder %s24, 0
    %p71 = por %p69, %p70
    %p72 = scmp.ne.s32.totalorder %s58, %s59
    %p73 = scmp.eq.s32.totalorder %s25, 1
    %p74 = por %p72, %p73
    %p76 = scmp.ne.s32.totalorder %s59, %s75
    %p77 = scmp.eq.s32.totalorder %s25, 0
    %p78 = por %p76, %p77
    %s80 = sadd.s32 %s79, 1
    %p83 = scmp.eq.s32.totalorder %s19, 1
    %p84 = scmp.ne.s32.totalorder %s79, %s81
    %p85 = scmp.eq.s32.totalorder %s19, 0
    %p86 = por %p84, %p85
    %p87 = scmp.ne.s32.totalorder %s79, %s81
    %p88 = scmp.eq.s32.totalorder %s24, 1
    %p89 = por %p87, %p88
    %p90 = scmp.ne.s32.totalorder %s81, %s82
    %p91 = scmp.eq.s32.totalorder %s24, 0
    %p92 = por %p90, %p91
    %p93 = scmp.ne.s32.totalorder %s81, %s82
    %p94 = scmp.eq.s32.totalorder %s25, 1
    %p95 = por %p93, %p94
    %p97 = scmp.ne.s32.totalorder %s82, %s96
    %p98 = scmp.eq.s32.totalorder %s25, 0
    %p99 = por %p97, %p98
    %s101 = sadd.s32 %s100, 1
    %p104 = scmp.eq.s32.totalorder %s19, 1
    %p105 = scmp.ne.s32.totalorder %s100, %s102
    %p106 = scmp.eq.s32.totalorder %s19, 0
    %p107 = por %p105, %p106
    %p108 = scmp.ne.s32.totalorder %s100, %s102
    %p109 = scmp.eq.s32.totalorder %s24, 1
    %p110 = por %p108, %p109
    %p111 = scmp.ne.s32.totalorder %s102, %s103
    %p112 = scmp.eq.s32.totalorder %s24, 0
    %p113 = por %p111, %p112
    %p114 = scmp.ne.s32.totalorder %s102, %s103
    %p115 = scmp.eq.s32.totalorder %s25, 1
    %p116 = por %p114, %p115
    %p118 = scmp.ne.s32.totalorder %s103, %s117
    %p119 = scmp.eq.s32.totalorder %s25, 0
    %p120 = por %p118, %p119
    %s122 = sadd.s32 %s121, 1
    %p125 = scmp.eq.s32.totalorder %s19, 1
    %p126 = scmp.ne.s32.totalorder %s121, %s123
    %p127 = scmp.eq.s32.totalorder %s19, 0
    %p128 = por %p126, %p127
    %p129 = scmp.ne.s32.totalorder %s121, %s123
    %p130 = scmp.eq.s32.totalorder %s24, 1
    %p131 = por %p129, %p130
    %p132 = scmp.ne.s32.totalorder %s123, %s124
    %p133 = scmp.eq.s32.totalorder %s24, 0
    %p134 = por %p132, %p133
    %p135 = scmp.ne.s32.totalorder %s123, %s124
    %p136 = scmp.eq.s32.totalorder %s25, 1
    %p137 = por %p135, %p136
    %p139 = scmp.ne.s32.totalorder %s124, %s138
    %p140 = scmp.eq.s32.totalorder %s25, 0
    %p141 = por %p139, %p140
    %s143 = sadd.s32 %s142, 1
    %p146 = scmp.eq.s32.totalorder %s19, 1
    %p147 = scmp.ne.s32.totalorder %s142, %s144
    %p148 = scmp.eq.s32.totalorder %s19, 0
    %p149 = por %p147, %p148
    %p150 = scmp.ne.s32.totalorder %s142, %s144
    %p151 = scmp.eq.s32.totalorder %s24, 1
    %p152 = por %p150, %p151
    %p153 = scmp.ne.s32.totalorder %s144, %s145
    %p154 = scmp.eq.s32.totalorder %s24, 0
    %p155 = por %p153, %p154
    %p156 = scmp.ne.s32.totalorder %s144, %s145
    %p157 = scmp.eq.s32.totalorder %s25, 1
    %p158 = por %p156, %p157
    %p160 = scmp.ne.s32.totalorder %s145, %s159
    %p161 = scmp.eq.s32.totalorder %s25, 0
    %p162 = por %p160, %p161
    %s164 = sadd.s32 %s163, 1
    %p167 = scmp.eq.s32.totalorder %s19, 1
    %p168 = scmp.ne.s32.totalorder %s163, %s165
    %p169 = scmp.eq.s32.totalorder %s19, 0
    %p170 = por %p168, %p169
    %p171 = scmp.ne.s32.totalorder %s163, %s165
    %p172 = scmp.eq.s32.totalorder %s24, 1
    %p173 = por %p171, %p172
    %p174 = scmp.ne.s32.totalorder %s165, %s166
    %p175 = scmp.eq.s32.totalorder %s24, 0
    %p176 = por %p174, %p175
    %p177 = scmp.ne.s32.totalorder %s165, %s166
    %p178 = scmp.eq.s32.totalorder %s25, 1
    %p179 = por %p177, %p178
    %p181 = scmp.ne.s32.totalorder %s166, %s180
    %p182 = scmp.eq.s32.totalorder %s25, 0
    %p183 = por %p181, %p182
    %s185 = sadd.s32 %s184, 1
    %p188 = scmp.eq.s32.totalorder %s19, 1
    %p189 = scmp.ne.s32.totalorder %s184, %s186
    %p190 = scmp.eq.s32.totalorder %s19, 0
    %p191 = por %p189, %p190
    %p192 = scmp.ne.s32.totalorder %s184, %s186
    %p193 = scmp.eq.s32.totalorder %s24, 1
    %p194 = por %p192, %p193
    %p195 = scmp.ne.s32.totalorder %s186, %s187
    %p196 = scmp.eq.s32.totalorder %s24, 0
    %p197 = por %p195, %p196
    %p198 = scmp.ne.s32.totalorder %s186, %s187
    %p199 = scmp.eq.s32.totalorder %s25, 1
    %p200 = por %p198, %p199
    %p202 = scmp.ne.s32.totalorder %s187, %s201
    %p203 = scmp.eq.s32.totalorder %s25, 0
    %p204 = por %p202, %p203
    %s206 = sadd.s32 %s205, 1
    %p209 = scmp.eq.s32.totalorder %s19, 1
    %p210 = scmp.ne.s32.totalorder %s205, %s207
    %p211 = scmp.eq.s32.totalorder %s19, 0
    %p212 = por %p210, %p211
    %p213 = scmp.ne.s32.totalorder %s205, %s207
    %p214 = scmp.eq.s32.totalorder %s24, 1
    %p215 = por %p213, %p214
    %p216 = scmp.ne.s32.totalorder %s207, %s208
    %p217 = scmp.eq.s32.totalorder %s24, 0
    %p218 = por %p216, %p217
    %p219 = scmp.ne.s32.totalorder %s207, %s208
    %p220 = scmp.eq.s32.totalorder %s25, 1
    %p221 = por %p219, %p220
    %p223 = scmp.ne.s32.totalorder %s208, %s222
    %p224 = scmp.eq.s32.totalorder %s25, 0
    %p225 = por %p223, %p224
    %s227 = sadd.s32 %s226, 1
    %p230 = scmp.eq.s32.totalorder %s19, 1
    %p231 = scmp.ne.s32.totalorder %s226, %s228
    %p232 = scmp.eq.s32.totalorder %s19, 0
    %p233 = por %p231, %p232
    %p234 = scmp.ne.s32.totalorder %s226, %s228
    %p235 = scmp.eq.s32.totalorder %s24, 1
    %p236 = por %p234, %p235
    %p237 = scmp.ne.s32.totalorder %s228, %s229
    %p238 = scmp.eq.s32.totalorder %s24, 0
    %p239 = por %p237, %p238
    %p240 = scmp.ne.s32.totalorder %s228, %s229
    %p241 = scmp.eq.s32.totalorder %s25, 1
    %p242 = por %p240, %p241
    %p244 = scmp.ne.s32.totalorder %s229, %s243
    %p245 = scmp.eq.s32.totalorder %s25, 0
    %p246 = por %p244, %p245
    %s248 = sadd.s32 %s247, 1
    %p251 = scmp.eq.s32.totalorder %s19, 1
    %p252 = scmp.ne.s32.totalorder %s247, %s249
    %p253 = scmp.eq.s32.totalorder %s19, 0
    %p254 = por %p252, %p253
    %p255 = scmp.ne.s32.totalorder %s247, %s249
    %p256 = scmp.eq.s32.totalorder %s24, 1
    %p257 = por %p255, %p256
    %p258 = scmp.ne.s32.totalorder %s249, %s250
    %p259 = scmp.eq.s32.totalorder %s24, 0
    %p260 = por %p258, %p259
    %p261 = scmp.ne.s32.totalorder %s249, %s250
    %p262 = scmp.eq.s32.totalorder %s25, 1
    %p263 = por %p261, %p262
    %p265 = scmp.ne.s32.totalorder %s250, %s264
    %p266 = scmp.eq.s32.totalorder %s25, 0
    %p267 = por %p265, %p266
    %s269 = sadd.s32 %s268, 1
    %p272 = scmp.eq.s32.totalorder %s19, 1
    %p273 = scmp.ne.s32.totalorder %s268, %s270
    %p274 = scmp.eq.s32.totalorder %s19, 0
    %p275 = por %p273, %p274
    %p276 = scmp.ne.s32.totalorder %s268, %s270
    %p277 = scmp.eq.s32.totalorder %s24, 1
    %p278 = por %p276, %p277
    %p279 = scmp.ne.s32.totalorder %s270, %s271
    %p280 = scmp.eq.s32.totalorder %s24, 0
    %p281 = por %p279, %p280
    %p282 = scmp.ne.s32.totalorder %s270, %s271
    %p283 = scmp.eq.s32.totalorder %s25, 1
    %p284 = por %p282, %p283
    %p286 = scmp.ne.s32.totalorder %s271, %s285
    %p287 = scmp.eq.s32.totalorder %s25, 0
    %p288 = por %p286, %p287
    %s290 = sadd.s32 %s289, 1
    %p293 = scmp.eq.s32.totalorder %s19, 1
    %p294 = scmp.ne.s32.totalorder %s289, %s291
    %p295 = scmp.eq.s32.totalorder %s19, 0
    %p296 = por %p294, %p295
    %p297 = scmp.ne.s32.totalorder %s289, %s291
    %p298 = scmp.eq.s32.totalorder %s24, 1
    %p299 = por %p297, %p298
    %p300 = scmp.ne.s32.totalorder %s291, %s292
    %p301 = scmp.eq.s32.totalorder %s24, 0
    %p302 = por %p300, %p301
    %p303 = scmp.ne.s32.totalorder %s291, %s292
    %p304 = scmp.eq.s32.totalorder %s25, 1
    %p305 = por %p303, %p304
    %p307 = scmp.ne.s32.totalorder %s292, %s306
    %p308 = scmp.eq.s32.totalorder %s25, 0
    %p309 = por %p307, %p308
    %s310 = ssub.s32 %s19, %s26
    %p311 = scmp.eq.s32.totalorder %s310, 0
    %s313 = sadd.s32 %s312, 1
    %s314 = scalar_select %p311, %s312, %s313
    %p317 = pneg %p311
    %p318 = scmp.eq.s32.totalorder %s19, 1
    %p319 = por %p317, %p318
    %p320 = scmp.ne.s32.totalorder %s312, %s315
    %p321 = scmp.eq.s32.totalorder %s19, 0
    %p322 = por %p320, %p321
    %p323 = scmp.ne.s32.totalorder %s312, %s315
    %p324 = scmp.eq.s32.totalorder %s24, 1
    %p325 = por %p323, %p324
    %p326 = scmp.ne.s32.totalorder %s315, %s316
    %p327 = scmp.eq.s32.totalorder %s24, 0
    %p328 = por %p326, %p327
    %p329 = scmp.ne.s32.totalorder %s315, %s316
    %p330 = scmp.eq.s32.totalorder %s25, 1
    %p331 = por %p329, %p330
    %p333 = scmp.ne.s32.totalorder %s316, %s332
    %p334 = scmp.eq.s32.totalorder %s25, 0
    %p335 = por %p333, %p334
    %p336 = scmp.le.s32.totalorder 1, %s19
    %p337 = scmp.lt.s32.totalorder %s19, 3
    %p338 = pnand %p336, %p337
    %p339 = pneg %p338
    // Predicated region
    $region9: #{feature_merging_forward.2} parent=5 // pred_check
      _
    $region10: #{feature_merging_forward.2} parent=5 // pred_check_branch
      %341 = sbr.rel (%p338) target = $region12
    $region11: #{feature_merging_forward.2} parent=5 // pred_region
      %s342 = ssub.s32 %s19, 1
      // Predicated region
      $region13: #{feature_merging_forward.2} parent=11 // pred_check
        %p343 = pneg %p92
      $region14: #{feature_merging_forward.2} parent=11 // pred_check_branch
        %345 = sbr.rel (%p343) target = $region16
      $region15: #{feature_merging_forward.2} parent=11 // pred_region
        _
      $region16: #{feature_merging_forward.2} parent=11 // pred_fallthru
        _
      // Predicated region
      $region17: #{feature_merging_forward.2} parent=11 // pred_check
        %p346 = pneg %p113
      $region18: #{feature_merging_forward.2} parent=11 // pred_check_branch
        %348 = sbr.rel (%p346) target = $region20
      $region19: #{feature_merging_forward.2} parent=11 // pred_region
        _
      $region20: #{feature_merging_forward.2} parent=11 // pred_fallthru
        _
      // Predicated region
      $region21: #{feature_merging_forward.2} parent=11 // pred_check
        %p349 = pneg %p134
      $region22: #{feature_merging_forward.2} parent=11 // pred_check_branch
        %351 = sbr.rel (%p349) target = $region24
      $region23: #{feature_merging_forward.2} parent=11 // pred_region
        _
      $region24: #{feature_merging_forward.2} parent=11 // pred_fallthru
        _
      // Predicated region
      $region25: #{feature_merging_forward.2} parent=11 // pred_check
        %p352 = pneg %p155
      $region26: #{feature_merging_forward.2} parent=11 // pred_check_branch
        %354 = sbr.rel (%p352) target = $region28
      $region27: #{feature_merging_forward.2} parent=11 // pred_region
        _
      $region28: #{feature_merging_forward.2} parent=11 // pred_fallthru
        _
      // Predicated region
      $region29: #{feature_merging_forward.2} parent=11 // pred_check
        %p355 = pneg %p176
      $region30: #{feature_merging_forward.2} parent=11 // pred_check_branch
        %357 = sbr.rel (%p355) target = $region32
      $region31: #{feature_merging_forward.2} parent=11 // pred_region
        _
      $region32: #{feature_merging_forward.2} parent=11 // pred_fallthru
        _
      // Predicated region
      $region33: #{feature_merging_forward.2} parent=11 // pred_check
        %p358 = pneg %p197
      $region34: #{feature_merging_forward.2} parent=11 // pred_check_branch
        %360 = sbr.rel (%p358) target = $region36
      $region35: #{feature_merging_forward.2} parent=11 // pred_region
        _
      $region36: #{feature_merging_forward.2} parent=11 // pred_fallthru
        _
      // Predicated region
      $region37: #{feature_merging_forward.2} parent=11 // pred_check
        %p361 = pneg %p218
      $region38: #{feature_merging_forward.2} parent=11 // pred_check_branch
        %363 = sbr.rel (%p361) target = $region40
      $region39: #{feature_merging_forward.2} parent=11 // pred_region
        _
      $region40: #{feature_merging_forward.2} parent=11 // pred_fallthru
        _
      // Predicated region
      $region41: #{feature_merging_forward.2} parent=11 // pred_check
        %p364 = pneg %p239
      $region42: #{feature_merging_forward.2} parent=11 // pred_check_branch
        %366 = sbr.rel (%p364) target = $region44
      $region43: #{feature_merging_forward.2} parent=11 // pred_region
        _
      $region44: #{feature_merging_forward.2} parent=11 // pred_fallthru
        _
      // Predicated region
      $region45: #{feature_merging_forward.2} parent=11 // pred_check
        %p367 = pneg %p260
      $region46: #{feature_merging_forward.2} parent=11 // pred_check_branch
        %369 = sbr.rel (%p367) target = $region48
      $region47: #{feature_merging_forward.2} parent=11 // pred_region
        _
      $region48: #{feature_merging_forward.2} parent=11 // pred_fallthru
        _
      // Predicated region
      $region49: #{feature_merging_forward.2} parent=11 // pred_check
        %p370 = pneg %p281
      $region50: #{feature_merging_forward.2} parent=11 // pred_check_branch
        %372 = sbr.rel (%p370) target = $region52
      $region51: #{feature_merging_forward.2} parent=11 // pred_region
        _
      $region52: #{feature_merging_forward.2} parent=11 // pred_fallthru
        _
      // Predicated region
      $region53: #{feature_merging_forward.2} parent=11 // pred_check
        %p373 = pneg %p302
      $region54: #{feature_merging_forward.2} parent=11 // pred_check_branch
        %375 = sbr.rel (%p373) target = $region56
      $region55: #{feature_merging_forward.2} parent=11 // pred_region
        _
      $region56: #{feature_merging_forward.2} parent=11 // pred_fallthru
        _
    $region12: #{feature_merging_forward.2} parent=5 // pred_fallthru
      _
    %p376 = scmp.lt.s32.totalorder %s19, 2
    // Predicated region
    $region57: #{feature_merging_forward.2} parent=5 // pred_check
      %p377 = pneg %p376
    $region58: #{feature_merging_forward.2} parent=5 // pred_check_branch
      %379 = sbr.rel (%p377) target = $region60
    $region59: #{feature_merging_forward.2} parent=5 // pred_region
      // Predicated region
      $region61: #{feature_merging_forward.2} parent=59 // pred_check
        %p380 = pneg %p39
      $region62: #{feature_merging_forward.2} parent=59 // pred_check_branch
        %382 = sbr.rel (%p380) target = $region64
      $region63: #{feature_merging_forward.2} parent=59 // pred_region
        %p383 = scmp.lt.s32.totalorder %s19, 1
        %s384 = scalar_select %p383, %s19, 1
        %s385 = smul.addr %s384, 2
        %s386 = smul.addr %s385, 4
        %s387 = scalar_lea.vmem %s0, %s386
      $region64: #{feature_merging_forward.2} parent=59 // pred_fallthru
        _
      // Predicated region
      $region65: #{feature_merging_forward.2} parent=59 // pred_check
        %p388 = pneg %p65
      $region66: #{feature_merging_forward.2} parent=59 // pred_check_branch
        %390 = sbr.rel (%p388) target = $region68
      $region67: #{feature_merging_forward.2} parent=59 // pred_region
        %p391 = scmp.lt.s32.totalorder %s19, 1
        %s392 = scalar_select %p391, %s19, 1
        %s393 = smul.addr %s392, 2
        %s394 = smul.addr %s393, 4
        %s395 = scalar_lea.vmem %s1, %s394
      $region68: #{feature_merging_forward.2} parent=59 // pred_fallthru
        _
    $region60: #{feature_merging_forward.2} parent=5 // pred_fallthru
      _
    %p396 = scmp.le.s32.totalorder 1, %s19
    %p397 = scmp.lt.s32.totalorder %s19, 3
    %p398 = pnand %p396, %p397
    %p399 = pneg %p398
    // Predicated region
    $region69: #{feature_merging_forward.2} parent=5 // pred_check
      _
    $region70: #{feature_merging_forward.2} parent=5 // pred_check_branch
      %401 = sbr.rel (%p398) target = $region72
    $region71: #{feature_merging_forward.2} parent=5 // pred_region
      %s402 = ssub.s32 %s19, 1
      %p403 = scmp.lt.s32.totalorder %s24, 1
      %s404 = scalar_select %p403, %s24, 1
      %s405 = smul.addr %s404, 2
      %s406 = smul.addr %s405, 4
      %s407 = scalar_lea.vmem %s0, %s406
      %p408 = pneg %p45
      %p409 = pneg %p42
      %p410 = scmp.lt.s32.totalorder %s24, 1
      %s411 = scalar_select %p410, %s24, 1
      %s412 = smul.addr %s411, 2
      %s413 = smul.addr %s412, 4
      %s414 = scalar_lea.vmem %s1, %s413
      %p415 = pneg %p71
      %p416 = pneg %p68
      %p417 = pneg %p92
      %p418 = pneg %p89
      %p419 = pneg %p113
      %p420 = pneg %p110
      %p421 = pneg %p134
      %p422 = pneg %p131
      %p423 = pneg %p155
      %p424 = pneg %p152
      %p425 = pneg %p176
      %p426 = pneg %p173
      %p427 = pneg %p197
      %p428 = pneg %p194
      %p429 = pneg %p218
      %p430 = pneg %p215
      %p431 = pneg %p239
      %p432 = pneg %p236
      %p433 = pneg %p260
      %p434 = pneg %p257
      %p435 = pneg %p281
      %p436 = pneg %p278
      %p437 = pneg %p302
      %p438 = pneg %p299
      %p439 = pneg %p328
      %p440 = pneg %p325
      %p441 = scmp.lt.s32.totalorder %s24, 1
      %s442 = scalar_select %p441, %s24, 1
      %s443 = smul.addr %s442, 2
      %s444 = smul.addr %s443, 4
      %s445 = scalar_lea.vmem %s13, %s444
      %p446 = scmp.lt.s32.totalorder %s24, 1
      %s447 = scalar_select %p446, %s24, 1
      %s448 = smul.addr %s447, 2
      %s449 = smul.addr %s448, 4
      %s450 = scalar_lea.vmem %s0, %s449
      %p451 = scmp.lt.s32.totalorder %s24, 1
      %s452 = scalar_select %p451, %s24, 1
      %s453 = smul.addr %s452, 2
      %s454 = smul.addr %s453, 4
      %s455 = scalar_lea.vmem %s1, %s454
      %p456 = scmp.lt.s32.totalorder %s24, 1
      %s457 = scalar_select %p456, %s24, 1
      %s458 = smul.addr %s457, 2
      %s459 = smul.addr %s458, 4
      %s460 = scalar_lea.vmem %s13, %s459
      %v462 = vld [vmem:[%s2] sm:$0xff]
      %v463 = vld [vmem:[%s2 + $0x8] sm:$0xff]
      %v464 = vld [vmem:[%s2 + $0x10] sm:$0x1]
      %v465 = vld [vmem:[%s2 + $0x18] sm:$0x1]
      %v466 = vld [vmem:[%s450] sm:$0xff]
      %v467 = vld [vmem:[%s455] sm:$0xff]
      %v468 = vmax.f32 %v467, 0.0
      %v470 = vcombine.high %v468, %v468
      %471 = vrot.lane.b32.xlu0 %v470, 17
      %v472 = vpop.permute.xlu0 %471
      %474 = vrot.lane.b32.xlu0 %v468, 17
      %v475 = vpop.permute.xlu0 %474
      %vm476 = vcmask 138240
      %v477 = vsel %vm476, %v475, %v472
      %v480 = vsel %vm476, %v472, %v475
      %v481 = vlaneseq
      %v482 = vshrl.u32 %v481, 7
      %v483 = vsub.s32 0, %v482
      %v484 = vrot.slane %v462, %v483
      %v485 = vlaneseq
      %v486 = vshrl.u32 %v485, 7
      %v487 = vsub.s32 0, %v486
      %v488 = vrot.slane %v463, %v487
      %v489 = vmul.f32 %v480, %v484
      %v490 = vmul.f32 %v477, %v488
      %v491 = vld [vmem:[%s3] sm:$0x3]
      %v492 = vpack.c.bf16 %v489, %v489
      %v493 = vpack.c.bf16 %v490, %v490
      %494 = vrot.lane.b32.xlu0 %v470, 16
      %v495 = vpop.permute.xlu0 %494
      %497 = vrot.lane.b32.xlu0 %v468, 16
      %v498 = vpop.permute.xlu0 %497
      %vm499 = vcmask 130048
      %v500 = vsel %vm499, %v498, %v495
      %v503 = vsel %vm499, %v495, %v498
      %v504 = vlaneseq
      %v505 = vshrl.u32 %v504, 7
      %v506 = vsub.s32 1, %v505
      %v507 = vrot.slane %v462, %v506
      %v508 = vlaneseq
      %v509 = vshrl.u32 %v508, 7
      %v510 = vsub.s32 1, %v509
      %v511 = vrot.slane %v463, %v510
      %v512 = vmul.f32 %v503, %v507
      %v513 = vmul.f32 %v500, %v511
      %s514 = scalar_lea.vmem %s3, 2
      %v515 = vld [vmem:[%s514] sm:$0x3]
      %v516 = vpack.c.bf16 %v512, %v512
      %v517 = vpack.c.bf16 %v513, %v513
      %vm518 = vcmask 31744
      %v520 = vsel %vm518, %v515, 0
      %vm522 = vcmask 1041408
      %v524 = vsel %vm522, %v516, 0
      %v527 = vsel %vm522, %v517, 0
      %529 = vmatprep.subr.bf16.mxu0 0
      %530 = vmatpush1.bf16.msra.mxu0 0
      %531 = vmatprep.subr.bf16.mxu0 0
      %532 = vmatpush1.bf16.msra.mxu0 0
      %533 = vmatprep.subr.bf16.mxu0 0
      %534 = vmatpush1.bf16.msra.mxu0 0
      %535 = vmatprep.subr.bf16.mxu0 0
      %536 = vmatpush1.bf16.msra.mxu0 0
      %537 = vmatprep.subr.bf16.mxu0 0
      %538 = vmatpush1.bf16.msra.mxu0 0
      %539 = vmatprep.subr.bf16.mxu0 0
      %540 = vmatpush1.bf16.msra.mxu0 0
      %541 = vmatprep.subr.bf16.mxu0 0
      %542 = vmatpush1.bf16.msra.mxu0 0
      %543 = vmatprep.subr.bf16.mxu0 %v527
      %544 = vmatpush1.bf16.msra.mxu0 %v524
      %545 = vmatprep.subr.bf16.mxu0 0
      %546 = vmatpush2.bf16.msra.mxu0 0
      %547 = vmatprep.subr.bf16.mxu0 0
      %548 = vmatpush2.bf16.msra.mxu0 0
      %549 = vmatprep.subr.bf16.mxu0 0
      %550 = vmatpush2.bf16.msra.mxu0 0
      %551 = vmatprep.subr.bf16.mxu0 0
      %552 = vmatpush2.bf16.msra.mxu0 0
      %553 = vmatprep.subr.bf16.mxu0 0
      %554 = vmatpush2.bf16.msra.mxu0 0
      %555 = vmatprep.subr.bf16.mxu0 0
      %556 = vmatpush2.bf16.msra.mxu0 0
      %557 = vmatprep.subr.bf16.mxu0 0
      %558 = vmatpush2.bf16.msra.mxu0 0
      %559 = vmatprep.subr.bf16.mxu0 0
      %560 = vmatpush2.bf16.msra.mxu0 0
      %561 = vmatprep.mubr.bf16.mxu0 0
      %562 = vmatmul.mubr.bf16.gmra.mxu0 %v520
      %v563 = vpop.f32.mrf.mxu0
      %v564 = vadd.f32 0.0, %v563
      %v565 = vpop.f32.mrf.mxu0
      %v566 = vadd.f32 0.0, %v565
      %v567 = vpop.f32.mrf.mxu0
      %v568 = vpop.f32.mrf.mxu0
      %569 = vdwg.mxu0
      %v571 = vsel %vm518, %v491, 0
      %v574 = vsel %vm522, %v492, 0
      %v577 = vsel %vm522, %v493, 0
      %579 = vmatprep.subr.bf16.mxu0 0
      %580 = vmatpush1.bf16.msra.mxu0 0
      %581 = vmatprep.subr.bf16.mxu0 0
      %582 = vmatpush1.bf16.msra.mxu0 0
      %583 = vmatprep.subr.bf16.mxu0 0
      %584 = vmatpush1.bf16.msra.mxu0 0
      %585 = vmatprep.subr.bf16.mxu0 0
      %586 = vmatpush1.bf16.msra.mxu0 0
      %587 = vmatprep.subr.bf16.mxu0 0
      %588 = vmatpush1.bf16.msra.mxu0 0
      %589 = vmatprep.subr.bf16.mxu0 0
      %590 = vmatpush1.bf16.msra.mxu0 0
      %591 = vmatprep.subr.bf16.mxu0 0
      %592 = vmatpush1.bf16.msra.mxu0 0
      %593 = vmatprep.subr.bf16.mxu0 %v577
      %594 = vmatpush1.bf16.msra.mxu0 %v574
      %595 = vmatprep.subr.bf16.mxu0 0
      %596 = vmatpush2.bf16.msra.mxu0 0
      %597 = vmatprep.subr.bf16.mxu0 0
      %598 = vmatpush2.bf16.msra.mxu0 0
      %599 = vmatprep.subr.bf16.mxu0 0
      %600 = vmatpush2.bf16.msra.mxu0 0
      %601 = vmatprep.subr.bf16.mxu0 0
      %602 = vmatpush2.bf16.msra.mxu0 0
      %603 = vmatprep.subr.bf16.mxu0 0
      %604 = vmatpush2.bf16.msra.mxu0 0
      %605 = vmatprep.subr.bf16.mxu0 0
      %606 = vmatpush2.bf16.msra.mxu0 0
      %607 = vmatprep.subr.bf16.mxu0 0
      %608 = vmatpush2.bf16.msra.mxu0 0
      %609 = vmatprep.subr.bf16.mxu0 0
      %610 = vmatpush2.bf16.msra.mxu0 0
      %611 = vmatprep.mubr.bf16.mxu0 0
      %612 = vmatmul.mubr.bf16.gmra.mxu0 %v571
      %v613 = vpop.f32.mrf.mxu0
      %v614 = vadd.f32 %v564, %v613
      %v615 = vpop.f32.mrf.mxu0
      %v616 = vadd.f32 %v566, %v615
      %v617 = vpop.f32.mrf.mxu0
      %v618 = vpop.f32.mrf.mxu0
      %619 = vdwg.mxu0
      %620 = vrot.lane.b32.xlu0 %v470, 15
      %v621 = vpop.permute.xlu0 %620
      %623 = vrot.lane.b32.xlu0 %v468, 15
      %v624 = vpop.permute.xlu0 %623
      %vm625 = vcmask 121856
      %v626 = vsel %vm625, %v624, %v621
      %v629 = vsel %vm625, %v621, %v624
      %v630 = vlaneseq
      %v631 = vshrl.u32 %v630, 7
      %v632 = vsub.s32 2, %v631
      %v633 = vrot.slane %v462, %v632
      %v634 = vlaneseq
      %v635 = vshrl.u32 %v634, 7
      %v636 = vsub.s32 2, %v635
      %v637 = vrot.slane %v463, %v636
      %v638 = vmul.f32 %v629, %v633
      %v639 = vmul.f32 %v626, %v637
      %s640 = scalar_lea.vmem %s3, 4
      %v641 = vld [vmem:[%s640] sm:$0x3]
      %v642 = vpack.c.bf16 %v638, %v638
      %v643 = vpack.c.bf16 %v639, %v639
      %v645 = vsel %vm518, %v641, 0
      %v648 = vsel %vm522, %v642, 0
      %v651 = vsel %vm522, %v643, 0
      %653 = vmatprep.subr.bf16.mxu0 0
      %654 = vmatpush1.bf16.msra.mxu0 0
      %655 = vmatprep.subr.bf16.mxu0 0
      %656 = vmatpush1.bf16.msra.mxu0 0
      %657 = vmatprep.subr.bf16.mxu0 0
      %658 = vmatpush1.bf16.msra.mxu0 0
      %659 = vmatprep.subr.bf16.mxu0 0
      %660 = vmatpush1.bf16.msra.mxu0 0
      %661 = vmatprep.subr.bf16.mxu0 0
      %662 = vmatpush1.bf16.msra.mxu0 0
      %663 = vmatprep.subr.bf16.mxu0 0
      %664 = vmatpush1.bf16.msra.mxu0 0
      %665 = vmatprep.subr.bf16.mxu0 0
      %666 = vmatpush1.bf16.msra.mxu0 0
      %667 = vmatprep.subr.bf16.mxu0 %v651
      %668 = vmatpush1.bf16.msra.mxu0 %v648
      %669 = vmatprep.subr.bf16.mxu0 0
      %670 = vmatpush2.bf16.msra.mxu0 0
      %671 = vmatprep.subr.bf16.mxu0 0
      %672 = vmatpush2.bf16.msra.mxu0 0
      %673 = vmatprep.subr.bf16.mxu0 0
      %674 = vmatpush2.bf16.msra.mxu0 0
      %675 = vmatprep.subr.bf16.mxu0 0
      %676 = vmatpush2.bf16.msra.mxu0 0
      %677 = vmatprep.subr.bf16.mxu0 0
      %678 = vmatpush2.bf16.msra.mxu0 0
      %679 = vmatprep.subr.bf16.mxu0 0
      %680 = vmatpush2.bf16.msra.mxu0 0
      %681 = vmatprep.subr.bf16.mxu0 0
      %682 = vmatpush2.bf16.msra.mxu0 0
      %683 = vmatprep.subr.bf16.mxu0 0
      %684 = vmatpush2.bf16.msra.mxu0 0
      %685 = vmatprep.mubr.bf16.mxu0 0
      %686 = vmatmul.mubr.bf16.gmra.mxu0 %v645
      %v687 = vpop.f32.mrf.mxu0
      %v688 = vadd.f32 0.0, %v687
      %v689 = vpop.f32.mrf.mxu0
      %v690 = vadd.f32 0.0, %v689
      %v691 = vpop.f32.mrf.mxu0
      %v692 = vpop.f32.mrf.mxu0
      %693 = vdwg.mxu0
      %v694 = vadd.f32 %v614, %v688
      %v695 = vadd.f32 %v616, %v690
      %696 = vrot.lane.b32.xlu0 %v470, 1
      %v697 = vpop.permute.xlu0 %696
      %699 = vrot.lane.b32.xlu0 %v468, 1
      %v700 = vpop.permute.xlu0 %699
      %vm701 = vcmask 7168
      %v702 = vsel %vm701, %v700, %v697
      %v705 = vsel %vm701, %v697, %v700
      %v706 = vlaneseq
      %v707 = vshrl.u32 %v706, 7
      %v708 = vsub.s32 3, %v707
      %v709 = vrot.slane %v462, %v708
      %v710 = vlaneseq
      %v711 = vshrl.u32 %v710, 7
      %v712 = vsub.s32 3, %v711
      %v713 = vrot.slane %v463, %v712
      %v714 = vmul.f32 %v705, %v709
      %v715 = vmul.f32 %v702, %v713
      %s716 = scalar_lea.vmem %s3, 6
      %v717 = vld [vmem:[%s716] sm:$0x3]
      %v718 = vpack.c.bf16 %v714, %v714
      %v719 = vpack.c.bf16 %v715, %v715
      %v721 = vsel %vm518, %v717, 0
      %v724 = vsel %vm522, %v718, 0
      %v727 = vsel %vm522, %v719, 0
      %729 = vmatprep.subr.bf16.mxu0 0
      %730 = vmatpush1.bf16.msra.mxu0 0
      %731 = vmatprep.subr.bf16.mxu0 0
      %732 = vmatpush1.bf16.msra.mxu0 0
      %733 = vmatprep.subr.bf16.mxu0 0
      %734 = vmatpush1.bf16.msra.mxu0 0
      %735 = vmatprep.subr.bf16.mxu0 0
      %736 = vmatpush1.bf16.msra.mxu0 0
      %737 = vmatprep.subr.bf16.mxu0 0
      %738 = vmatpush1.bf16.msra.mxu0 0
      %739 = vmatprep.subr.bf16.mxu0 0
      %740 = vmatpush1.bf16.msra.mxu0 0
      %741 = vmatprep.subr.bf16.mxu0 0
      %742 = vmatpush1.bf16.msra.mxu0 0
      %743 = vmatprep.subr.bf16.mxu0 %v727
      %744 = vmatpush1.bf16.msra.mxu0 %v724
      %745 = vmatprep.subr.bf16.mxu0 0
      %746 = vmatpush2.bf16.msra.mxu0 0
      %747 = vmatprep.subr.bf16.mxu0 0
      %748 = vmatpush2.bf16.msra.mxu0 0
      %749 = vmatprep.subr.bf16.mxu0 0
      %750 = vmatpush2.bf16.msra.mxu0 0
      %751 = vmatprep.subr.bf16.mxu0 0
      %752 = vmatpush2.bf16.msra.mxu0 0
      %753 = vmatprep.subr.bf16.mxu0 0
      %754 = vmatpush2.bf16.msra.mxu0 0
      %755 = vmatprep.subr.bf16.mxu0 0
      %756 = vmatpush2.bf16.msra.mxu0 0
      %757 = vmatprep.subr.bf16.mxu0 0
      %758 = vmatpush2.bf16.msra.mxu0 0
      %759 = vmatprep.subr.bf16.mxu0 0
      %760 = vmatpush2.bf16.msra.mxu0 0
      %761 = vmatprep.mubr.bf16.mxu0 0
      %762 = vmatmul.mubr.bf16.gmra.mxu0 %v721
      %v763 = vpop.f32.mrf.mxu0
      %v764 = vadd.f32 0.0, %v763
      %v765 = vpop.f32.mrf.mxu0
      %v766 = vadd.f32 0.0, %v765
      %v767 = vpop.f32.mrf.mxu0
      %v768 = vpop.f32.mrf.mxu0
      %769 = vdwg.mxu0
      %v770 = vadd.f32 %v694, %v764
      %v771 = vadd.f32 %v695, %v766
      %s772 = scalar_lea.vmem %s3, 8
      %v773 = vld [vmem:[%s772] sm:$0x3]
      %v775 = vpack.c.bf16 %v468, %v468
      %v776 = vpack.c.bf16 %v470, %v470
      %v778 = vsel %vm518, %v773, 0
      %v781 = vsel %vm522, %v775, 0
      %v784 = vsel %vm522, %v776, 0
      %786 = vmatprep.subr.bf16.mxu0 0
      %787 = vmatpush1.bf16.msra.mxu0 0
      %788 = vmatprep.subr.bf16.mxu0 0
      %789 = vmatpush1.bf16.msra.mxu0 0
      %790 = vmatprep.subr.bf16.mxu0 0
      %791 = vmatpush1.bf16.msra.mxu0 0
      %792 = vmatprep.subr.bf16.mxu0 0
      %793 = vmatpush1.bf16.msra.mxu0 0
      %794 = vmatprep.subr.bf16.mxu0 0
      %795 = vmatpush1.bf16.msra.mxu0 0
      %796 = vmatprep.subr.bf16.mxu0 0
      %797 = vmatpush1.bf16.msra.mxu0 0
      %798 = vmatprep.subr.bf16.mxu0 0
      %799 = vmatpush1.bf16.msra.mxu0 0
      %800 = vmatprep.subr.bf16.mxu0 %v784
      %801 = vmatpush1.bf16.msra.mxu0 %v781
      %802 = vmatprep.subr.bf16.mxu0 0
      %803 = vmatpush2.bf16.msra.mxu0 0
      %804 = vmatprep.subr.bf16.mxu0 0
      %805 = vmatpush2.bf16.msra.mxu0 0
      %806 = vmatprep.subr.bf16.mxu0 0
      %807 = vmatpush2.bf16.msra.mxu0 0
      %808 = vmatprep.subr.bf16.mxu0 0
      %809 = vmatpush2.bf16.msra.mxu0 0
      %810 = vmatprep.subr.bf16.mxu0 0
      %811 = vmatpush2.bf16.msra.mxu0 0
      %812 = vmatprep.subr.bf16.mxu0 0
      %813 = vmatpush2.bf16.msra.mxu0 0
      %814 = vmatprep.subr.bf16.mxu0 0
      %815 = vmatpush2.bf16.msra.mxu0 0
      %816 = vmatprep.subr.bf16.mxu0 0
      %817 = vmatpush2.bf16.msra.mxu0 0
      %818 = vmatprep.mubr.bf16.mxu0 0
      %819 = vmatmul.mubr.bf16.gmra.mxu0 %v778
      %v820 = vpop.f32.mrf.mxu0
      %v821 = vadd.f32 0.0, %v820
      %v822 = vpop.f32.mrf.mxu0
      %v823 = vadd.f32 0.0, %v822
      %v824 = vpop.f32.mrf.mxu0
      %v825 = vpop.f32.mrf.mxu0
      %826 = vdwg.mxu0
      %v827 = vadd.f32 %v770, %v821
      %v828 = vadd.f32 %v771, %v823
      %829 = vrot.lane.b32.xlu0 %v468, 127
      %v830 = vpop.permute.xlu0 %829
      %831 = vrot.lane.b32.xlu0 %v470, 127
      %v832 = vpop.permute.xlu0 %831
      %vm833 = vcmask 1039360
      %v834 = vsel %vm833, %v830, %v832
      %v838 = vsel %vm833, %v832, %v830
      %v839 = vlaneseq
      %v840 = vshrl.u32 %v839, 7
      %v841 = vsub.s32 5, %v840
      %v842 = vrot.slane %v462, %v841
      %v843 = vlaneseq
      %v844 = vshrl.u32 %v843, 7
      %v845 = vsub.s32 5, %v844
      %v846 = vrot.slane %v463, %v845
      %v847 = vmul.f32 %v834, %v842
      %v848 = vmul.f32 %v838, %v846
      %s849 = scalar_lea.vmem %s3, 10
      %v850 = vld [vmem:[%s849] sm:$0x3]
      %v851 = vpack.c.bf16 %v847, %v847
      %v852 = vpack.c.bf16 %v848, %v848
      %v854 = vsel %vm518, %v850, 0
      %v857 = vsel %vm522, %v851, 0
      %v860 = vsel %vm522, %v852, 0
      %862 = vmatprep.subr.bf16.mxu0 0
      %863 = vmatpush1.bf16.msra.mxu0 0
      %864 = vmatprep.subr.bf16.mxu0 0
      %865 = vmatpush1.bf16.msra.mxu0 0
      %866 = vmatprep.subr.bf16.mxu0 0
      %867 = vmatpush1.bf16.msra.mxu0 0
      %868 = vmatprep.subr.bf16.mxu0 0
      %869 = vmatpush1.bf16.msra.mxu0 0
      %870 = vmatprep.subr.bf16.mxu0 0
      %871 = vmatpush1.bf16.msra.mxu0 0
      %872 = vmatprep.subr.bf16.mxu0 0
      %873 = vmatpush1.bf16.msra.mxu0 0
      %874 = vmatprep.subr.bf16.mxu0 0
      %875 = vmatpush1.bf16.msra.mxu0 0
      %876 = vmatprep.subr.bf16.mxu0 %v860
      %877 = vmatpush1.bf16.msra.mxu0 %v857
      %878 = vmatprep.subr.bf16.mxu0 0
      %879 = vmatpush2.bf16.msra.mxu0 0
      %880 = vmatprep.subr.bf16.mxu0 0
      %881 = vmatpush2.bf16.msra.mxu0 0
      %882 = vmatprep.subr.bf16.mxu0 0
      %883 = vmatpush2.bf16.msra.mxu0 0
      %884 = vmatprep.subr.bf16.mxu0 0
      %885 = vmatpush2.bf16.msra.mxu0 0
      %886 = vmatprep.subr.bf16.mxu0 0
      %887 = vmatpush2.bf16.msra.mxu0 0
      %888 = vmatprep.subr.bf16.mxu0 0
      %889 = vmatpush2.bf16.msra.mxu0 0
      %890 = vmatprep.subr.bf16.mxu0 0
      %891 = vmatpush2.bf16.msra.mxu0 0
      %892 = vmatprep.subr.bf16.mxu0 0
      %893 = vmatpush2.bf16.msra.mxu0 0
      %894 = vmatprep.mubr.bf16.mxu0 0
      %895 = vmatmul.mubr.bf16.gmra.mxu0 %v854
      %v896 = vpop.f32.mrf.mxu0
      %v897 = vadd.f32 0.0, %v896
      %v898 = vpop.f32.mrf.mxu0
      %v899 = vadd.f32 0.0, %v898
      %v900 = vpop.f32.mrf.mxu0
      %v901 = vpop.f32.mrf.mxu0
      %902 = vdwg.mxu0
      %v903 = vadd.f32 %v827, %v897
      %v904 = vadd.f32 %v828, %v899
      %905 = vrot.lane.b32.xlu0 %v468, 113
      %v906 = vpop.permute.xlu0 %905
      %907 = vrot.lane.b32.xlu0 %v470, 113
      %v908 = vpop.permute.xlu0 %907
      %vm909 = vcmask 924672
      %v910 = vsel %vm909, %v906, %v908
      %v914 = vsel %vm909, %v908, %v906
      %v915 = vlaneseq
      %v916 = vshrl.u32 %v915, 7
      %v917 = vsub.s32 6, %v916
      %v918 = vrot.slane %v462, %v917
      %v919 = vlaneseq
      %v920 = vshrl.u32 %v919, 7
      %v921 = vsub.s32 6, %v920
      %v922 = vrot.slane %v463, %v921
      %v923 = vmul.f32 %v910, %v918
      %v924 = vmul.f32 %v914, %v922
      %s925 = scalar_lea.vmem %s3, 12
      %v926 = vld [vmem:[%s925] sm:$0x3]
      %v927 = vpack.c.bf16 %v923, %v923
      %v928 = vpack.c.bf16 %v924, %v924
      %v930 = vsel %vm518, %v926, 0
      %v933 = vsel %vm522, %v927, 0
      %v936 = vsel %vm522, %v928, 0
      %938 = vmatprep.subr.bf16.mxu0 0
      %939 = vmatpush1.bf16.msra.mxu0 0
      %940 = vmatprep.subr.bf16.mxu0 0
      %941 = vmatpush1.bf16.msra.mxu0 0
      %942 = vmatprep.subr.bf16.mxu0 0
      %943 = vmatpush1.bf16.msra.mxu0 0
      %944 = vmatprep.subr.bf16.mxu0 0
      %945 = vmatpush1.bf16.msra.mxu0 0
      %946 = vmatprep.subr.bf16.mxu0 0
      %947 = vmatpush1.bf16.msra.mxu0 0
      %948 = vmatprep.subr.bf16.mxu0 0
      %949 = vmatpush1.bf16.msra.mxu0 0
      %950 = vmatprep.subr.bf16.mxu0 0
      %951 = vmatpush1.bf16.msra.mxu0 0
      %952 = vmatprep.subr.bf16.mxu0 %v936
      %953 = vmatpush1.bf16.msra.mxu0 %v933
      %954 = vmatprep.subr.bf16.mxu0 0
      %955 = vmatpush2.bf16.msra.mxu0 0
      %956 = vmatprep.subr.bf16.mxu0 0
      %957 = vmatpush2.bf16.msra.mxu0 0
      %958 = vmatprep.subr.bf16.mxu0 0
      %959 = vmatpush2.bf16.msra.mxu0 0
      %960 = vmatprep.subr.bf16.mxu0 0
      %961 = vmatpush2.bf16.msra.mxu0 0
      %962 = vmatprep.subr.bf16.mxu0 0
      %963 = vmatpush2.bf16.msra.mxu0 0
      %964 = vmatprep.subr.bf16.mxu0 0
      %965 = vmatpush2.bf16.msra.mxu0 0
      %966 = vmatprep.subr.bf16.mxu0 0
      %967 = vmatpush2.bf16.msra.mxu0 0
      %968 = vmatprep.subr.bf16.mxu0 0
      %969 = vmatpush2.bf16.msra.mxu0 0
      %970 = vmatprep.mubr.bf16.mxu0 0
      %971 = vmatmul.mubr.bf16.gmra.mxu0 %v930
      %v972 = vpop.f32.mrf.mxu0
      %v973 = vadd.f32 0.0, %v972
      %v974 = vpop.f32.mrf.mxu0
      %v975 = vadd.f32 0.0, %v974
      %v976 = vpop.f32.mrf.mxu0
      %v977 = vpop.f32.mrf.mxu0
      %978 = vdwg.mxu0
      %v979 = vadd.f32 %v903, %v973
      %v980 = vadd.f32 %v904, %v975
      %981 = vrot.lane.b32.xlu0 %v468, 112
      %v982 = vpop.permute.xlu0 %981
      %983 = vrot.lane.b32.xlu0 %v470, 112
      %v984 = vpop.permute.xlu0 %983
      %vm985 = vcmask 916480
      %v986 = vsel %vm985, %v982, %v984
      %v990 = vsel %vm985, %v984, %v982
      %v991 = vlaneseq
      %v992 = vshrl.u32 %v991, 7
      %v993 = vsub.s32 7, %v992
      %v994 = vrot.slane %v462, %v993
      %v995 = vlaneseq
      %v996 = vshrl.u32 %v995, 7
      %v997 = vsub.s32 7, %v996
      %v998 = vrot.slane %v463, %v997
      %v999 = vmul.f32 %v986, %v994
      %v1000 = vmul.f32 %v990, %v998
      %s1001 = scalar_lea.vmem %s3, 14
      %v1002 = vld [vmem:[%s1001] sm:$0x3]
      %v1003 = vpack.c.bf16 %v999, %v999
      %v1004 = vpack.c.bf16 %v1000, %v1000
      %v1006 = vsel %vm518, %v1002, 0
      %v1009 = vsel %vm522, %v1003, 0
      %v1012 = vsel %vm522, %v1004, 0
      %1014 = vmatprep.subr.bf16.mxu0 0
      %1015 = vmatpush1.bf16.msra.mxu0 0
      %1016 = vmatprep.subr.bf16.mxu0 0
      %1017 = vmatpush1.bf16.msra.mxu0 0
      %1018 = vmatprep.subr.bf16.mxu0 0
      %1019 = vmatpush1.bf16.msra.mxu0 0
      %1020 = vmatprep.subr.bf16.mxu0 0
      %1021 = vmatpush1.bf16.msra.mxu0 0
      %1022 = vmatprep.subr.bf16.mxu0 0
      %1023 = vmatpush1.bf16.msra.mxu0 0
      %1024 = vmatprep.subr.bf16.mxu0 0
      %1025 = vmatpush1.bf16.msra.mxu0 0
      %1026 = vmatprep.subr.bf16.mxu0 0
      %1027 = vmatpush1.bf16.msra.mxu0 0
      %1028 = vmatprep.subr.bf16.mxu0 %v1012
      %1029 = vmatpush1.bf16.msra.mxu0 %v1009
      %1030 = vmatprep.subr.bf16.mxu0 0
      %1031 = vmatpush2.bf16.msra.mxu0 0
      %1032 = vmatprep.subr.bf16.mxu0 0
      %1033 = vmatpush2.bf16.msra.mxu0 0
      %1034 = vmatprep.subr.bf16.mxu0 0
      %1035 = vmatpush2.bf16.msra.mxu0 0
      %1036 = vmatprep.subr.bf16.mxu0 0
      %1037 = vmatpush2.bf16.msra.mxu0 0
      %1038 = vmatprep.subr.bf16.mxu0 0
      %1039 = vmatpush2.bf16.msra.mxu0 0
      %1040 = vmatprep.subr.bf16.mxu0 0
      %1041 = vmatpush2.bf16.msra.mxu0 0
      %1042 = vmatprep.subr.bf16.mxu0 0
      %1043 = vmatpush2.bf16.msra.mxu0 0
      %1044 = vmatprep.subr.bf16.mxu0 0
      %1045 = vmatpush2.bf16.msra.mxu0 0
      %1046 = vmatprep.mubr.bf16.mxu0 0
      %1047 = vmatmul.mubr.bf16.gmra.mxu0 %v1006
      %v1048 = vpop.f32.mrf.mxu0
      %v1049 = vadd.f32 0.0, %v1048
      %v1050 = vpop.f32.mrf.mxu0
      %v1051 = vadd.f32 0.0, %v1050
      %v1052 = vpop.f32.mrf.mxu0
      %v1053 = vpop.f32.mrf.mxu0
      %1054 = vdwg.mxu0
      %v1055 = vadd.f32 %v979, %v1049
      %v1056 = vadd.f32 %v980, %v1051
      %1057 = vrot.lane.b32.xlu0 %v468, 111
      %v1058 = vpop.permute.xlu0 %1057
      %1059 = vrot.lane.b32.xlu0 %v470, 111
      %v1060 = vpop.permute.xlu0 %1059
      %vm1061 = vcmask 908288
      %v1062 = vsel %vm1061, %v1058, %v1060
      %v1066 = vsel %vm1061, %v1060, %v1058
      %v1067 = vlaneseq
      %v1068 = vshrl.u32 %v1067, 7
      %v1069 = vsub.s32 0, %v1068
      %v1070 = vrot.slane %v464, %v1069
      %v1071 = vlaneseq
      %v1072 = vshrl.u32 %v1071, 7
      %v1073 = vsub.s32 0, %v1072
      %v1074 = vrot.slane %v465, %v1073
      %v1075 = vmul.f32 %v1062, %v1070
      %v1076 = vmul.f32 %v1066, %v1074
      %s1077 = scalar_lea.vmem %s3, 16
      %v1078 = vld [vmem:[%s1077] sm:$0x3]
      %v1079 = vpack.c.bf16 %v1075, %v1075
      %v1080 = vpack.c.bf16 %v1076, %v1076
      %v1082 = vsel %vm518, %v1078, 0
      %v1085 = vsel %vm522, %v1079, 0
      %v1088 = vsel %vm522, %v1080, 0
      %1090 = vmatprep.subr.bf16.mxu0 0
      %1091 = vmatpush1.bf16.msra.mxu0 0
      %1092 = vmatprep.subr.bf16.mxu0 0
      %1093 = vmatpush1.bf16.msra.mxu0 0
      %1094 = vmatprep.subr.bf16.mxu0 0
      %1095 = vmatpush1.bf16.msra.mxu0 0
      %1096 = vmatprep.subr.bf16.mxu0 0
      %1097 = vmatpush1.bf16.msra.mxu0 0
      %1098 = vmatprep.subr.bf16.mxu0 0
      %1099 = vmatpush1.bf16.msra.mxu0 0
      %1100 = vmatprep.subr.bf16.mxu0 0
      %1101 = vmatpush1.bf16.msra.mxu0 0
      %1102 = vmatprep.subr.bf16.mxu0 0
      %1103 = vmatpush1.bf16.msra.mxu0 0
      %1104 = vmatprep.subr.bf16.mxu0 %v1088
      %1105 = vmatpush1.bf16.msra.mxu0 %v1085
      %1106 = vmatprep.subr.bf16.mxu0 0
      %1107 = vmatpush2.bf16.msra.mxu0 0
      %1108 = vmatprep.subr.bf16.mxu0 0
      %1109 = vmatpush2.bf16.msra.mxu0 0
      %1110 = vmatprep.subr.bf16.mxu0 0
      %1111 = vmatpush2.bf16.msra.mxu0 0
      %1112 = vmatprep.subr.bf16.mxu0 0
      %1113 = vmatpush2.bf16.msra.mxu0 0
      %1114 = vmatprep.subr.bf16.mxu0 0
      %1115 = vmatpush2.bf16.msra.mxu0 0
      %1116 = vmatprep.subr.bf16.mxu0 0
      %1117 = vmatpush2.bf16.msra.mxu0 0
      %1118 = vmatprep.subr.bf16.mxu0 0
      %1119 = vmatpush2.bf16.msra.mxu0 0
      %1120 = vmatprep.subr.bf16.mxu0 0
      %1121 = vmatpush2.bf16.msra.mxu0 0
      %1122 = vmatprep.mubr.bf16.mxu0 0
      %1123 = vmatmul.mubr.bf16.gmra.mxu0 %v1082
      %v1124 = vpop.f32.mrf.mxu0
      %v1125 = vadd.f32 0.0, %v1124
      %v1126 = vpop.f32.mrf.mxu0
      %v1127 = vadd.f32 0.0, %v1126
      %v1128 = vpop.f32.mrf.mxu0
      %v1129 = vpop.f32.mrf.mxu0
      %1130 = vdwg.mxu0
      %v1131 = vadd.f32 %v1055, %v1125
      %v1132 = vadd.f32 %v1056, %v1127
      %v1133 = vld [vmem:[%s4] sm:$0xf]
      %1135 = vset.pattern.permute.xlu0 0
      %1136 = vperm.xlu0 %1135, %v1133
      %v1137 = vpop.permute.xlu0 %1136
      %v1139 = vadd.f32 %v1131, %v1137
      %v1140 = vadd.f32 %v1132, %v1137
      %v1141 = vmax.f32 %v1139, 0.0
      %v1142 = vmax.f32 %v1140, 0.0
      %1144 = vrot.lane.b32.xlu0 %v1142, 17
      %v1145 = vpop.permute.xlu0 %1144
      %1148 = vrot.lane.b32.xlu0 %v1141, 17
      %v1149 = vpop.permute.xlu0 %1148
      %v1150 = vsel %vm476, %v1149, %v1145
      %v1153 = vsel %vm476, %v1145, %v1149
      %v1154 = vmul.f32 %v1153, %v484
      %v1155 = vmul.f32 %v1150, %v488
      %v1156 = vld [vmem:[%s5] sm:$0x3]
      %v1157 = vpack.c.bf16 %v1154, %v1154
      %v1158 = vpack.c.bf16 %v1155, %v1155
      %1159 = vrot.lane.b32.xlu0 %v1142, 16
      %v1160 = vpop.permute.xlu0 %1159
      %1162 = vrot.lane.b32.xlu0 %v1141, 16
      %v1163 = vpop.permute.xlu0 %1162
      %v1164 = vsel %vm499, %v1163, %v1160
      %v1167 = vsel %vm499, %v1160, %v1163
      %v1168 = vmul.f32 %v1167, %v507
      %v1169 = vmul.f32 %v1164, %v511
      %s1170 = scalar_lea.vmem %s5, 2
      %v1171 = vld [vmem:[%s1170] sm:$0x3]
      %v1172 = vpack.c.bf16 %v1168, %v1168
      %v1173 = vpack.c.bf16 %v1169, %v1169
      %v1175 = vsel %vm518, %v1171, 0
      %v1178 = vsel %vm522, %v1172, 0
      %v1181 = vsel %vm522, %v1173, 0
      %1183 = vmatprep.subr.bf16.mxu0 0
      %1184 = vmatpush1.bf16.msra.mxu0 0
      %1185 = vmatprep.subr.bf16.mxu0 0
      %1186 = vmatpush1.bf16.msra.mxu0 0
      %1187 = vmatprep.subr.bf16.mxu0 0
      %1188 = vmatpush1.bf16.msra.mxu0 0
      %1189 = vmatprep.subr.bf16.mxu0 0
      %1190 = vmatpush1.bf16.msra.mxu0 0
      %1191 = vmatprep.subr.bf16.mxu0 0
      %1192 = vmatpush1.bf16.msra.mxu0 0
      %1193 = vmatprep.subr.bf16.mxu0 0
      %1194 = vmatpush1.bf16.msra.mxu0 0
      %1195 = vmatprep.subr.bf16.mxu0 0
      %1196 = vmatpush1.bf16.msra.mxu0 0
      %1197 = vmatprep.subr.bf16.mxu0 %v1181
      %1198 = vmatpush1.bf16.msra.mxu0 %v1178
      %1199 = vmatprep.subr.bf16.mxu0 0
      %1200 = vmatpush2.bf16.msra.mxu0 0
      %1201 = vmatprep.subr.bf16.mxu0 0
      %1202 = vmatpush2.bf16.msra.mxu0 0
      %1203 = vmatprep.subr.bf16.mxu0 0
      %1204 = vmatpush2.bf16.msra.mxu0 0
      %1205 = vmatprep.subr.bf16.mxu0 0
      %1206 = vmatpush2.bf16.msra.mxu0 0
      %1207 = vmatprep.subr.bf16.mxu0 0
      %1208 = vmatpush2.bf16.msra.mxu0 0
      %1209 = vmatprep.subr.bf16.mxu0 0
      %1210 = vmatpush2.bf16.msra.mxu0 0
      %1211 = vmatprep.subr.bf16.mxu0 0
      %1212 = vmatpush2.bf16.msra.mxu0 0
      %1213 = vmatprep.subr.bf16.mxu0 0
      %1214 = vmatpush2.bf16.msra.mxu0 0
      %1215 = vmatprep.mubr.bf16.mxu0 0
      %1216 = vmatmul.mubr.bf16.gmra.mxu0 %v1175
      %v1217 = vpop.f32.mrf.mxu0
      %v1218 = vadd.f32 0.0, %v1217
      %v1219 = vpop.f32.mrf.mxu0
      %v1220 = vadd.f32 0.0, %v1219
      %v1221 = vpop.f32.mrf.mxu0
      %v1222 = vpop.f32.mrf.mxu0
      %1223 = vdwg.mxu0
      %v1225 = vsel %vm518, %v1156, 0
      %v1228 = vsel %vm522, %v1157, 0
      %v1231 = vsel %vm522, %v1158, 0
      %1233 = vmatprep.subr.bf16.mxu0 0
      %1234 = vmatpush1.bf16.msra.mxu0 0
      %1235 = vmatprep.subr.bf16.mxu0 0
      %1236 = vmatpush1.bf16.msra.mxu0 0
      %1237 = vmatprep.subr.bf16.mxu0 0
      %1238 = vmatpush1.bf16.msra.mxu0 0
      %1239 = vmatprep.subr.bf16.mxu0 0
      %1240 = vmatpush1.bf16.msra.mxu0 0
      %1241 = vmatprep.subr.bf16.mxu0 0
      %1242 = vmatpush1.bf16.msra.mxu0 0
      %1243 = vmatprep.subr.bf16.mxu0 0
      %1244 = vmatpush1.bf16.msra.mxu0 0
      %1245 = vmatprep.subr.bf16.mxu0 0
      %1246 = vmatpush1.bf16.msra.mxu0 0
      %1247 = vmatprep.subr.bf16.mxu0 %v1231
      %1248 = vmatpush1.bf16.msra.mxu0 %v1228
      %1249 = vmatprep.subr.bf16.mxu0 0
      %1250 = vmatpush2.bf16.msra.mxu0 0
      %1251 = vmatprep.subr.bf16.mxu0 0
      %1252 = vmatpush2.bf16.msra.mxu0 0
      %1253 = vmatprep.subr.bf16.mxu0 0
      %1254 = vmatpush2.bf16.msra.mxu0 0
      %1255 = vmatprep.subr.bf16.mxu0 0
      %1256 = vmatpush2.bf16.msra.mxu0 0
      %1257 = vmatprep.subr.bf16.mxu0 0
      %1258 = vmatpush2.bf16.msra.mxu0 0
      %1259 = vmatprep.subr.bf16.mxu0 0
      %1260 = vmatpush2.bf16.msra.mxu0 0
      %1261 = vmatprep.subr.bf16.mxu0 0
      %1262 = vmatpush2.bf16.msra.mxu0 0
      %1263 = vmatprep.subr.bf16.mxu0 0
      %1264 = vmatpush2.bf16.msra.mxu0 0
      %1265 = vmatprep.mubr.bf16.mxu0 0
      %1266 = vmatmul.mubr.bf16.gmra.mxu0 %v1225
      %v1267 = vpop.f32.mrf.mxu0
      %v1268 = vadd.f32 %v1218, %v1267
      %v1269 = vpop.f32.mrf.mxu0
      %v1270 = vadd.f32 %v1220, %v1269
      %v1271 = vpop.f32.mrf.mxu0
      %v1272 = vpop.f32.mrf.mxu0
      %1273 = vdwg.mxu0
      %1274 = vrot.lane.b32.xlu0 %v1142, 15
      %v1275 = vpop.permute.xlu0 %1274
      %1277 = vrot.lane.b32.xlu0 %v1141, 15
      %v1278 = vpop.permute.xlu0 %1277
      %v1279 = vsel %vm625, %v1278, %v1275
      %v1282 = vsel %vm625, %v1275, %v1278
      %v1283 = vmul.f32 %v1282, %v633
      %v1284 = vmul.f32 %v1279, %v637
      %s1285 = scalar_lea.vmem %s5, 4
      %v1286 = vld [vmem:[%s1285] sm:$0x3]
      %v1287 = vpack.c.bf16 %v1283, %v1283
      %v1288 = vpack.c.bf16 %v1284, %v1284
      %v1290 = vsel %vm518, %v1286, 0
      %v1293 = vsel %vm522, %v1287, 0
      %v1296 = vsel %vm522, %v1288, 0
      %1298 = vmatprep.subr.bf16.mxu0 0
      %1299 = vmatpush1.bf16.msra.mxu0 0
      %1300 = vmatprep.subr.bf16.mxu0 0
      %1301 = vmatpush1.bf16.msra.mxu0 0
      %1302 = vmatprep.subr.bf16.mxu0 0
      %1303 = vmatpush1.bf16.msra.mxu0 0
      %1304 = vmatprep.subr.bf16.mxu0 0
      %1305 = vmatpush1.bf16.msra.mxu0 0
      %1306 = vmatprep.subr.bf16.mxu0 0
      %1307 = vmatpush1.bf16.msra.mxu0 0
      %1308 = vmatprep.subr.bf16.mxu0 0
      %1309 = vmatpush1.bf16.msra.mxu0 0
      %1310 = vmatprep.subr.bf16.mxu0 0
      %1311 = vmatpush1.bf16.msra.mxu0 0
      %1312 = vmatprep.subr.bf16.mxu0 %v1296
      %1313 = vmatpush1.bf16.msra.mxu0 %v1293
      %1314 = vmatprep.subr.bf16.mxu0 0
      %1315 = vmatpush2.bf16.msra.mxu0 0
      %1316 = vmatprep.subr.bf16.mxu0 0
      %1317 = vmatpush2.bf16.msra.mxu0 0
      %1318 = vmatprep.subr.bf16.mxu0 0
      %1319 = vmatpush2.bf16.msra.mxu0 0
      %1320 = vmatprep.subr.bf16.mxu0 0
      %1321 = vmatpush2.bf16.msra.mxu0 0
      %1322 = vmatprep.subr.bf16.mxu0 0
      %1323 = vmatpush2.bf16.msra.mxu0 0
      %1324 = vmatprep.subr.bf16.mxu0 0
      %1325 = vmatpush2.bf16.msra.mxu0 0
      %1326 = vmatprep.subr.bf16.mxu0 0
      %1327 = vmatpush2.bf16.msra.mxu0 0
      %1328 = vmatprep.subr.bf16.mxu0 0
      %1329 = vmatpush2.bf16.msra.mxu0 0
      %1330 = vmatprep.mubr.bf16.mxu0 0
      %1331 = vmatmul.mubr.bf16.gmra.mxu0 %v1290
      %v1332 = vpop.f32.mrf.mxu0
      %v1333 = vadd.f32 0.0, %v1332
      %v1334 = vpop.f32.mrf.mxu0
      %v1335 = vadd.f32 0.0, %v1334
      %v1336 = vpop.f32.mrf.mxu0
      %v1337 = vpop.f32.mrf.mxu0
      %1338 = vdwg.mxu0
      %v1339 = vadd.f32 %v1268, %v1333
      %v1340 = vadd.f32 %v1270, %v1335
      %1341 = vrot.lane.b32.xlu0 %v1142, 1
      %v1342 = vpop.permute.xlu0 %1341
      %1344 = vrot.lane.b32.xlu0 %v1141, 1
      %v1345 = vpop.permute.xlu0 %1344
      %v1346 = vsel %vm701, %v1345, %v1342
      %v1349 = vsel %vm701, %v1342, %v1345
      %v1350 = vmul.f32 %v1349, %v709
      %v1351 = vmul.f32 %v1346, %v713
      %s1352 = scalar_lea.vmem %s5, 6
      %v1353 = vld [vmem:[%s1352] sm:$0x3]
      %v1354 = vpack.c.bf16 %v1350, %v1350
      %v1355 = vpack.c.bf16 %v1351, %v1351
      %v1357 = vsel %vm518, %v1353, 0
      %v1360 = vsel %vm522, %v1354, 0
      %v1363 = vsel %vm522, %v1355, 0
      %1365 = vmatprep.subr.bf16.mxu0 0
      %1366 = vmatpush1.bf16.msra.mxu0 0
      %1367 = vmatprep.subr.bf16.mxu0 0
      %1368 = vmatpush1.bf16.msra.mxu0 0
      %1369 = vmatprep.subr.bf16.mxu0 0
      %1370 = vmatpush1.bf16.msra.mxu0 0
      %1371 = vmatprep.subr.bf16.mxu0 0
      %1372 = vmatpush1.bf16.msra.mxu0 0
      %1373 = vmatprep.subr.bf16.mxu0 0
      %1374 = vmatpush1.bf16.msra.mxu0 0
      %1375 = vmatprep.subr.bf16.mxu0 0
      %1376 = vmatpush1.bf16.msra.mxu0 0
      %1377 = vmatprep.subr.bf16.mxu0 0
      %1378 = vmatpush1.bf16.msra.mxu0 0
      %1379 = vmatprep.subr.bf16.mxu0 %v1363
      %1380 = vmatpush1.bf16.msra.mxu0 %v1360
      %1381 = vmatprep.subr.bf16.mxu0 0
      %1382 = vmatpush2.bf16.msra.mxu0 0
      %1383 = vmatprep.subr.bf16.mxu0 0
      %1384 = vmatpush2.bf16.msra.mxu0 0
      %1385 = vmatprep.subr.bf16.mxu0 0
      %1386 = vmatpush2.bf16.msra.mxu0 0
      %1387 = vmatprep.subr.bf16.mxu0 0
      %1388 = vmatpush2.bf16.msra.mxu0 0
      %1389 = vmatprep.subr.bf16.mxu0 0
      %1390 = vmatpush2.bf16.msra.mxu0 0
      %1391 = vmatprep.subr.bf16.mxu0 0
      %1392 = vmatpush2.bf16.msra.mxu0 0
      %1393 = vmatprep.subr.bf16.mxu0 0
      %1394 = vmatpush2.bf16.msra.mxu0 0
      %1395 = vmatprep.subr.bf16.mxu0 0
      %1396 = vmatpush2.bf16.msra.mxu0 0
      %1397 = vmatprep.mubr.bf16.mxu0 0
      %1398 = vmatmul.mubr.bf16.gmra.mxu0 %v1357
      %v1399 = vpop.f32.mrf.mxu0
      %v1400 = vadd.f32 0.0, %v1399
      %v1401 = vpop.f32.mrf.mxu0
      %v1402 = vadd.f32 0.0, %v1401
      %v1403 = vpop.f32.mrf.mxu0
      %v1404 = vpop.f32.mrf.mxu0
      %1405 = vdwg.mxu0
      %v1406 = vadd.f32 %v1339, %v1400
      %v1407 = vadd.f32 %v1340, %v1402
      %s1408 = scalar_lea.vmem %s5, 8
      %v1409 = vld [vmem:[%s1408] sm:$0x3]
      %v1410 = vpack.c.bf16 %v1141, %v1141
      %v1411 = vpack.c.bf16 %v1142, %v1142
      %v1413 = vsel %vm518, %v1409, 0
      %v1416 = vsel %vm522, %v1410, 0
      %v1419 = vsel %vm522, %v1411, 0
      %1421 = vmatprep.subr.bf16.mxu0 0
      %1422 = vmatpush1.bf16.msra.mxu0 0
      %1423 = vmatprep.subr.bf16.mxu0 0
      %1424 = vmatpush1.bf16.msra.mxu0 0
      %1425 = vmatprep.subr.bf16.mxu0 0
      %1426 = vmatpush1.bf16.msra.mxu0 0
      %1427 = vmatprep.subr.bf16.mxu0 0
      %1428 = vmatpush1.bf16.msra.mxu0 0
      %1429 = vmatprep.subr.bf16.mxu0 0
      %1430 = vmatpush1.bf16.msra.mxu0 0
      %1431 = vmatprep.subr.bf16.mxu0 0
      %1432 = vmatpush1.bf16.msra.mxu0 0
      %1433 = vmatprep.subr.bf16.mxu0 0
      %1434 = vmatpush1.bf16.msra.mxu0 0
      %1435 = vmatprep.subr.bf16.mxu0 %v1419
      %1436 = vmatpush1.bf16.msra.mxu0 %v1416
      %1437 = vmatprep.subr.bf16.mxu0 0
      %1438 = vmatpush2.bf16.msra.mxu0 0
      %1439 = vmatprep.subr.bf16.mxu0 0
      %1440 = vmatpush2.bf16.msra.mxu0 0
      %1441 = vmatprep.subr.bf16.mxu0 0
      %1442 = vmatpush2.bf16.msra.mxu0 0
      %1443 = vmatprep.subr.bf16.mxu0 0
      %1444 = vmatpush2.bf16.msra.mxu0 0
      %1445 = vmatprep.subr.bf16.mxu0 0
      %1446 = vmatpush2.bf16.msra.mxu0 0
      %1447 = vmatprep.subr.bf16.mxu0 0
      %1448 = vmatpush2.bf16.msra.mxu0 0
      %1449 = vmatprep.subr.bf16.mxu0 0
      %1450 = vmatpush2.bf16.msra.mxu0 0
      %1451 = vmatprep.subr.bf16.mxu0 0
      %1452 = vmatpush2.bf16.msra.mxu0 0
      %1453 = vmatprep.mubr.bf16.mxu0 0
      %1454 = vmatmul.mubr.bf16.gmra.mxu0 %v1413
      %v1455 = vpop.f32.mrf.mxu0
      %v1456 = vadd.f32 0.0, %v1455
      %v1457 = vpop.f32.mrf.mxu0
      %v1458 = vadd.f32 0.0, %v1457
      %v1459 = vpop.f32.mrf.mxu0
      %v1460 = vpop.f32.mrf.mxu0
      %1461 = vdwg.mxu0
      %v1462 = vadd.f32 %v1406, %v1456
      %v1463 = vadd.f32 %v1407, %v1458
      %1464 = vrot.lane.b32.xlu0 %v1141, 127
      %v1465 = vpop.permute.xlu0 %1464
      %1466 = vrot.lane.b32.xlu0 %v1142, 127
      %v1467 = vpop.permute.xlu0 %1466
      %v1468 = vsel %vm833, %v1465, %v1467
      %v1472 = vsel %vm833, %v1467, %v1465
      %v1473 = vmul.f32 %v1468, %v842
      %v1474 = vmul.f32 %v1472, %v846
      %s1475 = scalar_lea.vmem %s5, 10
      %v1476 = vld [vmem:[%s1475] sm:$0x3]
      %v1477 = vpack.c.bf16 %v1473, %v1473
      %v1478 = vpack.c.bf16 %v1474, %v1474
      %v1480 = vsel %vm518, %v1476, 0
      %v1483 = vsel %vm522, %v1477, 0
      %v1486 = vsel %vm522, %v1478, 0
      %1488 = vmatprep.subr.bf16.mxu0 0
      %1489 = vmatpush1.bf16.msra.mxu0 0
      %1490 = vmatprep.subr.bf16.mxu0 0
      %1491 = vmatpush1.bf16.msra.mxu0 0
      %1492 = vmatprep.subr.bf16.mxu0 0
      %1493 = vmatpush1.bf16.msra.mxu0 0
      %1494 = vmatprep.subr.bf16.mxu0 0
      %1495 = vmatpush1.bf16.msra.mxu0 0
      %1496 = vmatprep.subr.bf16.mxu0 0
      %1497 = vmatpush1.bf16.msra.mxu0 0
      %1498 = vmatprep.subr.bf16.mxu0 0
      %1499 = vmatpush1.bf16.msra.mxu0 0
      %1500 = vmatprep.subr.bf16.mxu0 0
      %1501 = vmatpush1.bf16.msra.mxu0 0
      %1502 = vmatprep.subr.bf16.mxu0 %v1486
      %1503 = vmatpush1.bf16.msra.mxu0 %v1483
      %1504 = vmatprep.subr.bf16.mxu0 0
      %1505 = vmatpush2.bf16.msra.mxu0 0
      %1506 = vmatprep.subr.bf16.mxu0 0
      %1507 = vmatpush2.bf16.msra.mxu0 0
      %1508 = vmatprep.subr.bf16.mxu0 0
      %1509 = vmatpush2.bf16.msra.mxu0 0
      %1510 = vmatprep.subr.bf16.mxu0 0
      %1511 = vmatpush2.bf16.msra.mxu0 0
      %1512 = vmatprep.subr.bf16.mxu0 0
      %1513 = vmatpush2.bf16.msra.mxu0 0
      %1514 = vmatprep.subr.bf16.mxu0 0
      %1515 = vmatpush2.bf16.msra.mxu0 0
      %1516 = vmatprep.subr.bf16.mxu0 0
      %1517 = vmatpush2.bf16.msra.mxu0 0
      %1518 = vmatprep.subr.bf16.mxu0 0
      %1519 = vmatpush2.bf16.msra.mxu0 0
      %1520 = vmatprep.mubr.bf16.mxu0 0
      %1521 = vmatmul.mubr.bf16.gmra.mxu0 %v1480
      %v1522 = vpop.f32.mrf.mxu0
      %v1523 = vadd.f32 0.0, %v1522
      %v1524 = vpop.f32.mrf.mxu0
      %v1525 = vadd.f32 0.0, %v1524
      %v1526 = vpop.f32.mrf.mxu0
      %v1527 = vpop.f32.mrf.mxu0
      %1528 = vdwg.mxu0
      %v1529 = vadd.f32 %v1462, %v1523
      %v1530 = vadd.f32 %v1463, %v1525
      %1531 = vrot.lane.b32.xlu0 %v1141, 113
      %v1532 = vpop.permute.xlu0 %1531
      %1533 = vrot.lane.b32.xlu0 %v1142, 113
      %v1534 = vpop.permute.xlu0 %1533
      %v1535 = vsel %vm909, %v1532, %v1534
      %v1539 = vsel %vm909, %v1534, %v1532
      %v1540 = vmul.f32 %v1535, %v918
      %v1541 = vmul.f32 %v1539, %v922
      %s1542 = scalar_lea.vmem %s5, 12
      %v1543 = vld [vmem:[%s1542] sm:$0x3]
      %v1544 = vpack.c.bf16 %v1540, %v1540
      %v1545 = vpack.c.bf16 %v1541, %v1541
      %v1547 = vsel %vm518, %v1543, 0
      %v1550 = vsel %vm522, %v1544, 0
      %v1553 = vsel %vm522, %v1545, 0
      %1555 = vmatprep.subr.bf16.mxu0 0
      %1556 = vmatpush1.bf16.msra.mxu0 0
      %1557 = vmatprep.subr.bf16.mxu0 0
      %1558 = vmatpush1.bf16.msra.mxu0 0
      %1559 = vmatprep.subr.bf16.mxu0 0
      %1560 = vmatpush1.bf16.msra.mxu0 0
      %1561 = vmatprep.subr.bf16.mxu0 0
      %1562 = vmatpush1.bf16.msra.mxu0 0
      %1563 = vmatprep.subr.bf16.mxu0 0
      %1564 = vmatpush1.bf16.msra.mxu0 0
      %1565 = vmatprep.subr.bf16.mxu0 0
      %1566 = vmatpush1.bf16.msra.mxu0 0
      %1567 = vmatprep.subr.bf16.mxu0 0
      %1568 = vmatpush1.bf16.msra.mxu0 0
      %1569 = vmatprep.subr.bf16.mxu0 %v1553
      %1570 = vmatpush1.bf16.msra.mxu0 %v1550
      %1571 = vmatprep.subr.bf16.mxu0 0
      %1572 = vmatpush2.bf16.msra.mxu0 0
      %1573 = vmatprep.subr.bf16.mxu0 0
      %1574 = vmatpush2.bf16.msra.mxu0 0
      %1575 = vmatprep.subr.bf16.mxu0 0
      %1576 = vmatpush2.bf16.msra.mxu0 0
      %1577 = vmatprep.subr.bf16.mxu0 0
      %1578 = vmatpush2.bf16.msra.mxu0 0
      %1579 = vmatprep.subr.bf16.mxu0 0
      %1580 = vmatpush2.bf16.msra.mxu0 0
      %1581 = vmatprep.subr.bf16.mxu0 0
      %1582 = vmatpush2.bf16.msra.mxu0 0
      %1583 = vmatprep.subr.bf16.mxu0 0
      %1584 = vmatpush2.bf16.msra.mxu0 0
      %1585 = vmatprep.subr.bf16.mxu0 0
      %1586 = vmatpush2.bf16.msra.mxu0 0
      %1587 = vmatprep.mubr.bf16.mxu0 0
      %1588 = vmatmul.mubr.bf16.gmra.mxu0 %v1547
      %v1589 = vpop.f32.mrf.mxu0
      %v1590 = vadd.f32 0.0, %v1589
      %v1591 = vpop.f32.mrf.mxu0
      %v1592 = vadd.f32 0.0, %v1591
      %v1593 = vpop.f32.mrf.mxu0
      %v1594 = vpop.f32.mrf.mxu0
      %1595 = vdwg.mxu0
      %v1596 = vadd.f32 %v1529, %v1590
      %v1597 = vadd.f32 %v1530, %v1592
      %1598 = vrot.lane.b32.xlu0 %v1141, 112
      %v1599 = vpop.permute.xlu0 %1598
      %1600 = vrot.lane.b32.xlu0 %v1142, 112
      %v1601 = vpop.permute.xlu0 %1600
      %v1602 = vsel %vm985, %v1599, %v1601
      %v1606 = vsel %vm985, %v1601, %v1599
      %v1607 = vmul.f32 %v1602, %v994
      %v1608 = vmul.f32 %v1606, %v998
      %s1609 = scalar_lea.vmem %s5, 14
      %v1610 = vld [vmem:[%s1609] sm:$0x3]
      %v1611 = vpack.c.bf16 %v1607, %v1607
      %v1612 = vpack.c.bf16 %v1608, %v1608
      %v1614 = vsel %vm518, %v1610, 0
      %v1617 = vsel %vm522, %v1611, 0
      %v1620 = vsel %vm522, %v1612, 0
      %1622 = vmatprep.subr.bf16.mxu0 0
      %1623 = vmatpush1.bf16.msra.mxu0 0
      %1624 = vmatprep.subr.bf16.mxu0 0
      %1625 = vmatpush1.bf16.msra.mxu0 0
      %1626 = vmatprep.subr.bf16.mxu0 0
      %1627 = vmatpush1.bf16.msra.mxu0 0
      %1628 = vmatprep.subr.bf16.mxu0 0
      %1629 = vmatpush1.bf16.msra.mxu0 0
      %1630 = vmatprep.subr.bf16.mxu0 0
      %1631 = vmatpush1.bf16.msra.mxu0 0
      %1632 = vmatprep.subr.bf16.mxu0 0
      %1633 = vmatpush1.bf16.msra.mxu0 0
      %1634 = vmatprep.subr.bf16.mxu0 0
      %1635 = vmatpush1.bf16.msra.mxu0 0
      %1636 = vmatprep.subr.bf16.mxu0 %v1620
      %1637 = vmatpush1.bf16.msra.mxu0 %v1617
      %1638 = vmatprep.subr.bf16.mxu0 0
      %1639 = vmatpush2.bf16.msra.mxu0 0
      %1640 = vmatprep.subr.bf16.mxu0 0
      %1641 = vmatpush2.bf16.msra.mxu0 0
      %1642 = vmatprep.subr.bf16.mxu0 0
      %1643 = vmatpush2.bf16.msra.mxu0 0
      %1644 = vmatprep.subr.bf16.mxu0 0
      %1645 = vmatpush2.bf16.msra.mxu0 0
      %1646 = vmatprep.subr.bf16.mxu0 0
      %1647 = vmatpush2.bf16.msra.mxu0 0
      %1648 = vmatprep.subr.bf16.mxu0 0
      %1649 = vmatpush2.bf16.msra.mxu0 0
      %1650 = vmatprep.subr.bf16.mxu0 0
      %1651 = vmatpush2.bf16.msra.mxu0 0
      %1652 = vmatprep.subr.bf16.mxu0 0
      %1653 = vmatpush2.bf16.msra.mxu0 0
      %1654 = vmatprep.mubr.bf16.mxu0 0
      %1655 = vmatmul.mubr.bf16.gmra.mxu0 %v1614
      %v1656 = vpop.f32.mrf.mxu0
      %v1657 = vadd.f32 0.0, %v1656
      %v1658 = vpop.f32.mrf.mxu0
      %v1659 = vadd.f32 0.0, %v1658
      %v1660 = vpop.f32.mrf.mxu0
      %v1661 = vpop.f32.mrf.mxu0
      %1662 = vdwg.mxu0
      %v1663 = vadd.f32 %v1596, %v1657
      %v1664 = vadd.f32 %v1597, %v1659
      %1665 = vrot.lane.b32.xlu0 %v1141, 111
      %v1666 = vpop.permute.xlu0 %1665
      %1667 = vrot.lane.b32.xlu0 %v1142, 111
      %v1668 = vpop.permute.xlu0 %1667
      %v1669 = vsel %vm1061, %v1666, %v1668
      %v1673 = vsel %vm1061, %v1668, %v1666
      %v1674 = vmul.f32 %v1669, %v1070
      %v1675 = vmul.f32 %v1673, %v1074
      %s1676 = scalar_lea.vmem %s5, 16
      %v1677 = vld [vmem:[%s1676] sm:$0x3]
      %v1678 = vpack.c.bf16 %v1674, %v1674
      %v1679 = vpack.c.bf16 %v1675, %v1675
      %v1681 = vsel %vm518, %v1677, 0
      %v1684 = vsel %vm522, %v1678, 0
      %v1687 = vsel %vm522, %v1679, 0
      %1689 = vmatprep.subr.bf16.mxu0 0
      %1690 = vmatpush1.bf16.msra.mxu0 0
      %1691 = vmatprep.subr.bf16.mxu0 0
      %1692 = vmatpush1.bf16.msra.mxu0 0
      %1693 = vmatprep.subr.bf16.mxu0 0
      %1694 = vmatpush1.bf16.msra.mxu0 0
      %1695 = vmatprep.subr.bf16.mxu0 0
      %1696 = vmatpush1.bf16.msra.mxu0 0
      %1697 = vmatprep.subr.bf16.mxu0 0
      %1698 = vmatpush1.bf16.msra.mxu0 0
      %1699 = vmatprep.subr.bf16.mxu0 0
      %1700 = vmatpush1.bf16.msra.mxu0 0
      %1701 = vmatprep.subr.bf16.mxu0 0
      %1702 = vmatpush1.bf16.msra.mxu0 0
      %1703 = vmatprep.subr.bf16.mxu0 %v1687
      %1704 = vmatpush1.bf16.msra.mxu0 %v1684
      %1705 = vmatprep.subr.bf16.mxu0 0
      %1706 = vmatpush2.bf16.msra.mxu0 0
      %1707 = vmatprep.subr.bf16.mxu0 0
      %1708 = vmatpush2.bf16.msra.mxu0 0
      %1709 = vmatprep.subr.bf16.mxu0 0
      %1710 = vmatpush2.bf16.msra.mxu0 0
      %1711 = vmatprep.subr.bf16.mxu0 0
      %1712 = vmatpush2.bf16.msra.mxu0 0
      %1713 = vmatprep.subr.bf16.mxu0 0
      %1714 = vmatpush2.bf16.msra.mxu0 0
      %1715 = vmatprep.subr.bf16.mxu0 0
      %1716 = vmatpush2.bf16.msra.mxu0 0
      %1717 = vmatprep.subr.bf16.mxu0 0
      %1718 = vmatpush2.bf16.msra.mxu0 0
      %1719 = vmatprep.subr.bf16.mxu0 0
      %1720 = vmatpush2.bf16.msra.mxu0 0
      %1721 = vmatprep.mubr.bf16.mxu0 0
      %1722 = vmatmul.mubr.bf16.gmra.mxu0 %v1681
      %v1723 = vpop.f32.mrf.mxu0
      %v1724 = vadd.f32 0.0, %v1723
      %v1725 = vpop.f32.mrf.mxu0
      %v1726 = vadd.f32 0.0, %v1725
      %v1727 = vpop.f32.mrf.mxu0
      %v1728 = vpop.f32.mrf.mxu0
      %1729 = vdwg.mxu0
      %v1730 = vadd.f32 %v1663, %v1724
      %v1731 = vadd.f32 %v1664, %v1726
      %v1732 = vld [vmem:[%s6] sm:$0xf]
      %1734 = vset.pattern.permute.xlu0 0
      %1735 = vperm.xlu0 %1734, %v1732
      %v1736 = vpop.permute.xlu0 %1735
      %v1738 = vadd.f32 %v1730, %v1736
      %v1739 = vadd.f32 %v1731, %v1736
      %v1741 = vcombine.high %v467, %v467
      %v1743 = vadd.f32 %v1738, %v467
      %v1744 = vadd.f32 %v1739, %v1741
      %v1747 = vcombine.low %v1743, %v1744
      %v1749 = vadd.f32 %v466, %v1747
      %v1750 = vmax.f32 %v1749, 0.0
      %v1752 = vcombine.high %v1750, %v1750
      %1753 = vrot.lane.b32.xlu0 %v1752, 17
      %v1754 = vpop.permute.xlu0 %1753
      %1756 = vrot.lane.b32.xlu0 %v1750, 17
      %v1757 = vpop.permute.xlu0 %1756
      %v1758 = vsel %vm476, %v1757, %v1754
      %v1761 = vsel %vm476, %v1754, %v1757
      %v1762 = vmul.f32 %v1761, %v484
      %v1763 = vmul.f32 %v1758, %v488
      %v1764 = vld [vmem:[%s7] sm:$0x3]
      %v1765 = vpack.c.bf16 %v1762, %v1762
      %v1766 = vpack.c.bf16 %v1763, %v1763
      %1767 = vrot.lane.b32.xlu0 %v1752, 16
      %v1768 = vpop.permute.xlu0 %1767
      %1770 = vrot.lane.b32.xlu0 %v1750, 16
      %v1771 = vpop.permute.xlu0 %1770
      %v1772 = vsel %vm499, %v1771, %v1768
      %v1775 = vsel %vm499, %v1768, %v1771
      %v1776 = vmul.f32 %v1775, %v507
      %v1777 = vmul.f32 %v1772, %v511
      %s1778 = scalar_lea.vmem %s7, 2
      %v1779 = vld [vmem:[%s1778] sm:$0x3]
      %v1780 = vpack.c.bf16 %v1776, %v1776
      %v1781 = vpack.c.bf16 %v1777, %v1777
      %v1783 = vsel %vm518, %v1779, 0
      %v1786 = vsel %vm522, %v1780, 0
      %v1789 = vsel %vm522, %v1781, 0
      %1791 = vmatprep.subr.bf16.mxu0 0
      %1792 = vmatpush1.bf16.msra.mxu0 0
      %1793 = vmatprep.subr.bf16.mxu0 0
      %1794 = vmatpush1.bf16.msra.mxu0 0
      %1795 = vmatprep.subr.bf16.mxu0 0
      %1796 = vmatpush1.bf16.msra.mxu0 0
      %1797 = vmatprep.subr.bf16.mxu0 0
      %1798 = vmatpush1.bf16.msra.mxu0 0
      %1799 = vmatprep.subr.bf16.mxu0 0
      %1800 = vmatpush1.bf16.msra.mxu0 0
      %1801 = vmatprep.subr.bf16.mxu0 0
      %1802 = vmatpush1.bf16.msra.mxu0 0
      %1803 = vmatprep.subr.bf16.mxu0 0
      %1804 = vmatpush1.bf16.msra.mxu0 0
      %1805 = vmatprep.subr.bf16.mxu0 %v1789
      %1806 = vmatpush1.bf16.msra.mxu0 %v1786
      %1807 = vmatprep.subr.bf16.mxu0 0
      %1808 = vmatpush2.bf16.msra.mxu0 0
      %1809 = vmatprep.subr.bf16.mxu0 0
      %1810 = vmatpush2.bf16.msra.mxu0 0
      %1811 = vmatprep.subr.bf16.mxu0 0
      %1812 = vmatpush2.bf16.msra.mxu0 0
      %1813 = vmatprep.subr.bf16.mxu0 0
      %1814 = vmatpush2.bf16.msra.mxu0 0
      %1815 = vmatprep.subr.bf16.mxu0 0
      %1816 = vmatpush2.bf16.msra.mxu0 0
      %1817 = vmatprep.subr.bf16.mxu0 0
      %1818 = vmatpush2.bf16.msra.mxu0 0
      %1819 = vmatprep.subr.bf16.mxu0 0
      %1820 = vmatpush2.bf16.msra.mxu0 0
      %1821 = vmatprep.subr.bf16.mxu0 0
      %1822 = vmatpush2.bf16.msra.mxu0 0
      %1823 = vmatprep.mubr.bf16.mxu0 0
      %1824 = vmatmul.mubr.bf16.gmra.mxu0 %v1783
      %v1825 = vpop.f32.mrf.mxu0
      %v1826 = vadd.f32 0.0, %v1825
      %v1827 = vpop.f32.mrf.mxu0
      %v1828 = vadd.f32 0.0, %v1827
      %v1829 = vpop.f32.mrf.mxu0
      %v1830 = vpop.f32.mrf.mxu0
      %1831 = vdwg.mxu0
      %v1833 = vsel %vm518, %v1764, 0
      %v1836 = vsel %vm522, %v1765, 0
      %v1839 = vsel %vm522, %v1766, 0
      %1841 = vmatprep.subr.bf16.mxu0 0
      %1842 = vmatpush1.bf16.msra.mxu0 0
      %1843 = vmatprep.subr.bf16.mxu0 0
      %1844 = vmatpush1.bf16.msra.mxu0 0
      %1845 = vmatprep.subr.bf16.mxu0 0
      %1846 = vmatpush1.bf16.msra.mxu0 0
      %1847 = vmatprep.subr.bf16.mxu0 0
      %1848 = vmatpush1.bf16.msra.mxu0 0
      %1849 = vmatprep.subr.bf16.mxu0 0
      %1850 = vmatpush1.bf16.msra.mxu0 0
      %1851 = vmatprep.subr.bf16.mxu0 0
      %1852 = vmatpush1.bf16.msra.mxu0 0
      %1853 = vmatprep.subr.bf16.mxu0 0
      %1854 = vmatpush1.bf16.msra.mxu0 0
      %1855 = vmatprep.subr.bf16.mxu0 %v1839
      %1856 = vmatpush1.bf16.msra.mxu0 %v1836
      %1857 = vmatprep.subr.bf16.mxu0 0
      %1858 = vmatpush2.bf16.msra.mxu0 0
      %1859 = vmatprep.subr.bf16.mxu0 0
      %1860 = vmatpush2.bf16.msra.mxu0 0
      %1861 = vmatprep.subr.bf16.mxu0 0
      %1862 = vmatpush2.bf16.msra.mxu0 0
      %1863 = vmatprep.subr.bf16.mxu0 0
      %1864 = vmatpush2.bf16.msra.mxu0 0
      %1865 = vmatprep.subr.bf16.mxu0 0
      %1866 = vmatpush2.bf16.msra.mxu0 0
      %1867 = vmatprep.subr.bf16.mxu0 0
      %1868 = vmatpush2.bf16.msra.mxu0 0
      %1869 = vmatprep.subr.bf16.mxu0 0
      %1870 = vmatpush2.bf16.msra.mxu0 0
      %1871 = vmatprep.subr.bf16.mxu0 0
      %1872 = vmatpush2.bf16.msra.mxu0 0
      %1873 = vmatprep.mubr.bf16.mxu0 0
      %1874 = vmatmul.mubr.bf16.gmra.mxu0 %v1833
      %v1875 = vpop.f32.mrf.mxu0
      %v1876 = vadd.f32 %v1826, %v1875
      %v1877 = vpop.f32.mrf.mxu0
      %v1878 = vadd.f32 %v1828, %v1877
      %v1879 = vpop.f32.mrf.mxu0
      %v1880 = vpop.f32.mrf.mxu0
      %1881 = vdwg.mxu0
      %1882 = vrot.lane.b32.xlu0 %v1752, 15
      %v1883 = vpop.permute.xlu0 %1882
      %1885 = vrot.lane.b32.xlu0 %v1750, 15
      %v1886 = vpop.permute.xlu0 %1885
      %v1887 = vsel %vm625, %v1886, %v1883
      %v1890 = vsel %vm625, %v1883, %v1886
      %v1891 = vmul.f32 %v1890, %v633
      %v1892 = vmul.f32 %v1887, %v637
      %s1893 = scalar_lea.vmem %s7, 4
      %v1894 = vld [vmem:[%s1893] sm:$0x3]
      %v1895 = vpack.c.bf16 %v1891, %v1891
      %v1896 = vpack.c.bf16 %v1892, %v1892
      %v1898 = vsel %vm518, %v1894, 0
      %v1901 = vsel %vm522, %v1895, 0
      %v1904 = vsel %vm522, %v1896, 0
      %1906 = vmatprep.subr.bf16.mxu0 0
      %1907 = vmatpush1.bf16.msra.mxu0 0
      %1908 = vmatprep.subr.bf16.mxu0 0
      %1909 = vmatpush1.bf16.msra.mxu0 0
      %1910 = vmatprep.subr.bf16.mxu0 0
      %1911 = vmatpush1.bf16.msra.mxu0 0
      %1912 = vmatprep.subr.bf16.mxu0 0
      %1913 = vmatpush1.bf16.msra.mxu0 0
      %1914 = vmatprep.subr.bf16.mxu0 0
      %1915 = vmatpush1.bf16.msra.mxu0 0
      %1916 = vmatprep.subr.bf16.mxu0 0
      %1917 = vmatpush1.bf16.msra.mxu0 0
      %1918 = vmatprep.subr.bf16.mxu0 0
      %1919 = vmatpush1.bf16.msra.mxu0 0
      %1920 = vmatprep.subr.bf16.mxu0 %v1904
      %1921 = vmatpush1.bf16.msra.mxu0 %v1901
      %1922 = vmatprep.subr.bf16.mxu0 0
      %1923 = vmatpush2.bf16.msra.mxu0 0
      %1924 = vmatprep.subr.bf16.mxu0 0
      %1925 = vmatpush2.bf16.msra.mxu0 0
      %1926 = vmatprep.subr.bf16.mxu0 0
      %1927 = vmatpush2.bf16.msra.mxu0 0
      %1928 = vmatprep.subr.bf16.mxu0 0
      %1929 = vmatpush2.bf16.msra.mxu0 0
      %1930 = vmatprep.subr.bf16.mxu0 0
      %1931 = vmatpush2.bf16.msra.mxu0 0
      %1932 = vmatprep.subr.bf16.mxu0 0
      %1933 = vmatpush2.bf16.msra.mxu0 0
      %1934 = vmatprep.subr.bf16.mxu0 0
      %1935 = vmatpush2.bf16.msra.mxu0 0
      %1936 = vmatprep.subr.bf16.mxu0 0
      %1937 = vmatpush2.bf16.msra.mxu0 0
      %1938 = vmatprep.mubr.bf16.mxu0 0
      %1939 = vmatmul.mubr.bf16.gmra.mxu0 %v1898
      %v1940 = vpop.f32.mrf.mxu0
      %v1941 = vadd.f32 0.0, %v1940
      %v1942 = vpop.f32.mrf.mxu0
      %v1943 = vadd.f32 0.0, %v1942
      %v1944 = vpop.f32.mrf.mxu0
      %v1945 = vpop.f32.mrf.mxu0
      %1946 = vdwg.mxu0
      %v1947 = vadd.f32 %v1876, %v1941
      %v1948 = vadd.f32 %v1878, %v1943
      %1949 = vrot.lane.b32.xlu0 %v1752, 1
      %v1950 = vpop.permute.xlu0 %1949
      %1952 = vrot.lane.b32.xlu0 %v1750, 1
      %v1953 = vpop.permute.xlu0 %1952
      %v1954 = vsel %vm701, %v1953, %v1950
      %v1957 = vsel %vm701, %v1950, %v1953
      %v1958 = vmul.f32 %v1957, %v709
      %v1959 = vmul.f32 %v1954, %v713
      %s1960 = scalar_lea.vmem %s7, 6
      %v1961 = vld [vmem:[%s1960] sm:$0x3]
      %v1962 = vpack.c.bf16 %v1958, %v1958
      %v1963 = vpack.c.bf16 %v1959, %v1959
      %v1965 = vsel %vm518, %v1961, 0
      %v1968 = vsel %vm522, %v1962, 0
      %v1971 = vsel %vm522, %v1963, 0
      %1973 = vmatprep.subr.bf16.mxu0 0
      %1974 = vmatpush1.bf16.msra.mxu0 0
      %1975 = vmatprep.subr.bf16.mxu0 0
      %1976 = vmatpush1.bf16.msra.mxu0 0
      %1977 = vmatprep.subr.bf16.mxu0 0
      %1978 = vmatpush1.bf16.msra.mxu0 0
      %1979 = vmatprep.subr.bf16.mxu0 0
      %1980 = vmatpush1.bf16.msra.mxu0 0
      %1981 = vmatprep.subr.bf16.mxu0 0
      %1982 = vmatpush1.bf16.msra.mxu0 0
      %1983 = vmatprep.subr.bf16.mxu0 0
      %1984 = vmatpush1.bf16.msra.mxu0 0
      %1985 = vmatprep.subr.bf16.mxu0 0
      %1986 = vmatpush1.bf16.msra.mxu0 0
      %1987 = vmatprep.subr.bf16.mxu0 %v1971
      %1988 = vmatpush1.bf16.msra.mxu0 %v1968
      %1989 = vmatprep.subr.bf16.mxu0 0
      %1990 = vmatpush2.bf16.msra.mxu0 0
      %1991 = vmatprep.subr.bf16.mxu0 0
      %1992 = vmatpush2.bf16.msra.mxu0 0
      %1993 = vmatprep.subr.bf16.mxu0 0
      %1994 = vmatpush2.bf16.msra.mxu0 0
      %1995 = vmatprep.subr.bf16.mxu0 0
      %1996 = vmatpush2.bf16.msra.mxu0 0
      %1997 = vmatprep.subr.bf16.mxu0 0
      %1998 = vmatpush2.bf16.msra.mxu0 0
      %1999 = vmatprep.subr.bf16.mxu0 0
      %2000 = vmatpush2.bf16.msra.mxu0 0
      %2001 = vmatprep.subr.bf16.mxu0 0
      %2002 = vmatpush2.bf16.msra.mxu0 0
      %2003 = vmatprep.subr.bf16.mxu0 0
      %2004 = vmatpush2.bf16.msra.mxu0 0
      %2005 = vmatprep.mubr.bf16.mxu0 0
      %2006 = vmatmul.mubr.bf16.gmra.mxu0 %v1965
      %v2007 = vpop.f32.mrf.mxu0
      %v2008 = vadd.f32 0.0, %v2007
      %v2009 = vpop.f32.mrf.mxu0
      %v2010 = vadd.f32 0.0, %v2009
      %v2011 = vpop.f32.mrf.mxu0
      %v2012 = vpop.f32.mrf.mxu0
      %2013 = vdwg.mxu0
      %v2014 = vadd.f32 %v1947, %v2008
      %v2015 = vadd.f32 %v1948, %v2010
      %s2016 = scalar_lea.vmem %s7, 8
      %v2017 = vld [vmem:[%s2016] sm:$0x3]
      %v2019 = vpack.c.bf16 %v1750, %v1750
      %v2020 = vpack.c.bf16 %v1752, %v1752
      %v2022 = vsel %vm518, %v2017, 0
      %v2025 = vsel %vm522, %v2019, 0
      %v2028 = vsel %vm522, %v2020, 0
      %2030 = vmatprep.subr.bf16.mxu0 0
      %2031 = vmatpush1.bf16.msra.mxu0 0
      %2032 = vmatprep.subr.bf16.mxu0 0
      %2033 = vmatpush1.bf16.msra.mxu0 0
      %2034 = vmatprep.subr.bf16.mxu0 0
      %2035 = vmatpush1.bf16.msra.mxu0 0
      %2036 = vmatprep.subr.bf16.mxu0 0
      %2037 = vmatpush1.bf16.msra.mxu0 0
      %2038 = vmatprep.subr.bf16.mxu0 0
      %2039 = vmatpush1.bf16.msra.mxu0 0
      %2040 = vmatprep.subr.bf16.mxu0 0
      %2041 = vmatpush1.bf16.msra.mxu0 0
      %2042 = vmatprep.subr.bf16.mxu0 0
      %2043 = vmatpush1.bf16.msra.mxu0 0
      %2044 = vmatprep.subr.bf16.mxu0 %v2028
      %2045 = vmatpush1.bf16.msra.mxu0 %v2025
      %2046 = vmatprep.subr.bf16.mxu0 0
      %2047 = vmatpush2.bf16.msra.mxu0 0
      %2048 = vmatprep.subr.bf16.mxu0 0
      %2049 = vmatpush2.bf16.msra.mxu0 0
      %2050 = vmatprep.subr.bf16.mxu0 0
      %2051 = vmatpush2.bf16.msra.mxu0 0
      %2052 = vmatprep.subr.bf16.mxu0 0
      %2053 = vmatpush2.bf16.msra.mxu0 0
      %2054 = vmatprep.subr.bf16.mxu0 0
      %2055 = vmatpush2.bf16.msra.mxu0 0
      %2056 = vmatprep.subr.bf16.mxu0 0
      %2057 = vmatpush2.bf16.msra.mxu0 0
      %2058 = vmatprep.subr.bf16.mxu0 0
      %2059 = vmatpush2.bf16.msra.mxu0 0
      %2060 = vmatprep.subr.bf16.mxu0 0
      %2061 = vmatpush2.bf16.msra.mxu0 0
      %2062 = vmatprep.mubr.bf16.mxu0 0
      %2063 = vmatmul.mubr.bf16.gmra.mxu0 %v2022
      %v2064 = vpop.f32.mrf.mxu0
      %v2065 = vadd.f32 0.0, %v2064
      %v2066 = vpop.f32.mrf.mxu0
      %v2067 = vadd.f32 0.0, %v2066
      %v2068 = vpop.f32.mrf.mxu0
      %v2069 = vpop.f32.mrf.mxu0
      %2070 = vdwg.mxu0
      %v2071 = vadd.f32 %v2014, %v2065
      %v2072 = vadd.f32 %v2015, %v2067
      %2073 = vrot.lane.b32.xlu0 %v1750, 127
      %v2074 = vpop.permute.xlu0 %2073
      %2075 = vrot.lane.b32.xlu0 %v1752, 127
      %v2076 = vpop.permute.xlu0 %2075
      %v2077 = vsel %vm833, %v2074, %v2076
      %v2081 = vsel %vm833, %v2076, %v2074
      %v2082 = vmul.f32 %v2077, %v842
      %v2083 = vmul.f32 %v2081, %v846
      %s2084 = scalar_lea.vmem %s7, 10
      %v2085 = vld [vmem:[%s2084] sm:$0x3]
      %v2086 = vpack.c.bf16 %v2082, %v2082
      %v2087 = vpack.c.bf16 %v2083, %v2083
      %v2089 = vsel %vm518, %v2085, 0
      %v2092 = vsel %vm522, %v2086, 0
      %v2095 = vsel %vm522, %v2087, 0
      %2097 = vmatprep.subr.bf16.mxu0 0
      %2098 = vmatpush1.bf16.msra.mxu0 0
      %2099 = vmatprep.subr.bf16.mxu0 0
      %2100 = vmatpush1.bf16.msra.mxu0 0
      %2101 = vmatprep.subr.bf16.mxu0 0
      %2102 = vmatpush1.bf16.msra.mxu0 0
      %2103 = vmatprep.subr.bf16.mxu0 0
      %2104 = vmatpush1.bf16.msra.mxu0 0
      %2105 = vmatprep.subr.bf16.mxu0 0
      %2106 = vmatpush1.bf16.msra.mxu0 0
      %2107 = vmatprep.subr.bf16.mxu0 0
      %2108 = vmatpush1.bf16.msra.mxu0 0
      %2109 = vmatprep.subr.bf16.mxu0 0
      %2110 = vmatpush1.bf16.msra.mxu0 0
      %2111 = vmatprep.subr.bf16.mxu0 %v2095
      %2112 = vmatpush1.bf16.msra.mxu0 %v2092
      %2113 = vmatprep.subr.bf16.mxu0 0
      %2114 = vmatpush2.bf16.msra.mxu0 0
      %2115 = vmatprep.subr.bf16.mxu0 0
      %2116 = vmatpush2.bf16.msra.mxu0 0
      %2117 = vmatprep.subr.bf16.mxu0 0
      %2118 = vmatpush2.bf16.msra.mxu0 0
      %2119 = vmatprep.subr.bf16.mxu0 0
      %2120 = vmatpush2.bf16.msra.mxu0 0
      %2121 = vmatprep.subr.bf16.mxu0 0
      %2122 = vmatpush2.bf16.msra.mxu0 0
      %2123 = vmatprep.subr.bf16.mxu0 0
      %2124 = vmatpush2.bf16.msra.mxu0 0
      %2125 = vmatprep.subr.bf16.mxu0 0
      %2126 = vmatpush2.bf16.msra.mxu0 0
      %2127 = vmatprep.subr.bf16.mxu0 0
      %2128 = vmatpush2.bf16.msra.mxu0 0
      %2129 = vmatprep.mubr.bf16.mxu0 0
      %2130 = vmatmul.mubr.bf16.gmra.mxu0 %v2089
      %v2131 = vpop.f32.mrf.mxu0
      %v2132 = vadd.f32 0.0, %v2131
      %v2133 = vpop.f32.mrf.mxu0
      %v2134 = vadd.f32 0.0, %v2133
      %v2135 = vpop.f32.mrf.mxu0
      %v2136 = vpop.f32.mrf.mxu0
      %2137 = vdwg.mxu0
      %v2138 = vadd.f32 %v2071, %v2132
      %v2139 = vadd.f32 %v2072, %v2134
      %2140 = vrot.lane.b32.xlu0 %v1750, 113
      %v2141 = vpop.permute.xlu0 %2140
      %2142 = vrot.lane.b32.xlu0 %v1752, 113
      %v2143 = vpop.permute.xlu0 %2142
      %v2144 = vsel %vm909, %v2141, %v2143
      %v2148 = vsel %vm909, %v2143, %v2141
      %v2149 = vmul.f32 %v2144, %v918
      %v2150 = vmul.f32 %v2148, %v922
      %s2151 = scalar_lea.vmem %s7, 12
      %v2152 = vld [vmem:[%s2151] sm:$0x3]
      %v2153 = vpack.c.bf16 %v2149, %v2149
      %v2154 = vpack.c.bf16 %v2150, %v2150
      %v2156 = vsel %vm518, %v2152, 0
      %v2159 = vsel %vm522, %v2153, 0
      %v2162 = vsel %vm522, %v2154, 0
      %2164 = vmatprep.subr.bf16.mxu0 0
      %2165 = vmatpush1.bf16.msra.mxu0 0
      %2166 = vmatprep.subr.bf16.mxu0 0
      %2167 = vmatpush1.bf16.msra.mxu0 0
      %2168 = vmatprep.subr.bf16.mxu0 0
      %2169 = vmatpush1.bf16.msra.mxu0 0
      %2170 = vmatprep.subr.bf16.mxu0 0
      %2171 = vmatpush1.bf16.msra.mxu0 0
      %2172 = vmatprep.subr.bf16.mxu0 0
      %2173 = vmatpush1.bf16.msra.mxu0 0
      %2174 = vmatprep.subr.bf16.mxu0 0
      %2175 = vmatpush1.bf16.msra.mxu0 0
      %2176 = vmatprep.subr.bf16.mxu0 0
      %2177 = vmatpush1.bf16.msra.mxu0 0
      %2178 = vmatprep.subr.bf16.mxu0 %v2162
      %2179 = vmatpush1.bf16.msra.mxu0 %v2159
      %2180 = vmatprep.subr.bf16.mxu0 0
      %2181 = vmatpush2.bf16.msra.mxu0 0
      %2182 = vmatprep.subr.bf16.mxu0 0
      %2183 = vmatpush2.bf16.msra.mxu0 0
      %2184 = vmatprep.subr.bf16.mxu0 0
      %2185 = vmatpush2.bf16.msra.mxu0 0
      %2186 = vmatprep.subr.bf16.mxu0 0
      %2187 = vmatpush2.bf16.msra.mxu0 0
      %2188 = vmatprep.subr.bf16.mxu0 0
      %2189 = vmatpush2.bf16.msra.mxu0 0
      %2190 = vmatprep.subr.bf16.mxu0 0
      %2191 = vmatpush2.bf16.msra.mxu0 0
      %2192 = vmatprep.subr.bf16.mxu0 0
      %2193 = vmatpush2.bf16.msra.mxu0 0
      %2194 = vmatprep.subr.bf16.mxu0 0
      %2195 = vmatpush2.bf16.msra.mxu0 0
      %2196 = vmatprep.mubr.bf16.mxu0 0
      %2197 = vmatmul.mubr.bf16.gmra.mxu0 %v2156
      %v2198 = vpop.f32.mrf.mxu0
      %v2199 = vadd.f32 0.0, %v2198
      %v2200 = vpop.f32.mrf.mxu0
      %v2201 = vadd.f32 0.0, %v2200
      %v2202 = vpop.f32.mrf.mxu0
      %v2203 = vpop.f32.mrf.mxu0
      %2204 = vdwg.mxu0
      %v2205 = vadd.f32 %v2138, %v2199
      %v2206 = vadd.f32 %v2139, %v2201
      %2207 = vrot.lane.b32.xlu0 %v1750, 112
      %v2208 = vpop.permute.xlu0 %2207
      %2209 = vrot.lane.b32.xlu0 %v1752, 112
      %v2210 = vpop.permute.xlu0 %2209
      %v2211 = vsel %vm985, %v2208, %v2210
      %v2215 = vsel %vm985, %v2210, %v2208
      %v2216 = vmul.f32 %v2211, %v994
      %v2217 = vmul.f32 %v2215, %v998
      %s2218 = scalar_lea.vmem %s7, 14
      %v2219 = vld [vmem:[%s2218] sm:$0x3]
      %v2220 = vpack.c.bf16 %v2216, %v2216
      %v2221 = vpack.c.bf16 %v2217, %v2217
      %v2223 = vsel %vm518, %v2219, 0
      %v2226 = vsel %vm522, %v2220, 0
      %v2229 = vsel %vm522, %v2221, 0
      %2231 = vmatprep.subr.bf16.mxu0 0
      %2232 = vmatpush1.bf16.msra.mxu0 0
      %2233 = vmatprep.subr.bf16.mxu0 0
      %2234 = vmatpush1.bf16.msra.mxu0 0
      %2235 = vmatprep.subr.bf16.mxu0 0
      %2236 = vmatpush1.bf16.msra.mxu0 0
      %2237 = vmatprep.subr.bf16.mxu0 0
      %2238 = vmatpush1.bf16.msra.mxu0 0
      %2239 = vmatprep.subr.bf16.mxu0 0
      %2240 = vmatpush1.bf16.msra.mxu0 0
      %2241 = vmatprep.subr.bf16.mxu0 0
      %2242 = vmatpush1.bf16.msra.mxu0 0
      %2243 = vmatprep.subr.bf16.mxu0 0
      %2244 = vmatpush1.bf16.msra.mxu0 0
      %2245 = vmatprep.subr.bf16.mxu0 %v2229
      %2246 = vmatpush1.bf16.msra.mxu0 %v2226
      %2247 = vmatprep.subr.bf16.mxu0 0
      %2248 = vmatpush2.bf16.msra.mxu0 0
      %2249 = vmatprep.subr.bf16.mxu0 0
      %2250 = vmatpush2.bf16.msra.mxu0 0
      %2251 = vmatprep.subr.bf16.mxu0 0
      %2252 = vmatpush2.bf16.msra.mxu0 0
      %2253 = vmatprep.subr.bf16.mxu0 0
      %2254 = vmatpush2.bf16.msra.mxu0 0
      %2255 = vmatprep.subr.bf16.mxu0 0
      %2256 = vmatpush2.bf16.msra.mxu0 0
      %2257 = vmatprep.subr.bf16.mxu0 0
      %2258 = vmatpush2.bf16.msra.mxu0 0
      %2259 = vmatprep.subr.bf16.mxu0 0
      %2260 = vmatpush2.bf16.msra.mxu0 0
      %2261 = vmatprep.subr.bf16.mxu0 0
      %2262 = vmatpush2.bf16.msra.mxu0 0
      %2263 = vmatprep.mubr.bf16.mxu0 0
      %2264 = vmatmul.mubr.bf16.gmra.mxu0 %v2223
      %v2265 = vpop.f32.mrf.mxu0
      %v2266 = vadd.f32 0.0, %v2265
      %v2267 = vpop.f32.mrf.mxu0
      %v2268 = vadd.f32 0.0, %v2267
      %v2269 = vpop.f32.mrf.mxu0
      %v2270 = vpop.f32.mrf.mxu0
      %2271 = vdwg.mxu0
      %v2272 = vadd.f32 %v2205, %v2266
      %v2273 = vadd.f32 %v2206, %v2268
      %2274 = vrot.lane.b32.xlu0 %v1750, 111
      %v2275 = vpop.permute.xlu0 %2274
      %2276 = vrot.lane.b32.xlu0 %v1752, 111
      %v2277 = vpop.permute.xlu0 %2276
      %v2278 = vsel %vm1061, %v2275, %v2277
      %v2282 = vsel %vm1061, %v2277, %v2275
      %v2283 = vmul.f32 %v2278, %v1070
      %v2284 = vmul.f32 %v2282, %v1074
      %s2285 = scalar_lea.vmem %s7, 16
      %v2286 = vld [vmem:[%s2285] sm:$0x3]
      %v2287 = vpack.c.bf16 %v2283, %v2283
      %v2288 = vpack.c.bf16 %v2284, %v2284
      %v2290 = vsel %vm518, %v2286, 0
      %v2293 = vsel %vm522, %v2287, 0
      %v2296 = vsel %vm522, %v2288, 0
      %2298 = vmatprep.subr.bf16.mxu0 0
      %2299 = vmatpush1.bf16.msra.mxu0 0
      %2300 = vmatprep.subr.bf16.mxu0 0
      %2301 = vmatpush1.bf16.msra.mxu0 0
      %2302 = vmatprep.subr.bf16.mxu0 0
      %2303 = vmatpush1.bf16.msra.mxu0 0
      %2304 = vmatprep.subr.bf16.mxu0 0
      %2305 = vmatpush1.bf16.msra.mxu0 0
      %2306 = vmatprep.subr.bf16.mxu0 0
      %2307 = vmatpush1.bf16.msra.mxu0 0
      %2308 = vmatprep.subr.bf16.mxu0 0
      %2309 = vmatpush1.bf16.msra.mxu0 0
      %2310 = vmatprep.subr.bf16.mxu0 0
      %2311 = vmatpush1.bf16.msra.mxu0 0
      %2312 = vmatprep.subr.bf16.mxu0 %v2296
      %2313 = vmatpush1.bf16.msra.mxu0 %v2293
      %2314 = vmatprep.subr.bf16.mxu0 0
      %2315 = vmatpush2.bf16.msra.mxu0 0
      %2316 = vmatprep.subr.bf16.mxu0 0
      %2317 = vmatpush2.bf16.msra.mxu0 0
      %2318 = vmatprep.subr.bf16.mxu0 0
      %2319 = vmatpush2.bf16.msra.mxu0 0
      %2320 = vmatprep.subr.bf16.mxu0 0
      %2321 = vmatpush2.bf16.msra.mxu0 0
      %2322 = vmatprep.subr.bf16.mxu0 0
      %2323 = vmatpush2.bf16.msra.mxu0 0
      %2324 = vmatprep.subr.bf16.mxu0 0
      %2325 = vmatpush2.bf16.msra.mxu0 0
      %2326 = vmatprep.subr.bf16.mxu0 0
      %2327 = vmatpush2.bf16.msra.mxu0 0
      %2328 = vmatprep.subr.bf16.mxu0 0
      %2329 = vmatpush2.bf16.msra.mxu0 0
      %2330 = vmatprep.mubr.bf16.mxu0 0
      %2331 = vmatmul.mubr.bf16.gmra.mxu0 %v2290
      %v2332 = vpop.f32.mrf.mxu0
      %v2333 = vadd.f32 0.0, %v2332
      %v2334 = vpop.f32.mrf.mxu0
      %v2335 = vadd.f32 0.0, %v2334
      %v2336 = vpop.f32.mrf.mxu0
      %v2337 = vpop.f32.mrf.mxu0
      %2338 = vdwg.mxu0
      %v2339 = vadd.f32 %v2272, %v2333
      %v2340 = vadd.f32 %v2273, %v2335
      %v2341 = vld [vmem:[%s8] sm:$0xf]
      %2343 = vset.pattern.permute.xlu0 0
      %2344 = vperm.xlu0 %2343, %v2341
      %v2345 = vpop.permute.xlu0 %2344
      %v2347 = vadd.f32 %v2339, %v2345
      %v2348 = vadd.f32 %v2340, %v2345
      %v2349 = vmax.f32 %v2347, 0.0
      %v2350 = vmax.f32 %v2348, 0.0
      %2352 = vrot.lane.b32.xlu0 %v2350, 17
      %v2353 = vpop.permute.xlu0 %2352
      %2356 = vrot.lane.b32.xlu0 %v2349, 17
      %v2357 = vpop.permute.xlu0 %2356
      %v2358 = vsel %vm476, %v2357, %v2353
      %v2361 = vsel %vm476, %v2353, %v2357
      %v2362 = vmul.f32 %v2361, %v484
      %v2363 = vmul.f32 %v2358, %v488
      %v2364 = vld [vmem:[%s9] sm:$0x3]
      %v2365 = vpack.c.bf16 %v2362, %v2362
      %v2366 = vpack.c.bf16 %v2363, %v2363
      %2367 = vrot.lane.b32.xlu0 %v2350, 16
      %v2368 = vpop.permute.xlu0 %2367
      %2370 = vrot.lane.b32.xlu0 %v2349, 16
      %v2371 = vpop.permute.xlu0 %2370
      %v2372 = vsel %vm499, %v2371, %v2368
      %v2375 = vsel %vm499, %v2368, %v2371
      %v2376 = vmul.f32 %v2375, %v507
      %v2377 = vmul.f32 %v2372, %v511
      %s2378 = scalar_lea.vmem %s9, 2
      %v2379 = vld [vmem:[%s2378] sm:$0x3]
      %v2380 = vpack.c.bf16 %v2376, %v2376
      %v2381 = vpack.c.bf16 %v2377, %v2377
      %v2383 = vsel %vm518, %v2379, 0
      %v2386 = vsel %vm522, %v2380, 0
      %v2389 = vsel %vm522, %v2381, 0
      %2391 = vmatprep.subr.bf16.mxu0 0
      %2392 = vmatpush1.bf16.msra.mxu0 0
      %2393 = vmatprep.subr.bf16.mxu0 0
      %2394 = vmatpush1.bf16.msra.mxu0 0
      %2395 = vmatprep.subr.bf16.mxu0 0
      %2396 = vmatpush1.bf16.msra.mxu0 0
      %2397 = vmatprep.subr.bf16.mxu0 0
      %2398 = vmatpush1.bf16.msra.mxu0 0
      %2399 = vmatprep.subr.bf16.mxu0 0
      %2400 = vmatpush1.bf16.msra.mxu0 0
      %2401 = vmatprep.subr.bf16.mxu0 0
      %2402 = vmatpush1.bf16.msra.mxu0 0
      %2403 = vmatprep.subr.bf16.mxu0 0
      %2404 = vmatpush1.bf16.msra.mxu0 0
      %2405 = vmatprep.subr.bf16.mxu0 %v2389
      %2406 = vmatpush1.bf16.msra.mxu0 %v2386
      %2407 = vmatprep.subr.bf16.mxu0 0
      %2408 = vmatpush2.bf16.msra.mxu0 0
      %2409 = vmatprep.subr.bf16.mxu0 0
      %2410 = vmatpush2.bf16.msra.mxu0 0
      %2411 = vmatprep.subr.bf16.mxu0 0
      %2412 = vmatpush2.bf16.msra.mxu0 0
      %2413 = vmatprep.subr.bf16.mxu0 0
      %2414 = vmatpush2.bf16.msra.mxu0 0
      %2415 = vmatprep.subr.bf16.mxu0 0
      %2416 = vmatpush2.bf16.msra.mxu0 0
      %2417 = vmatprep.subr.bf16.mxu0 0
      %2418 = vmatpush2.bf16.msra.mxu0 0
      %2419 = vmatprep.subr.bf16.mxu0 0
      %2420 = vmatpush2.bf16.msra.mxu0 0
      %2421 = vmatprep.subr.bf16.mxu0 0
      %2422 = vmatpush2.bf16.msra.mxu0 0
      %2423 = vmatprep.mubr.bf16.mxu0 0
      %2424 = vmatmul.mubr.bf16.gmra.mxu0 %v2383
      %v2425 = vpop.f32.mrf.mxu0
      %v2426 = vadd.f32 0.0, %v2425
      %v2427 = vpop.f32.mrf.mxu0
      %v2428 = vadd.f32 0.0, %v2427
      %v2429 = vpop.f32.mrf.mxu0
      %v2430 = vpop.f32.mrf.mxu0
      %2431 = vdwg.mxu0
      %v2433 = vsel %vm518, %v2364, 0
      %v2436 = vsel %vm522, %v2365, 0
      %v2439 = vsel %vm522, %v2366, 0
      %2441 = vmatprep.subr.bf16.mxu0 0
      %2442 = vmatpush1.bf16.msra.mxu0 0
      %2443 = vmatprep.subr.bf16.mxu0 0
      %2444 = vmatpush1.bf16.msra.mxu0 0
      %2445 = vmatprep.subr.bf16.mxu0 0
      %2446 = vmatpush1.bf16.msra.mxu0 0
      %2447 = vmatprep.subr.bf16.mxu0 0
      %2448 = vmatpush1.bf16.msra.mxu0 0
      %2449 = vmatprep.subr.bf16.mxu0 0
      %2450 = vmatpush1.bf16.msra.mxu0 0
      %2451 = vmatprep.subr.bf16.mxu0 0
      %2452 = vmatpush1.bf16.msra.mxu0 0
      %2453 = vmatprep.subr.bf16.mxu0 0
      %2454 = vmatpush1.bf16.msra.mxu0 0
      %2455 = vmatprep.subr.bf16.mxu0 %v2439
      %2456 = vmatpush1.bf16.msra.mxu0 %v2436
      %2457 = vmatprep.subr.bf16.mxu0 0
      %2458 = vmatpush2.bf16.msra.mxu0 0
      %2459 = vmatprep.subr.bf16.mxu0 0
      %2460 = vmatpush2.bf16.msra.mxu0 0
      %2461 = vmatprep.subr.bf16.mxu0 0
      %2462 = vmatpush2.bf16.msra.mxu0 0
      %2463 = vmatprep.subr.bf16.mxu0 0
      %2464 = vmatpush2.bf16.msra.mxu0 0
      %2465 = vmatprep.subr.bf16.mxu0 0
      %2466 = vmatpush2.bf16.msra.mxu0 0
      %2467 = vmatprep.subr.bf16.mxu0 0
      %2468 = vmatpush2.bf16.msra.mxu0 0
      %2469 = vmatprep.subr.bf16.mxu0 0
      %2470 = vmatpush2.bf16.msra.mxu0 0
      %2471 = vmatprep.subr.bf16.mxu0 0
      %2472 = vmatpush2.bf16.msra.mxu0 0
      %2473 = vmatprep.mubr.bf16.mxu0 0
      %2474 = vmatmul.mubr.bf16.gmra.mxu0 %v2433
      %v2475 = vpop.f32.mrf.mxu0
      %v2476 = vadd.f32 %v2426, %v2475
      %v2477 = vpop.f32.mrf.mxu0
      %v2478 = vadd.f32 %v2428, %v2477
      %v2479 = vpop.f32.mrf.mxu0
      %v2480 = vpop.f32.mrf.mxu0
      %2481 = vdwg.mxu0
      %2482 = vrot.lane.b32.xlu0 %v2350, 15
      %v2483 = vpop.permute.xlu0 %2482
      %2485 = vrot.lane.b32.xlu0 %v2349, 15
      %v2486 = vpop.permute.xlu0 %2485
      %v2487 = vsel %vm625, %v2486, %v2483
      %v2490 = vsel %vm625, %v2483, %v2486
      %v2491 = vmul.f32 %v2490, %v633
      %v2492 = vmul.f32 %v2487, %v637
      %s2493 = scalar_lea.vmem %s9, 4
      %v2494 = vld [vmem:[%s2493] sm:$0x3]
      %v2495 = vpack.c.bf16 %v2491, %v2491
      %v2496 = vpack.c.bf16 %v2492, %v2492
      %v2498 = vsel %vm518, %v2494, 0
      %v2501 = vsel %vm522, %v2495, 0
      %v2504 = vsel %vm522, %v2496, 0
      %2506 = vmatprep.subr.bf16.mxu0 0
      %2507 = vmatpush1.bf16.msra.mxu0 0
      %2508 = vmatprep.subr.bf16.mxu0 0
      %2509 = vmatpush1.bf16.msra.mxu0 0
      %2510 = vmatprep.subr.bf16.mxu0 0
      %2511 = vmatpush1.bf16.msra.mxu0 0
      %2512 = vmatprep.subr.bf16.mxu0 0
      %2513 = vmatpush1.bf16.msra.mxu0 0
      %2514 = vmatprep.subr.bf16.mxu0 0
      %2515 = vmatpush1.bf16.msra.mxu0 0
      %2516 = vmatprep.subr.bf16.mxu0 0
      %2517 = vmatpush1.bf16.msra.mxu0 0
      %2518 = vmatprep.subr.bf16.mxu0 0
      %2519 = vmatpush1.bf16.msra.mxu0 0
      %2520 = vmatprep.subr.bf16.mxu0 %v2504
      %2521 = vmatpush1.bf16.msra.mxu0 %v2501
      %2522 = vmatprep.subr.bf16.mxu0 0
      %2523 = vmatpush2.bf16.msra.mxu0 0
      %2524 = vmatprep.subr.bf16.mxu0 0
      %2525 = vmatpush2.bf16.msra.mxu0 0
      %2526 = vmatprep.subr.bf16.mxu0 0
      %2527 = vmatpush2.bf16.msra.mxu0 0
      %2528 = vmatprep.subr.bf16.mxu0 0
      %2529 = vmatpush2.bf16.msra.mxu0 0
      %2530 = vmatprep.subr.bf16.mxu0 0
      %2531 = vmatpush2.bf16.msra.mxu0 0
      %2532 = vmatprep.subr.bf16.mxu0 0
      %2533 = vmatpush2.bf16.msra.mxu0 0
      %2534 = vmatprep.subr.bf16.mxu0 0
      %2535 = vmatpush2.bf16.msra.mxu0 0
      %2536 = vmatprep.subr.bf16.mxu0 0
      %2537 = vmatpush2.bf16.msra.mxu0 0
      %2538 = vmatprep.mubr.bf16.mxu0 0
      %2539 = vmatmul.mubr.bf16.gmra.mxu0 %v2498
      %v2540 = vpop.f32.mrf.mxu0
      %v2541 = vadd.f32 0.0, %v2540
      %v2542 = vpop.f32.mrf.mxu0
      %v2543 = vadd.f32 0.0, %v2542
      %v2544 = vpop.f32.mrf.mxu0
      %v2545 = vpop.f32.mrf.mxu0
      %2546 = vdwg.mxu0
      %v2547 = vadd.f32 %v2476, %v2541
      %v2548 = vadd.f32 %v2478, %v2543
      %2549 = vrot.lane.b32.xlu0 %v2350, 1
      %v2550 = vpop.permute.xlu0 %2549
      %2552 = vrot.lane.b32.xlu0 %v2349, 1
      %v2553 = vpop.permute.xlu0 %2552
      %v2554 = vsel %vm701, %v2553, %v2550
      %v2557 = vsel %vm701, %v2550, %v2553
      %v2558 = vmul.f32 %v2557, %v709
      %v2559 = vmul.f32 %v2554, %v713
      %s2560 = scalar_lea.vmem %s9, 6
      %v2561 = vld [vmem:[%s2560] sm:$0x3]
      %v2562 = vpack.c.bf16 %v2558, %v2558
      %v2563 = vpack.c.bf16 %v2559, %v2559
      %v2565 = vsel %vm518, %v2561, 0
      %v2568 = vsel %vm522, %v2562, 0
      %v2571 = vsel %vm522, %v2563, 0
      %2573 = vmatprep.subr.bf16.mxu0 0
      %2574 = vmatpush1.bf16.msra.mxu0 0
      %2575 = vmatprep.subr.bf16.mxu0 0
      %2576 = vmatpush1.bf16.msra.mxu0 0
      %2577 = vmatprep.subr.bf16.mxu0 0
      %2578 = vmatpush1.bf16.msra.mxu0 0
      %2579 = vmatprep.subr.bf16.mxu0 0
      %2580 = vmatpush1.bf16.msra.mxu0 0
      %2581 = vmatprep.subr.bf16.mxu0 0
      %2582 = vmatpush1.bf16.msra.mxu0 0
      %2583 = vmatprep.subr.bf16.mxu0 0
      %2584 = vmatpush1.bf16.msra.mxu0 0
      %2585 = vmatprep.subr.bf16.mxu0 0
      %2586 = vmatpush1.bf16.msra.mxu0 0
      %2587 = vmatprep.subr.bf16.mxu0 %v2571
      %2588 = vmatpush1.bf16.msra.mxu0 %v2568
      %2589 = vmatprep.subr.bf16.mxu0 0
      %2590 = vmatpush2.bf16.msra.mxu0 0
      %2591 = vmatprep.subr.bf16.mxu0 0
      %2592 = vmatpush2.bf16.msra.mxu0 0
      %2593 = vmatprep.subr.bf16.mxu0 0
      %2594 = vmatpush2.bf16.msra.mxu0 0
      %2595 = vmatprep.subr.bf16.mxu0 0
      %2596 = vmatpush2.bf16.msra.mxu0 0
      %2597 = vmatprep.subr.bf16.mxu0 0
      %2598 = vmatpush2.bf16.msra.mxu0 0
      %2599 = vmatprep.subr.bf16.mxu0 0
      %2600 = vmatpush2.bf16.msra.mxu0 0
      %2601 = vmatprep.subr.bf16.mxu0 0
      %2602 = vmatpush2.bf16.msra.mxu0 0
      %2603 = vmatprep.subr.bf16.mxu0 0
      %2604 = vmatpush2.bf16.msra.mxu0 0
      %2605 = vmatprep.mubr.bf16.mxu0 0
      %2606 = vmatmul.mubr.bf16.gmra.mxu0 %v2565
      %v2607 = vpop.f32.mrf.mxu0
      %v2608 = vadd.f32 0.0, %v2607
      %v2609 = vpop.f32.mrf.mxu0
      %v2610 = vadd.f32 0.0, %v2609
      %v2611 = vpop.f32.mrf.mxu0
      %v2612 = vpop.f32.mrf.mxu0
      %2613 = vdwg.mxu0
      %v2614 = vadd.f32 %v2547, %v2608
      %v2615 = vadd.f32 %v2548, %v2610
      %s2616 = scalar_lea.vmem %s9, 8
      %v2617 = vld [vmem:[%s2616] sm:$0x3]
      %v2618 = vpack.c.bf16 %v2349, %v2349
      %v2619 = vpack.c.bf16 %v2350, %v2350
      %v2621 = vsel %vm518, %v2617, 0
      %v2624 = vsel %vm522, %v2618, 0
      %v2627 = vsel %vm522, %v2619, 0
      %2629 = vmatprep.subr.bf16.mxu0 0
      %2630 = vmatpush1.bf16.msra.mxu0 0
      %2631 = vmatprep.subr.bf16.mxu0 0
      %2632 = vmatpush1.bf16.msra.mxu0 0
      %2633 = vmatprep.subr.bf16.mxu0 0
      %2634 = vmatpush1.bf16.msra.mxu0 0
      %2635 = vmatprep.subr.bf16.mxu0 0
      %2636 = vmatpush1.bf16.msra.mxu0 0
      %2637 = vmatprep.subr.bf16.mxu0 0
      %2638 = vmatpush1.bf16.msra.mxu0 0
      %2639 = vmatprep.subr.bf16.mxu0 0
      %2640 = vmatpush1.bf16.msra.mxu0 0
      %2641 = vmatprep.subr.bf16.mxu0 0
      %2642 = vmatpush1.bf16.msra.mxu0 0
      %2643 = vmatprep.subr.bf16.mxu0 %v2627
      %2644 = vmatpush1.bf16.msra.mxu0 %v2624
      %2645 = vmatprep.subr.bf16.mxu0 0
      %2646 = vmatpush2.bf16.msra.mxu0 0
      %2647 = vmatprep.subr.bf16.mxu0 0
      %2648 = vmatpush2.bf16.msra.mxu0 0
      %2649 = vmatprep.subr.bf16.mxu0 0
      %2650 = vmatpush2.bf16.msra.mxu0 0
      %2651 = vmatprep.subr.bf16.mxu0 0
      %2652 = vmatpush2.bf16.msra.mxu0 0
      %2653 = vmatprep.subr.bf16.mxu0 0
      %2654 = vmatpush2.bf16.msra.mxu0 0
      %2655 = vmatprep.subr.bf16.mxu0 0
      %2656 = vmatpush2.bf16.msra.mxu0 0
      %2657 = vmatprep.subr.bf16.mxu0 0
      %2658 = vmatpush2.bf16.msra.mxu0 0
      %2659 = vmatprep.subr.bf16.mxu0 0
      %2660 = vmatpush2.bf16.msra.mxu0 0
      %2661 = vmatprep.mubr.bf16.mxu0 0
      %2662 = vmatmul.mubr.bf16.gmra.mxu0 %v2621
      %v2663 = vpop.f32.mrf.mxu0
      %v2664 = vadd.f32 0.0, %v2663
      %v2665 = vpop.f32.mrf.mxu0
      %v2666 = vadd.f32 0.0, %v2665
      %v2667 = vpop.f32.mrf.mxu0
      %v2668 = vpop.f32.mrf.mxu0
      %2669 = vdwg.mxu0
      %v2670 = vadd.f32 %v2614, %v2664
      %v2671 = vadd.f32 %v2615, %v2666
      %2672 = vrot.lane.b32.xlu0 %v2349, 127
      %v2673 = vpop.permute.xlu0 %2672
      %2674 = vrot.lane.b32.xlu0 %v2350, 127
      %v2675 = vpop.permute.xlu0 %2674
      %v2676 = vsel %vm833, %v2673, %v2675
      %v2680 = vsel %vm833, %v2675, %v2673
      %v2681 = vmul.f32 %v2676, %v842
      %v2682 = vmul.f32 %v2680, %v846
      %s2683 = scalar_lea.vmem %s9, 10
      %v2684 = vld [vmem:[%s2683] sm:$0x3]
      %v2685 = vpack.c.bf16 %v2681, %v2681
      %v2686 = vpack.c.bf16 %v2682, %v2682
      %v2688 = vsel %vm518, %v2684, 0
      %v2691 = vsel %vm522, %v2685, 0
      %v2694 = vsel %vm522, %v2686, 0
      %2696 = vmatprep.subr.bf16.mxu0 0
      %2697 = vmatpush1.bf16.msra.mxu0 0
      %2698 = vmatprep.subr.bf16.mxu0 0
      %2699 = vmatpush1.bf16.msra.mxu0 0
      %2700 = vmatprep.subr.bf16.mxu0 0
      %2701 = vmatpush1.bf16.msra.mxu0 0
      %2702 = vmatprep.subr.bf16.mxu0 0
      %2703 = vmatpush1.bf16.msra.mxu0 0
      %2704 = vmatprep.subr.bf16.mxu0 0
      %2705 = vmatpush1.bf16.msra.mxu0 0
      %2706 = vmatprep.subr.bf16.mxu0 0
      %2707 = vmatpush1.bf16.msra.mxu0 0
      %2708 = vmatprep.subr.bf16.mxu0 0
      %2709 = vmatpush1.bf16.msra.mxu0 0
      %2710 = vmatprep.subr.bf16.mxu0 %v2694
      %2711 = vmatpush1.bf16.msra.mxu0 %v2691
      %2712 = vmatprep.subr.bf16.mxu0 0
      %2713 = vmatpush2.bf16.msra.mxu0 0
      %2714 = vmatprep.subr.bf16.mxu0 0
      %2715 = vmatpush2.bf16.msra.mxu0 0
      %2716 = vmatprep.subr.bf16.mxu0 0
      %2717 = vmatpush2.bf16.msra.mxu0 0
      %2718 = vmatprep.subr.bf16.mxu0 0
      %2719 = vmatpush2.bf16.msra.mxu0 0
      %2720 = vmatprep.subr.bf16.mxu0 0
      %2721 = vmatpush2.bf16.msra.mxu0 0
      %2722 = vmatprep.subr.bf16.mxu0 0
      %2723 = vmatpush2.bf16.msra.mxu0 0
      %2724 = vmatprep.subr.bf16.mxu0 0
      %2725 = vmatpush2.bf16.msra.mxu0 0
      %2726 = vmatprep.subr.bf16.mxu0 0
      %2727 = vmatpush2.bf16.msra.mxu0 0
      %2728 = vmatprep.mubr.bf16.mxu0 0
      %2729 = vmatmul.mubr.bf16.gmra.mxu0 %v2688
      %v2730 = vpop.f32.mrf.mxu0
      %v2731 = vadd.f32 0.0, %v2730
      %v2732 = vpop.f32.mrf.mxu0
      %v2733 = vadd.f32 0.0, %v2732
      %v2734 = vpop.f32.mrf.mxu0
      %v2735 = vpop.f32.mrf.mxu0
      %2736 = vdwg.mxu0
      %v2737 = vadd.f32 %v2670, %v2731
      %v2738 = vadd.f32 %v2671, %v2733
      %2739 = vrot.lane.b32.xlu0 %v2349, 113
      %v2740 = vpop.permute.xlu0 %2739
      %2741 = vrot.lane.b32.xlu0 %v2350, 113
      %v2742 = vpop.permute.xlu0 %2741
      %v2743 = vsel %vm909, %v2740, %v2742
      %v2747 = vsel %vm909, %v2742, %v2740
      %v2748 = vmul.f32 %v2743, %v918
      %v2749 = vmul.f32 %v2747, %v922
      %s2750 = scalar_lea.vmem %s9, 12
      %v2751 = vld [vmem:[%s2750] sm:$0x3]
      %v2752 = vpack.c.bf16 %v2748, %v2748
      %v2753 = vpack.c.bf16 %v2749, %v2749
      %v2755 = vsel %vm518, %v2751, 0
      %v2758 = vsel %vm522, %v2752, 0
      %v2761 = vsel %vm522, %v2753, 0
      %2763 = vmatprep.subr.bf16.mxu0 0
      %2764 = vmatpush1.bf16.msra.mxu0 0
      %2765 = vmatprep.subr.bf16.mxu0 0
      %2766 = vmatpush1.bf16.msra.mxu0 0
      %2767 = vmatprep.subr.bf16.mxu0 0
      %2768 = vmatpush1.bf16.msra.mxu0 0
      %2769 = vmatprep.subr.bf16.mxu0 0
      %2770 = vmatpush1.bf16.msra.mxu0 0
      %2771 = vmatprep.subr.bf16.mxu0 0
      %2772 = vmatpush1.bf16.msra.mxu0 0
      %2773 = vmatprep.subr.bf16.mxu0 0
      %2774 = vmatpush1.bf16.msra.mxu0 0
      %2775 = vmatprep.subr.bf16.mxu0 0
      %2776 = vmatpush1.bf16.msra.mxu0 0
      %2777 = vmatprep.subr.bf16.mxu0 %v2761
      %2778 = vmatpush1.bf16.msra.mxu0 %v2758
      %2779 = vmatprep.subr.bf16.mxu0 0
      %2780 = vmatpush2.bf16.msra.mxu0 0
      %2781 = vmatprep.subr.bf16.mxu0 0
      %2782 = vmatpush2.bf16.msra.mxu0 0
      %2783 = vmatprep.subr.bf16.mxu0 0
      %2784 = vmatpush2.bf16.msra.mxu0 0
      %2785 = vmatprep.subr.bf16.mxu0 0
      %2786 = vmatpush2.bf16.msra.mxu0 0
      %2787 = vmatprep.subr.bf16.mxu0 0
      %2788 = vmatpush2.bf16.msra.mxu0 0
      %2789 = vmatprep.subr.bf16.mxu0 0
      %2790 = vmatpush2.bf16.msra.mxu0 0
      %2791 = vmatprep.subr.bf16.mxu0 0
      %2792 = vmatpush2.bf16.msra.mxu0 0
      %2793 = vmatprep.subr.bf16.mxu0 0
      %2794 = vmatpush2.bf16.msra.mxu0 0
      %2795 = vmatprep.mubr.bf16.mxu0 0
      %2796 = vmatmul.mubr.bf16.gmra.mxu0 %v2755
      %v2797 = vpop.f32.mrf.mxu0
      %v2798 = vadd.f32 0.0, %v2797
      %v2799 = vpop.f32.mrf.mxu0
      %v2800 = vadd.f32 0.0, %v2799
      %v2801 = vpop.f32.mrf.mxu0
      %v2802 = vpop.f32.mrf.mxu0
      %2803 = vdwg.mxu0
      %v2804 = vadd.f32 %v2737, %v2798
      %v2805 = vadd.f32 %v2738, %v2800
      %2806 = vrot.lane.b32.xlu0 %v2349, 112
      %v2807 = vpop.permute.xlu0 %2806
      %2808 = vrot.lane.b32.xlu0 %v2350, 112
      %v2809 = vpop.permute.xlu0 %2808
      %v2810 = vsel %vm985, %v2807, %v2809
      %v2814 = vsel %vm985, %v2809, %v2807
      %v2815 = vmul.f32 %v2810, %v994
      %v2816 = vmul.f32 %v2814, %v998
      %s2817 = scalar_lea.vmem %s9, 14
      %v2818 = vld [vmem:[%s2817] sm:$0x3]
      %v2819 = vpack.c.bf16 %v2815, %v2815
      %v2820 = vpack.c.bf16 %v2816, %v2816
      %v2822 = vsel %vm518, %v2818, 0
      %v2825 = vsel %vm522, %v2819, 0
      %v2828 = vsel %vm522, %v2820, 0
      %2830 = vmatprep.subr.bf16.mxu0 0
      %2831 = vmatpush1.bf16.msra.mxu0 0
      %2832 = vmatprep.subr.bf16.mxu0 0
      %2833 = vmatpush1.bf16.msra.mxu0 0
      %2834 = vmatprep.subr.bf16.mxu0 0
      %2835 = vmatpush1.bf16.msra.mxu0 0
      %2836 = vmatprep.subr.bf16.mxu0 0
      %2837 = vmatpush1.bf16.msra.mxu0 0
      %2838 = vmatprep.subr.bf16.mxu0 0
      %2839 = vmatpush1.bf16.msra.mxu0 0
      %2840 = vmatprep.subr.bf16.mxu0 0
      %2841 = vmatpush1.bf16.msra.mxu0 0
      %2842 = vmatprep.subr.bf16.mxu0 0
      %2843 = vmatpush1.bf16.msra.mxu0 0
      %2844 = vmatprep.subr.bf16.mxu0 %v2828
      %2845 = vmatpush1.bf16.msra.mxu0 %v2825
      %2846 = vmatprep.subr.bf16.mxu0 0
      %2847 = vmatpush2.bf16.msra.mxu0 0
      %2848 = vmatprep.subr.bf16.mxu0 0
      %2849 = vmatpush2.bf16.msra.mxu0 0
      %2850 = vmatprep.subr.bf16.mxu0 0
      %2851 = vmatpush2.bf16.msra.mxu0 0
      %2852 = vmatprep.subr.bf16.mxu0 0
      %2853 = vmatpush2.bf16.msra.mxu0 0
      %2854 = vmatprep.subr.bf16.mxu0 0
      %2855 = vmatpush2.bf16.msra.mxu0 0
      %2856 = vmatprep.subr.bf16.mxu0 0
      %2857 = vmatpush2.bf16.msra.mxu0 0
      %2858 = vmatprep.subr.bf16.mxu0 0
      %2859 = vmatpush2.bf16.msra.mxu0 0
      %2860 = vmatprep.subr.bf16.mxu0 0
      %2861 = vmatpush2.bf16.msra.mxu0 0
      %2862 = vmatprep.mubr.bf16.mxu0 0
      %2863 = vmatmul.mubr.bf16.gmra.mxu0 %v2822
      %v2864 = vpop.f32.mrf.mxu0
      %v2865 = vadd.f32 0.0, %v2864
      %v2866 = vpop.f32.mrf.mxu0
      %v2867 = vadd.f32 0.0, %v2866
      %v2868 = vpop.f32.mrf.mxu0
      %v2869 = vpop.f32.mrf.mxu0
      %2870 = vdwg.mxu0
      %v2871 = vadd.f32 %v2804, %v2865
      %v2872 = vadd.f32 %v2805, %v2867
      %2873 = vrot.lane.b32.xlu0 %v2349, 111
      %v2874 = vpop.permute.xlu0 %2873
      %2875 = vrot.lane.b32.xlu0 %v2350, 111
      %v2876 = vpop.permute.xlu0 %2875
      %v2877 = vsel %vm1061, %v2874, %v2876
      %v2881 = vsel %vm1061, %v2876, %v2874
      %v2882 = vmul.f32 %v2877, %v1070
      %v2883 = vmul.f32 %v2881, %v1074
      %s2884 = scalar_lea.vmem %s9, 16
      %v2885 = vld [vmem:[%s2884] sm:$0x3]
      %v2886 = vpack.c.bf16 %v2882, %v2882
      %v2887 = vpack.c.bf16 %v2883, %v2883
      %v2889 = vsel %vm518, %v2885, 0
      %v2892 = vsel %vm522, %v2886, 0
      %v2895 = vsel %vm522, %v2887, 0
      %2897 = vmatprep.subr.bf16.mxu0 0
      %2898 = vmatpush1.bf16.msra.mxu0 0
      %2899 = vmatprep.subr.bf16.mxu0 0
      %2900 = vmatpush1.bf16.msra.mxu0 0
      %2901 = vmatprep.subr.bf16.mxu0 0
      %2902 = vmatpush1.bf16.msra.mxu0 0
      %2903 = vmatprep.subr.bf16.mxu0 0
      %2904 = vmatpush1.bf16.msra.mxu0 0
      %2905 = vmatprep.subr.bf16.mxu0 0
      %2906 = vmatpush1.bf16.msra.mxu0 0
      %2907 = vmatprep.subr.bf16.mxu0 0
      %2908 = vmatpush1.bf16.msra.mxu0 0
      %2909 = vmatprep.subr.bf16.mxu0 0
      %2910 = vmatpush1.bf16.msra.mxu0 0
      %2911 = vmatprep.subr.bf16.mxu0 %v2895
      %2912 = vmatpush1.bf16.msra.mxu0 %v2892
      %2913 = vmatprep.subr.bf16.mxu0 0
      %2914 = vmatpush2.bf16.msra.mxu0 0
      %2915 = vmatprep.subr.bf16.mxu0 0
      %2916 = vmatpush2.bf16.msra.mxu0 0
      %2917 = vmatprep.subr.bf16.mxu0 0
      %2918 = vmatpush2.bf16.msra.mxu0 0
      %2919 = vmatprep.subr.bf16.mxu0 0
      %2920 = vmatpush2.bf16.msra.mxu0 0
      %2921 = vmatprep.subr.bf16.mxu0 0
      %2922 = vmatpush2.bf16.msra.mxu0 0
      %2923 = vmatprep.subr.bf16.mxu0 0
      %2924 = vmatpush2.bf16.msra.mxu0 0
      %2925 = vmatprep.subr.bf16.mxu0 0
      %2926 = vmatpush2.bf16.msra.mxu0 0
      %2927 = vmatprep.subr.bf16.mxu0 0
      %2928 = vmatpush2.bf16.msra.mxu0 0
      %2929 = vmatprep.mubr.bf16.mxu0 0
      %2930 = vmatmul.mubr.bf16.gmra.mxu0 %v2889
      %v2931 = vpop.f32.mrf.mxu0
      %v2932 = vadd.f32 0.0, %v2931
      %v2933 = vpop.f32.mrf.mxu0
      %v2934 = vadd.f32 0.0, %v2933
      %v2935 = vpop.f32.mrf.mxu0
      %v2936 = vpop.f32.mrf.mxu0
      %2937 = vdwg.mxu0
      %v2938 = vadd.f32 %v2871, %v2932
      %v2939 = vadd.f32 %v2872, %v2934
      %v2940 = vld [vmem:[%s10] sm:$0xf]
      %2942 = vset.pattern.permute.xlu0 0
      %2943 = vperm.xlu0 %2942, %v2940
      %v2944 = vpop.permute.xlu0 %2943
      %v2946 = vadd.f32 %v2938, %v2944
      %v2947 = vadd.f32 %v2939, %v2944
      %v2949 = vcombine.high %v1749, %v1749
      %v2951 = vadd.f32 %v2946, %v1749
      %v2952 = vadd.f32 %v2947, %v2949
      %v2953 = vld [vmem:[%s11] sm:$0x3]
      %v2954 = vpack.c.bf16 %v2951, %v2951
      %v2955 = vpack.c.bf16 %v2952, %v2952
      %v2956 = vld [vmem:[%s12] sm:$0xf]
      %2958 = vset.pattern.permute.xlu0 0
      %2959 = vperm.xlu0 %2958, %v2956
      %v2960 = vpop.permute.xlu0 %2959
      %v2963 = vsel %vm518, %v2953, 0
      %v2966 = vsel %vm522, %v2954, 0
      %v2969 = vsel %vm522, %v2955, 0
      %2971 = vmatprep.subr.bf16.mxu0 0
      %2972 = vmatpush1.bf16.msra.mxu0 0
      %2973 = vmatprep.subr.bf16.mxu0 0
      %2974 = vmatpush1.bf16.msra.mxu0 0
      %2975 = vmatprep.subr.bf16.mxu0 0
      %2976 = vmatpush1.bf16.msra.mxu0 0
      %2977 = vmatprep.subr.bf16.mxu0 0
      %2978 = vmatpush1.bf16.msra.mxu0 0
      %2979 = vmatprep.subr.bf16.mxu0 0
      %2980 = vmatpush1.bf16.msra.mxu0 0
      %2981 = vmatprep.subr.bf16.mxu0 0
      %2982 = vmatpush1.bf16.msra.mxu0 0
      %2983 = vmatprep.subr.bf16.mxu0 0
      %2984 = vmatpush1.bf16.msra.mxu0 0
      %2985 = vmatprep.subr.bf16.mxu0 %v2969
      %2986 = vmatpush1.bf16.msra.mxu0 %v2966
      %2987 = vmatprep.subr.bf16.mxu0 0
      %2988 = vmatpush2.bf16.msra.mxu0 0
      %2989 = vmatprep.subr.bf16.mxu0 0
      %2990 = vmatpush2.bf16.msra.mxu0 0
      %2991 = vmatprep.subr.bf16.mxu0 0
      %2992 = vmatpush2.bf16.msra.mxu0 0
      %2993 = vmatprep.subr.bf16.mxu0 0
      %2994 = vmatpush2.bf16.msra.mxu0 0
      %2995 = vmatprep.subr.bf16.mxu0 0
      %2996 = vmatpush2.bf16.msra.mxu0 0
      %2997 = vmatprep.subr.bf16.mxu0 0
      %2998 = vmatpush2.bf16.msra.mxu0 0
      %2999 = vmatprep.subr.bf16.mxu0 0
      %3000 = vmatpush2.bf16.msra.mxu0 0
      %3001 = vmatprep.subr.bf16.mxu0 0
      %3002 = vmatpush2.bf16.msra.mxu0 0
      %3003 = vmatprep.mubr.bf16.mxu0 0
      %3004 = vmatmul.mubr.bf16.gmra.mxu0 %v2963
      %v3005 = vpop.f32.mrf.mxu0
      %v3006 = vadd.f32 %v2960, %v3005
      %v3007 = vpop.f32.mrf.mxu0
      %v3008 = vadd.f32 %v2960, %v3007
      %v3009 = vpop.f32.mrf.mxu0
      %v3010 = vpop.f32.mrf.mxu0
      %3011 = vdwg.mxu0
      %v3014 = vcombine.low %v3006, %v3008
      %3016 = vst [vmem:[%s460] sm:$0xff] %v3014
      %p3017 = scmp.lt.s32.totalorder %s24, 1
      %s3018 = scalar_select %p3017, %s24, 1
      %s3019 = smul.addr %s3018, 2
      %s3020 = smul.addr %s3019, 4
      %s3021 = scalar_lea.vmem %s13, %s3020
      // Predicated region
      $region73: #{feature_merging_forward.2} parent=71 // pred_check
        %p3022 = pneg %p325
      $region74: #{feature_merging_forward.2} parent=71 // pred_check_branch
        %3024 = sbr.rel (%p3022) target = $region76
      $region75: #{feature_merging_forward.2} parent=71 // pred_region
        _
      $region76: #{feature_merging_forward.2} parent=71 // pred_fallthru
        _
    $region72: #{feature_merging_forward.2} parent=5 // pred_fallthru
      _
    %p3025 = scmp.le.s32.totalorder 2, %s19
    // Predicated region
    $region77: #{feature_merging_forward.2} parent=5 // pred_check
      %p3026 = pneg %p3025
    $region78: #{feature_merging_forward.2} parent=5 // pred_check_branch
      %3028 = sbr.rel (%p3026) target = $region80
    $region79: #{feature_merging_forward.2} parent=5 // pred_region
      %s3029 = ssub.s32 %s19, 2
      // Predicated region
      $region81: #{feature_merging_forward.2} parent=79 // pred_check
        %p3030 = pneg %p331
      $region82: #{feature_merging_forward.2} parent=79 // pred_check_branch
        %3032 = sbr.rel (%p3030) target = $region84
      $region83: #{feature_merging_forward.2} parent=79 // pred_region
        %p3033 = scmp.lt.s32.totalorder %s25, 1
        %s3034 = scalar_select %p3033, %s25, 1
        %s3035 = smul.addr %s3034, 2
        %s3036 = smul.addr %s3035, 4
        %s3037 = scalar_lea.vmem %s13, %s3036
      $region84: #{feature_merging_forward.2} parent=79 // pred_fallthru
        _
    $region80: #{feature_merging_forward.2} parent=5 // pred_fallthru
      _
  $region6: #{feature_merging_forward.2} parent=0 // loop_footer
    %s23 = sadd.s32 1, %s19
  $region7: #{feature_merging_forward.2} parent=0 // loop_footer_branch
    %18 = sbr.rel target = $region3
  $region8: #{feature_merging_forward.2} parent=0 // loop_exit
    _

</llo_original>
